<compile_context>
chip_gen: v6e
topology: v6e:2x2x1
jax: 0.10.0
libtpu: 0.0.40
codegen_flags: <defaults>
</compile_context>

<pallas_src>
import jax
import jax.numpy as jnp
from jax.experimental import pallas as pl
from jax.experimental.pallas import tpu as pltpu


def mlp_kernel(x_ref, w1_ref, b1_ref, w2_ref, b2_ref,
               w3_ref, b3_ref, w4_ref, b4_ref, o_ref):
    # fc1 + relu. x arrives f32 from HBM; cast to bf16 here (free, hidden
    # under the DMA) so the wrapper never does its own pass over x.
    x = x_ref[...].astype(jnp.bfloat16)
    h = jnp.dot(x, w1_ref[...], preferred_element_type=jnp.float32)
    h = jnp.maximum(h + b1_ref[...], 0.0)
    # fc2 + relu
    h = jnp.dot(h.astype(jnp.bfloat16), w2_ref[...],
                preferred_element_type=jnp.float32)
    h = jnp.maximum(h + b2_ref[...], 0.0)
    # fc3 + relu
    h = jnp.dot(h.astype(jnp.bfloat16), w3_ref[...],
                preferred_element_type=jnp.float32)
    h = jnp.maximum(h + b3_ref[...], 0.0)
    # output layer
    z = jnp.dot(h.astype(jnp.bfloat16), w4_ref[...],
                preferred_element_type=jnp.float32)
    z = z + b4_ref[...]
    # log_softmax along the feature axis (dim=1), all in f32
    m = jnp.max(z, axis=-1, keepdims=True)
    s = z - m
    lse = jnp.log(jnp.sum(jnp.exp(s), axis=-1, keepdims=True))
    o_ref[...] = (s - lse).astype(o_ref.dtype)


def network_forward(x, params, *, tile_b=None,
                    vmem_limit_bytes=48 * 1024 * 1024):
    """x: (B, 784) float32.  params: dict of f32 (in,out) weights + (1,out) biases."""
    B, D_in = x.shape

    if tile_b is None:
        # 4096 keeps per-step overhead <10% of the f32 x-tile DMA on all of
        # v5e / v6e / v7x while the double-buffered x tile (~26 MiB) fits the
        # raised 48 MiB scoped-VMEM limit.  For v7x megacore, keep B large
        # enough that num_tiles >= 4 so each TensorCore still pipelines.
        tile_b = 4096
    if tile_b >= B:
        # Single full-batch block: block dims equal the full array dims, so
        # no (8,128)-divisibility or padding concerns.
        tile_b = B
    else:
        tile_b = max(8, (tile_b // 8) * 8)
    num_tiles = pl.cdiv(B, tile_b)

    # bf16 MXU operands for the weights (tiny, one-time); biases stay f32.
    w1 = params["w1"].astype(jnp.bfloat16)
    w2 = params["w2"].astype(jnp.bfloat16)
    w3 = params["w3"].astype(jnp.bfloat16)
    w4 = params["w4"].astype(jnp.bfloat16)
    b1, b2, b3, b4 = params["b1"], params["b2"], params["b3"], params["b4"]
    D_out = w4.shape[1]

    rep = lambda i: (0, 0)          # weights/biases: same block for every tile
    row = lambda i: (i, 0)          # batch-tiled arrays

    # Advisory cost estimate (memory-bound custom call).
    flops = 2 * B * (D_in * 64 + 64 * 64 + 64 * 64 + 64 * D_out)
    bytes_accessed = (B * D_in * 4                                   # x read (f32)
                      + 2 * (D_in * 64 + 64 * 64 + 64 * 64 + 64 * D_out)  # bf16 weights
                      + 4 * (64 * 3 + D_out)                         # f32 biases
                      + B * D_out * 4)                               # output write
    cost = pl.CostEstimate(flops=flops,
                           transcendentals=B * (D_out + 1),
                           bytes_accessed=bytes_accessed)

    out = pl.pallas_call(
        mlp_kernel,
        out_shape=jax.ShapeDtypeStruct((B, D_out), jnp.float32),
        grid_spec=pltpu.PrefetchScalarGridSpec(
            num_scalar_prefetch=0,
            grid=(num_tiles,),
            in_specs=[
                pl.BlockSpec((tile_b, D_in), row),
                pl.BlockSpec(w1.shape, rep), pl.BlockSpec(b1.shape, rep),
                pl.BlockSpec(w2.shape, rep), pl.BlockSpec(b2.shape, rep),
                pl.BlockSpec(w3.shape, rep), pl.BlockSpec(b3.shape, rep),
                pl.BlockSpec(w4.shape, rep), pl.BlockSpec(b4.shape, rep),
            ],
            out_specs=pl.BlockSpec((tile_b, D_out), row),
        ),
        compiler_params=pltpu.CompilerParams(
            dimension_semantics=("parallel",),
            vmem_limit_bytes=vmem_limit_bytes),
        cost_estimate=cost,
    )(x, w1, b1, w2, b2, w3, b3, w4, b4)

    return out


def init_params(key):
    """Deterministic init matching the nn.Linear shapes (kaiming-uniform-ish)."""
    sizes = [(784, 64), (64, 64), (64, 64), (64, 10)]
    params = {}
    keys = jax.random.split(key, 2 * len(sizes))
    for idx, (fan_in, fan_out) in enumerate(sizes):
        bound = 1.0 / jnp.sqrt(fan_in)
        w = jax.random.uniform(keys[2 * idx], (fan_in, fan_out),
                               minval=-bound, maxval=bound, dtype=jnp.float32)
        b = jax.random.uniform(keys[2 * idx + 1], (1, fan_out),
                               minval=-bound, maxval=bound, dtype=jnp.float32)
        params[f"w{idx + 1}"] = w
        params[f"b{idx + 1}"] = b
    return params


def reference_forward(x, params, *, matmul_dtype=jnp.float32):
    """Pure-JAX reference. With matmul_dtype=bfloat16 it mirrors the kernel's
    dtype policy (bf16 matmul operands, f32 accumulation, f32 elementwise)."""
    def lin(h, w, b):
        return jnp.dot(h.astype(matmul_dtype), w.astype(matmul_dtype),
                       preferred_element_type=jnp.float32) + b
    h = jnp.maximum(lin(x, params["w1"], params["b1"]), 0.0)
    h = jnp.maximum(lin(h, params["w2"], params["b2"]), 0.0)
    h = jnp.maximum(lin(h, params["w3"], params["b3"]), 0.0)
    z = lin(h, params["w4"], params["b4"])
    return jax.nn.log_softmax(z, axis=1)


if __name__ == "__main__":
    key = jax.random.PRNGKey(0)
    pkey, xkey = jax.random.split(key)
    params = init_params(pkey)

    # Small test shape but with multiple grid steps and a ragged tail
    # (1000 / 256 -> 4 blocks, last block partial) so the uneven-last-block
    # path is exercised.  Real benchmarking should use B >= 4096 with the
    # default tile so the x stream dominates.
    B = 1000
    x = jax.random.normal(xkey, (B, 784), dtype=jnp.float32)

    fwd = jax.jit(lambda xx, pp: network_forward(xx, pp, tile_b=256))
    out = jax.block_until_ready(fwd(x, params))

    assert out.shape == (B, 10)
    # Exact-policy reference (bf16 matmul operands, f32 accumulation).
    ref_bf16 = reference_forward(x, params, matmul_dtype=jnp.bfloat16)
    assert jnp.allclose(out, ref_bf16, atol=2e-4, rtol=2e-4)
    # Loose sanity check against the full-f32 reference.
    ref_f32 = reference_forward(x, params, matmul_dtype=jnp.float32)
    assert jnp.allclose(out, ref_f32, atol=1e-1, rtol=1e-1)
    # Rows sum to 1 after exp (valid log-probabilities).
    assert jnp.allclose(jnp.sum(jnp.exp(out), axis=1), 1.0, atol=1e-3)

    print("KERNEL_OK")
</pallas_src>

<mosaic_0001>
module attributes {stable_mosaic.version = 11 : i64} {
  func.func @mlp_kernel(%arg0: i32, %arg1: memref<256x784xf32, #tpu.memory_space<vmem>>, %arg2: memref<784x64xbf16, #tpu.memory_space<vmem>>, %arg3: memref<1x64xf32, #tpu.memory_space<vmem>>, %arg4: memref<64x64xbf16, #tpu.memory_space<vmem>>, %arg5: memref<1x64xf32, #tpu.memory_space<vmem>>, %arg6: memref<64x64xbf16, #tpu.memory_space<vmem>>, %arg7: memref<1x64xf32, #tpu.memory_space<vmem>>, %arg8: memref<64x10xbf16, #tpu.memory_space<vmem>>, %arg9: memref<1x10xf32, #tpu.memory_space<vmem>>, %arg10: memref<256x10xf32, #tpu.memory_space<vmem>>) attributes {dimension_semantics = [#tpu.dimension_semantics<parallel>], iteration_bounds = array<i64: 4>, scalar_prefetch = 0 : i64, scratch_operands = 0 : i64, tpu.core_type = #tpu.core_type<tc>, window_params = [{transform_indices = @transform_0, window_bounds = array<i64: 256, 784>}, {pipeline_mode = #tpu.pipeline_mode<synchronous>, transform_indices = @transform_1, window_bounds = array<i64: 784, 64>}, {pipeline_mode = #tpu.pipeline_mode<synchronous>, transform_indices = @transform_2, window_bounds = array<i64: 1, 64>}, {pipeline_mode = #tpu.pipeline_mode<synchronous>, transform_indices = @transform_3, window_bounds = array<i64: 64, 64>}, {pipeline_mode = #tpu.pipeline_mode<synchronous>, transform_indices = @transform_4, window_bounds = array<i64: 1, 64>}, {pipeline_mode = #tpu.pipeline_mode<synchronous>, transform_indices = @transform_5, window_bounds = array<i64: 64, 64>}, {pipeline_mode = #tpu.pipeline_mode<synchronous>, transform_indices = @transform_6, window_bounds = array<i64: 1, 64>}, {pipeline_mode = #tpu.pipeline_mode<synchronous>, transform_indices = @transform_7, window_bounds = array<i64: 64, 10>}, {pipeline_mode = #tpu.pipeline_mode<synchronous>, transform_indices = @transform_8, window_bounds = array<i64: 1, 10>}, {transform_indices = @transform_9, window_bounds = array<i64: 256, 10>}]} {
    %c0 = arith.constant 0 : index
    %c0_0 = arith.constant 0 : index
    %0 = vector.load %arg1[%c0, %c0_0] : memref<256x784xf32, #tpu.memory_space<vmem>>, vector<256x784xf32>
    %1 = arith.truncf %0 : vector<256x784xf32> to vector<256x784xbf16>
    %c0_1 = arith.constant 0 : index
    %c0_2 = arith.constant 0 : index
    %2 = vector.load %arg2[%c0_1, %c0_2] : memref<784x64xbf16, #tpu.memory_space<vmem>>, vector<784x64xbf16>
    %cst = arith.constant dense<0.000000e+00> : vector<256x64xf32>
    %3 = tpu.matmul %1, %2, %cst {dimension_numbers = #tpu.dot_dimension_numbers<[1], [0], [0], [1], [0, 0, 1, 1], [], []>} : vector<256x784xbf16>, vector<784x64xbf16>, vector<256x64xf32> -> vector<256x64xf32>
    %c0_3 = arith.constant 0 : index
    %c0_4 = arith.constant 0 : index
    %4 = vector.load %arg3[%c0_3, %c0_4] : memref<1x64xf32, #tpu.memory_space<vmem>>, vector<1x64xf32>
    %5 = vector.broadcast %4 : vector<1x64xf32> to vector<256x64xf32>
    %6 = arith.addf %3, %5 : vector<256x64xf32>
    %cst_5 = arith.constant 0.000000e+00 : f32
    %7 = vector.broadcast %cst_5 : f32 to vector<256x64xf32>
    %8 = arith.maximumf %6, %7 : vector<256x64xf32>
    %9 = arith.truncf %8 : vector<256x64xf32> to vector<256x64xbf16>
    %c0_6 = arith.constant 0 : index
    %c0_7 = arith.constant 0 : index
    %10 = vector.load %arg4[%c0_6, %c0_7] : memref<64x64xbf16, #tpu.memory_space<vmem>>, vector<64x64xbf16>
    %cst_8 = arith.constant dense<0.000000e+00> : vector<256x64xf32>
    %11 = tpu.matmul %9, %10, %cst_8 {dimension_numbers = #tpu.dot_dimension_numbers<[1], [0], [0], [1], [0, 0, 1, 1], [], []>} : vector<256x64xbf16>, vector<64x64xbf16>, vector<256x64xf32> -> vector<256x64xf32>
    %c0_9 = arith.constant 0 : index
    %c0_10 = arith.constant 0 : index
    %12 = vector.load %arg5[%c0_9, %c0_10] : memref<1x64xf32, #tpu.memory_space<vmem>>, vector<1x64xf32>
    %13 = vector.broadcast %12 : vector<1x64xf32> to vector<256x64xf32>
    %14 = arith.addf %11, %13 : vector<256x64xf32>
    %cst_11 = arith.constant 0.000000e+00 : f32
    %15 = vector.broadcast %cst_11 : f32 to vector<256x64xf32>
    %16 = arith.maximumf %14, %15 : vector<256x64xf32>
    %17 = arith.truncf %16 : vector<256x64xf32> to vector<256x64xbf16>
    %c0_12 = arith.constant 0 : index
    %c0_13 = arith.constant 0 : index
    %18 = vector.load %arg6[%c0_12, %c0_13] : memref<64x64xbf16, #tpu.memory_space<vmem>>, vector<64x64xbf16>
    %cst_14 = arith.constant dense<0.000000e+00> : vector<256x64xf32>
    %19 = tpu.matmul %17, %18, %cst_14 {dimension_numbers = #tpu.dot_dimension_numbers<[1], [0], [0], [1], [0, 0, 1, 1], [], []>} : vector<256x64xbf16>, vector<64x64xbf16>, vector<256x64xf32> -> vector<256x64xf32>
    %c0_15 = arith.constant 0 : index
    %c0_16 = arith.constant 0 : index
    %20 = vector.load %arg7[%c0_15, %c0_16] : memref<1x64xf32, #tpu.memory_space<vmem>>, vector<1x64xf32>
    %21 = vector.broadcast %20 : vector<1x64xf32> to vector<256x64xf32>
    %22 = arith.addf %19, %21 : vector<256x64xf32>
    %cst_17 = arith.constant 0.000000e+00 : f32
    %23 = vector.broadcast %cst_17 : f32 to vector<256x64xf32>
    %24 = arith.maximumf %22, %23 : vector<256x64xf32>
    %25 = arith.truncf %24 : vector<256x64xf32> to vector<256x64xbf16>
    %c0_18 = arith.constant 0 : index
    %c0_19 = arith.constant 0 : index
    %26 = vector.load %arg8[%c0_18, %c0_19] : memref<64x10xbf16, #tpu.memory_space<vmem>>, vector<64x10xbf16>
    %cst_20 = arith.constant dense<0.000000e+00> : vector<256x10xf32>
    %27 = tpu.matmul %25, %26, %cst_20 {dimension_numbers = #tpu.dot_dimension_numbers<[1], [0], [0], [1], [0, 0, 1, 1], [], []>} : vector<256x64xbf16>, vector<64x10xbf16>, vector<256x10xf32> -> vector<256x10xf32>
    %c0_21 = arith.constant 0 : index
    %c0_22 = arith.constant 0 : index
    %28 = vector.load %arg9[%c0_21, %c0_22] : memref<1x10xf32, #tpu.memory_space<vmem>>, vector<1x10xf32>
    %29 = vector.broadcast %28 : vector<1x10xf32> to vector<256x10xf32>
    %30 = arith.addf %27, %29 : vector<256x10xf32>
    %cst_23 = arith.constant dense<0xFF800000> : vector<256xf32>
    %31 = vector.multi_reduction <maximumf>, %30, %cst_23 [1] : vector<256x10xf32> to vector<256xf32>
    %32 = vector.shape_cast %31 : vector<256xf32> to vector<256x1xf32>
    %33 = vector.broadcast %32 : vector<256x1xf32> to vector<256x10xf32>
    %34 = arith.subf %30, %33 : vector<256x10xf32>
    %35 = math.exp %34 : vector<256x10xf32>
    %cst_24 = arith.constant dense<0.000000e+00> : vector<256xf32>
    %36 = vector.multi_reduction <add>, %35, %cst_24 [1] : vector<256x10xf32> to vector<256xf32>
    %37 = vector.shape_cast %36 : vector<256xf32> to vector<256x1xf32>
    %38 = math.log %37 : vector<256x1xf32>
    %39 = vector.broadcast %38 : vector<256x1xf32> to vector<256x10xf32>
    %40 = arith.subf %34, %39 : vector<256x10xf32>
    %c0_25 = arith.constant 0 : index
    %c0_26 = arith.constant 0 : index
    %41 = vector.load %arg10[%c0_25, %c0_26] : memref<256x10xf32, #tpu.memory_space<vmem>>, vector<256x10xf32>
    tpu.vector_store %arg10[%c0_25, %c0_26], %40 {strides = array<i32>} : memref<256x10xf32, #tpu.memory_space<vmem>>, vector<256x10xf32>,
    return
  }
  func.func @transform_0(%arg0: i32) -> (i32, i32) {
    %c0_i32 = arith.constant 0 : i32
    %c0_i32_0 = arith.constant 0 : i32
    return %arg0, %c0_i32 : i32, i32
  }
  func.func @transform_1(%arg0: i32) -> (i32, i32) {
    %c0_i32 = arith.constant 0 : i32
    %c0_i32_0 = arith.constant 0 : i32
    %c0_i32_1 = arith.constant 0 : i32
    return %c0_i32, %c0_i32_0 : i32, i32
  }
  func.func @transform_2(%arg0: i32) -> (i32, i32) {
    %c0_i32 = arith.constant 0 : i32
    %c0_i32_0 = arith.constant 0 : i32
    %c0_i32_1 = arith.constant 0 : i32
    return %c0_i32, %c0_i32_0 : i32, i32
  }
  func.func @transform_3(%arg0: i32) -> (i32, i32) {
    %c0_i32 = arith.constant 0 : i32
    %c0_i32_0 = arith.constant 0 : i32
    %c0_i32_1 = arith.constant 0 : i32
    return %c0_i32, %c0_i32_0 : i32, i32
  }
  func.func @transform_4(%arg0: i32) -> (i32, i32) {
    %c0_i32 = arith.constant 0 : i32
    %c0_i32_0 = arith.constant 0 : i32
    %c0_i32_1 = arith.constant 0 : i32
    return %c0_i32, %c0_i32_0 : i32, i32
  }
  func.func @transform_5(%arg0: i32) -> (i32, i32) {
    %c0_i32 = arith.constant 0 : i32
    %c0_i32_0 = arith.constant 0 : i32
    %c0_i32_1 = arith.constant 0 : i32
    return %c0_i32, %c0_i32_0 : i32, i32
  }
  func.func @transform_6(%arg0: i32) -> (i32, i32) {
    %c0_i32 = arith.constant 0 : i32
    %c0_i32_0 = arith.constant 0 : i32
    %c0_i32_1 = arith.constant 0 : i32
    return %c0_i32, %c0_i32_0 : i32, i32
  }
  func.func @transform_7(%arg0: i32) -> (i32, i32) {
    %c0_i32 = arith.constant 0 : i32
    %c0_i32_0 = arith.constant 0 : i32
    %c0_i32_1 = arith.constant 0 : i32
    return %c0_i32, %c0_i32_0 : i32, i32
  }
  func.func @transform_8(%arg0: i32) -> (i32, i32) {
    %c0_i32 = arith.constant 0 : i32
    %c0_i32_0 = arith.constant 0 : i32
    %c0_i32_1 = arith.constant 0 : i32
    return %c0_i32, %c0_i32_0 : i32, i32
  }
  func.func @transform_9(%arg0: i32) -> (i32, i32) {
    %c0_i32 = arith.constant 0 : i32
    %c0_i32_0 = arith.constant 0 : i32
    return %arg0, %c0_i32 : i32, i32
  }
}

</mosaic_0001>

<llo_original>
// kernel: _lambda_.1
$region0: #{_lambda_.1}
  #allocation0 [shape = 'u32[]', space=smem, size = 0x4, offset = 0x4, fixed_abs, tag = 'smem constant byte address 0x4 - core index']
  #allocation1 [shape = 'u32[144,128]{1,0:T(1,128)}', space=vmem, size = 0x12000, scoped, tag = 'internal scratch']
  %s0 = inlined_call_operand.vmem [shape: f32[1000,784], index: 0, kind: input, shape index: {}]
  %s1 = inlined_call_operand.vmem [shape: bf16[784,64], index: 1, kind: input, shape index: {}]
  %s2 = inlined_call_operand.vmem [shape: f32[1,64], index: 2, kind: input, shape index: {}]
  %s3 = inlined_call_operand.vmem [shape: bf16[64,64], index: 3, kind: input, shape index: {}]
  %s4 = inlined_call_operand.vmem [shape: f32[1,64], index: 4, kind: input, shape index: {}]
  %s5 = inlined_call_operand.vmem [shape: bf16[64,64], index: 5, kind: input, shape index: {}]
  %s6 = inlined_call_operand.vmem [shape: f32[1,64], index: 6, kind: input, shape index: {}]
  %s7 = inlined_call_operand.vmem [shape: bf16[64,10], index: 7, kind: input, shape index: {}]
  %s8 = inlined_call_operand.vmem [shape: f32[1,10], index: 8, kind: input, shape index: {}]
  %s9 = inlined_call_operand.vmem [shape: f32[1000,10], index: 9, kind: output, shape index: {}]
  %s10 = sld [smem:[#allocation0]]
  $region117: #{_lambda_.1} parent=0
    _
  %s12 = ssub.s32 1, %s10
  %s13 = scalar_select 0, %s12, %s10
  $region1: #{_lambda_.1} parent=0
    #allocation2 [shape = 'u8[262144]{0}', space=vmem, size = 0x40000, scoped, tag = 'output window, operand 0']
    loop: start=0, step=1, limit=6
    $region2: #{_lambda_.1} parent=1 // loop_pre_header
      _
    $region3: #{_lambda_.1} parent=1 // loop_header
      %s15 = sphi 0, %s19
      %p16 = scmp.ge.s32.totalorder %s15, 6
      %s25 = sphi 0, %s27
      %s28 = sphi 0, %s25
      %s29 = sphi 0, %s28
      %s45 = sphi 0, %s29
      %s49 = sphi 0, %s49
      %s51 = sphi 0, %s49
      %s52 = sphi 0, %s51
      %s66 = sphi 0, %s52
      %s70 = sphi 0, %s70
      %s72 = sphi 0, %s70
      %s73 = sphi 0, %s72
      %s87 = sphi 0, %s73
      %s91 = sphi 0, %s91
      %s93 = sphi 0, %s91
      %s94 = sphi 0, %s93
      %s108 = sphi 0, %s94
      %s112 = sphi 0, %s112
      %s114 = sphi 0, %s112
      %s115 = sphi 0, %s114
      %s129 = sphi 0, %s115
      %s133 = sphi 0, %s133
      %s135 = sphi 0, %s133
      %s136 = sphi 0, %s135
      %s150 = sphi 0, %s136
      %s154 = sphi 0, %s154
      %s156 = sphi 0, %s154
      %s157 = sphi 0, %s156
      %s171 = sphi 0, %s157
      %s175 = sphi 0, %s175
      %s177 = sphi 0, %s175
      %s178 = sphi 0, %s177
      %s192 = sphi 0, %s178
      %s196 = sphi 0, %s196
      %s198 = sphi 0, %s196
      %s199 = sphi 0, %s198
      %s213 = sphi 0, %s199
      %s219 = sphi 0, %s221
      %s222 = sphi 0, %s219
      %s223 = sphi 0, %s222
      %s239 = sphi 0, %s223
    $region4: #{_lambda_.1} parent=1 // loop_header_branch
      %18 = sbr.rel (%p16) target = $region8
    $region5: #{_lambda_.1} parent=1 // loop_body
      %s20 = ssub.s32 %s15, 1
      %s21 = ssub.s32 %s15, 2
      %s22 = sadd.s32 %s15, 1
      %s23 = ssub.s32 %s15, %s22
      %p24 = scmp.eq.s32.totalorder %s23, 0
      %s26 = sadd.s32 %s25, 1
      %s27 = scalar_select %p24, %s25, %s26
      %p30 = pneg %p24
      %p31 = scmp.eq.s32.totalorder %s15, 3
      %p32 = por %p30, %p31
      %p33 = scmp.ne.s32.totalorder %s25, %s28
      %p34 = scmp.eq.s32.totalorder %s15, 0
      %p35 = por %p33, %p34
      %p36 = scmp.ne.s32.totalorder %s25, %s28
      %p37 = scmp.eq.s32.totalorder %s20, 3
      %p38 = por %p36, %p37
      %p39 = scmp.ne.s32.totalorder %s28, %s29
      %p40 = scmp.eq.s32.totalorder %s20, 0
      %p41 = por %p39, %p40
      %p42 = scmp.ne.s32.totalorder %s28, %s29
      %p43 = scmp.eq.s32.totalorder %s21, 3
      %p44 = por %p42, %p43
      %p46 = scmp.ne.s32.totalorder %s29, %s45
      %p47 = scmp.eq.s32.totalorder %s21, 0
      %p48 = por %p46, %p47
      %s50 = sadd.s32 %s49, 1
      %p53 = scmp.eq.s32.totalorder %s15, 3
      %p54 = scmp.ne.s32.totalorder %s49, %s51
      %p55 = scmp.eq.s32.totalorder %s15, 0
      %p56 = por %p54, %p55
      %p57 = scmp.ne.s32.totalorder %s49, %s51
      %p58 = scmp.eq.s32.totalorder %s20, 3
      %p59 = por %p57, %p58
      %p60 = scmp.ne.s32.totalorder %s51, %s52
      %p61 = scmp.eq.s32.totalorder %s20, 0
      %p62 = por %p60, %p61
      %p63 = scmp.ne.s32.totalorder %s51, %s52
      %p64 = scmp.eq.s32.totalorder %s21, 3
      %p65 = por %p63, %p64
      %p67 = scmp.ne.s32.totalorder %s52, %s66
      %p68 = scmp.eq.s32.totalorder %s21, 0
      %p69 = por %p67, %p68
      %s71 = sadd.s32 %s70, 1
      %p74 = scmp.eq.s32.totalorder %s15, 3
      %p75 = scmp.ne.s32.totalorder %s70, %s72
      %p76 = scmp.eq.s32.totalorder %s15, 0
      %p77 = por %p75, %p76
      %p78 = scmp.ne.s32.totalorder %s70, %s72
      %p79 = scmp.eq.s32.totalorder %s20, 3
      %p80 = por %p78, %p79
      %p81 = scmp.ne.s32.totalorder %s72, %s73
      %p82 = scmp.eq.s32.totalorder %s20, 0
      %p83 = por %p81, %p82
      %p84 = scmp.ne.s32.totalorder %s72, %s73
      %p85 = scmp.eq.s32.totalorder %s21, 3
      %p86 = por %p84, %p85
      %p88 = scmp.ne.s32.totalorder %s73, %s87
      %p89 = scmp.eq.s32.totalorder %s21, 0
      %p90 = por %p88, %p89
      %s92 = sadd.s32 %s91, 1
      %p95 = scmp.eq.s32.totalorder %s15, 3
      %p96 = scmp.ne.s32.totalorder %s91, %s93
      %p97 = scmp.eq.s32.totalorder %s15, 0
      %p98 = por %p96, %p97
      %p99 = scmp.ne.s32.totalorder %s91, %s93
      %p100 = scmp.eq.s32.totalorder %s20, 3
      %p101 = por %p99, %p100
      %p102 = scmp.ne.s32.totalorder %s93, %s94
      %p103 = scmp.eq.s32.totalorder %s20, 0
      %p104 = por %p102, %p103
      %p105 = scmp.ne.s32.totalorder %s93, %s94
      %p106 = scmp.eq.s32.totalorder %s21, 3
      %p107 = por %p105, %p106
      %p109 = scmp.ne.s32.totalorder %s94, %s108
      %p110 = scmp.eq.s32.totalorder %s21, 0
      %p111 = por %p109, %p110
      %s113 = sadd.s32 %s112, 1
      %p116 = scmp.eq.s32.totalorder %s15, 3
      %p117 = scmp.ne.s32.totalorder %s112, %s114
      %p118 = scmp.eq.s32.totalorder %s15, 0
      %p119 = por %p117, %p118
      %p120 = scmp.ne.s32.totalorder %s112, %s114
      %p121 = scmp.eq.s32.totalorder %s20, 3
      %p122 = por %p120, %p121
      %p123 = scmp.ne.s32.totalorder %s114, %s115
      %p124 = scmp.eq.s32.totalorder %s20, 0
      %p125 = por %p123, %p124
      %p126 = scmp.ne.s32.totalorder %s114, %s115
      %p127 = scmp.eq.s32.totalorder %s21, 3
      %p128 = por %p126, %p127
      %p130 = scmp.ne.s32.totalorder %s115, %s129
      %p131 = scmp.eq.s32.totalorder %s21, 0
      %p132 = por %p130, %p131
      %s134 = sadd.s32 %s133, 1
      %p137 = scmp.eq.s32.totalorder %s15, 3
      %p138 = scmp.ne.s32.totalorder %s133, %s135
      %p139 = scmp.eq.s32.totalorder %s15, 0
      %p140 = por %p138, %p139
      %p141 = scmp.ne.s32.totalorder %s133, %s135
      %p142 = scmp.eq.s32.totalorder %s20, 3
      %p143 = por %p141, %p142
      %p144 = scmp.ne.s32.totalorder %s135, %s136
      %p145 = scmp.eq.s32.totalorder %s20, 0
      %p146 = por %p144, %p145
      %p147 = scmp.ne.s32.totalorder %s135, %s136
      %p148 = scmp.eq.s32.totalorder %s21, 3
      %p149 = por %p147, %p148
      %p151 = scmp.ne.s32.totalorder %s136, %s150
      %p152 = scmp.eq.s32.totalorder %s21, 0
      %p153 = por %p151, %p152
      %s155 = sadd.s32 %s154, 1
      %p158 = scmp.eq.s32.totalorder %s15, 3
      %p159 = scmp.ne.s32.totalorder %s154, %s156
      %p160 = scmp.eq.s32.totalorder %s15, 0
      %p161 = por %p159, %p160
      %p162 = scmp.ne.s32.totalorder %s154, %s156
      %p163 = scmp.eq.s32.totalorder %s20, 3
      %p164 = por %p162, %p163
      %p165 = scmp.ne.s32.totalorder %s156, %s157
      %p166 = scmp.eq.s32.totalorder %s20, 0
      %p167 = por %p165, %p166
      %p168 = scmp.ne.s32.totalorder %s156, %s157
      %p169 = scmp.eq.s32.totalorder %s21, 3
      %p170 = por %p168, %p169
      %p172 = scmp.ne.s32.totalorder %s157, %s171
      %p173 = scmp.eq.s32.totalorder %s21, 0
      %p174 = por %p172, %p173
      %s176 = sadd.s32 %s175, 1
      %p179 = scmp.eq.s32.totalorder %s15, 3
      %p180 = scmp.ne.s32.totalorder %s175, %s177
      %p181 = scmp.eq.s32.totalorder %s15, 0
      %p182 = por %p180, %p181
      %p183 = scmp.ne.s32.totalorder %s175, %s177
      %p184 = scmp.eq.s32.totalorder %s20, 3
      %p185 = por %p183, %p184
      %p186 = scmp.ne.s32.totalorder %s177, %s178
      %p187 = scmp.eq.s32.totalorder %s20, 0
      %p188 = por %p186, %p187
      %p189 = scmp.ne.s32.totalorder %s177, %s178
      %p190 = scmp.eq.s32.totalorder %s21, 3
      %p191 = por %p189, %p190
      %p193 = scmp.ne.s32.totalorder %s178, %s192
      %p194 = scmp.eq.s32.totalorder %s21, 0
      %p195 = por %p193, %p194
      %s197 = sadd.s32 %s196, 1
      %p200 = scmp.eq.s32.totalorder %s15, 3
      %p201 = scmp.ne.s32.totalorder %s196, %s198
      %p202 = scmp.eq.s32.totalorder %s15, 0
      %p203 = por %p201, %p202
      %p204 = scmp.ne.s32.totalorder %s196, %s198
      %p205 = scmp.eq.s32.totalorder %s20, 3
      %p206 = por %p204, %p205
      %p207 = scmp.ne.s32.totalorder %s198, %s199
      %p208 = scmp.eq.s32.totalorder %s20, 0
      %p209 = por %p207, %p208
      %p210 = scmp.ne.s32.totalorder %s198, %s199
      %p211 = scmp.eq.s32.totalorder %s21, 3
      %p212 = por %p210, %p211
      %p214 = scmp.ne.s32.totalorder %s199, %s213
      %p215 = scmp.eq.s32.totalorder %s21, 0
      %p216 = por %p214, %p215
      %s217 = ssub.s32 %s15, %s22
      %p218 = scmp.eq.s32.totalorder %s217, 0
      %s220 = sadd.s32 %s219, 1
      %s221 = scalar_select %p218, %s219, %s220
      %p224 = pneg %p218
      %p225 = scmp.eq.s32.totalorder %s15, 3
      %p226 = por %p224, %p225
      %p227 = scmp.ne.s32.totalorder %s219, %s222
      %p228 = scmp.eq.s32.totalorder %s15, 0
      %p229 = por %p227, %p228
      %p230 = scmp.ne.s32.totalorder %s219, %s222
      %p231 = scmp.eq.s32.totalorder %s20, 3
      %p232 = por %p230, %p231
      %p233 = scmp.ne.s32.totalorder %s222, %s223
      %p234 = scmp.eq.s32.totalorder %s20, 0
      %p235 = por %p233, %p234
      %p236 = scmp.ne.s32.totalorder %s222, %s223
      %p237 = scmp.eq.s32.totalorder %s21, 3
      %p238 = por %p236, %p237
      %p240 = scmp.ne.s32.totalorder %s223, %s239
      %p241 = scmp.eq.s32.totalorder %s21, 0
      %p242 = por %p240, %p241
      %p243 = scmp.le.s32.totalorder 1, %s15
      %p244 = scmp.lt.s32.totalorder %s15, 5
      %p245 = pnand %p243, %p244
      %p246 = pneg %p245
      // Predicated region
      $region9: #{_lambda_.1} parent=5 // pred_check
        _
      $region10: #{_lambda_.1} parent=5 // pred_check_branch
        %248 = sbr.rel (%p245) target = $region12
      $region11: #{_lambda_.1} parent=5 // pred_region
        %s249 = ssub.s32 %s15, 1
        // Predicated region
        $region13: #{_lambda_.1} parent=11 // pred_check
          %p250 = pneg %p62
        $region14: #{_lambda_.1} parent=11 // pred_check_branch
          %252 = sbr.rel (%p250) target = $region16
        $region15: #{_lambda_.1} parent=11 // pred_region
          _
        $region16: #{_lambda_.1} parent=11 // pred_fallthru
          _
        // Predicated region
        $region17: #{_lambda_.1} parent=11 // pred_check
          %p253 = pneg %p83
        $region18: #{_lambda_.1} parent=11 // pred_check_branch
          %255 = sbr.rel (%p253) target = $region20
        $region19: #{_lambda_.1} parent=11 // pred_region
          _
        $region20: #{_lambda_.1} parent=11 // pred_fallthru
          _
        // Predicated region
        $region21: #{_lambda_.1} parent=11 // pred_check
          %p256 = pneg %p104
        $region22: #{_lambda_.1} parent=11 // pred_check_branch
          %258 = sbr.rel (%p256) target = $region24
        $region23: #{_lambda_.1} parent=11 // pred_region
          _
        $region24: #{_lambda_.1} parent=11 // pred_fallthru
          _
        // Predicated region
        $region25: #{_lambda_.1} parent=11 // pred_check
          %p259 = pneg %p125
        $region26: #{_lambda_.1} parent=11 // pred_check_branch
          %261 = sbr.rel (%p259) target = $region28
        $region27: #{_lambda_.1} parent=11 // pred_region
          _
        $region28: #{_lambda_.1} parent=11 // pred_fallthru
          _
        // Predicated region
        $region29: #{_lambda_.1} parent=11 // pred_check
          %p262 = pneg %p146
        $region30: #{_lambda_.1} parent=11 // pred_check_branch
          %264 = sbr.rel (%p262) target = $region32
        $region31: #{_lambda_.1} parent=11 // pred_region
          _
        $region32: #{_lambda_.1} parent=11 // pred_fallthru
          _
        // Predicated region
        $region33: #{_lambda_.1} parent=11 // pred_check
          %p265 = pneg %p167
        $region34: #{_lambda_.1} parent=11 // pred_check_branch
          %267 = sbr.rel (%p265) target = $region36
        $region35: #{_lambda_.1} parent=11 // pred_region
          _
        $region36: #{_lambda_.1} parent=11 // pred_fallthru
          _
        // Predicated region
        $region37: #{_lambda_.1} parent=11 // pred_check
          %p268 = pneg %p188
        $region38: #{_lambda_.1} parent=11 // pred_check_branch
          %270 = sbr.rel (%p268) target = $region40
        $region39: #{_lambda_.1} parent=11 // pred_region
          _
        $region40: #{_lambda_.1} parent=11 // pred_fallthru
          _
        // Predicated region
        $region41: #{_lambda_.1} parent=11 // pred_check
          %p271 = pneg %p209
        $region42: #{_lambda_.1} parent=11 // pred_check_branch
          %273 = sbr.rel (%p271) target = $region44
        $region43: #{_lambda_.1} parent=11 // pred_region
          _
        $region44: #{_lambda_.1} parent=11 // pred_fallthru
          _
      $region12: #{_lambda_.1} parent=5 // pred_fallthru
        _
      %p274 = scmp.lt.s32.totalorder %s15, 4
      // Predicated region
      $region45: #{_lambda_.1} parent=5 // pred_check
        %p275 = pneg %p274
      $region46: #{_lambda_.1} parent=5 // pred_check_branch
        %277 = sbr.rel (%p275) target = $region48
      $region47: #{_lambda_.1} parent=5 // pred_region
        // Predicated region
        $region49: #{_lambda_.1} parent=47 // pred_check
          %p278 = pneg %p35
        $region50: #{_lambda_.1} parent=47 // pred_check_branch
          %280 = sbr.rel (%p278) target = $region52
        $region51: #{_lambda_.1} parent=47 // pred_region
          %s281 = smul.u32 32, %s15
          %s282 = ssub.s32 125, %s281
          %p283 = scmp.lt.s32.totalorder %s282, 32
          %s284 = scalar_select %p283, %s282, 32
          %s285 = smul.u32 128, %s284
          %s286 = smul.u32 %s285, 7
          %p287 = scmp.lt.s32.totalorder %s281, 124
          %s288 = scalar_select %p287, %s281, 124
          %s289 = smul.addr %s288, 7
          %s290 = smul.addr %s289, 8
          %s291 = scalar_lea.vmem %s0, %s290
          %s292 = smul.u32 32, %s15
          %s293 = ssub.s32 125, %s292
          %p294 = scmp.lt.s32.totalorder %s293, 32
          %s295 = scalar_select %p294, %s293, 32
          %s296 = smul.u32 128, %s295
          %s297 = smul.u32 %s296, 7
        $region52: #{_lambda_.1} parent=47 // pred_fallthru
          _
      $region48: #{_lambda_.1} parent=5 // pred_fallthru
        _
      %p298 = scmp.le.s32.totalorder 1, %s15
      %p299 = scmp.lt.s32.totalorder %s15, 5
      %p300 = pnand %p298, %p299
      %p301 = pneg %p300
      // Predicated region
      $region53: #{_lambda_.1} parent=5 // pred_check
        _
      $region54: #{_lambda_.1} parent=5 // pred_check_branch
        %303 = sbr.rel (%p300) target = $region56
      $region55: #{_lambda_.1} parent=5 // pred_region
        %s304 = ssub.s32 %s15, 1
        %s305 = smul.u32 32, %s20
        %s306 = ssub.s32 125, %s305
        %p307 = scmp.lt.s32.totalorder %s306, 32
        %s308 = scalar_select %p307, %s306, 32
        %s309 = smul.u32 128, %s308
        %s310 = smul.u32 %s309, 7
        %p311 = scmp.lt.s32.totalorder %s305, 124
        %s312 = scalar_select %p311, %s305, 124
        %s313 = smul.addr %s312, 7
        %s314 = smul.addr %s313, 8
        %s315 = scalar_lea.vmem %s0, %s314
        %p316 = pneg %p41
        %p317 = pneg %p38
        %p318 = pneg %p62
        %p319 = pneg %p59
        %p320 = pneg %p83
        %p321 = pneg %p80
        %p322 = pneg %p104
        %p323 = pneg %p101
        %p324 = pneg %p125
        %p325 = pneg %p122
        %p326 = pneg %p146
        %p327 = pneg %p143
        %p328 = pneg %p167
        %p329 = pneg %p164
        %p330 = pneg %p188
        %p331 = pneg %p185
        %p332 = pneg %p209
        %p333 = pneg %p206
        %p334 = pneg %p235
        %p335 = pneg %p232
        %s336 = sand.u32 %s222, 1
        %s337 = sand.u32 %s222, 1
        %s338 = smul.addr %s337, 256
        %s339 = scalar_lea.vmem [#allocation2], %s338
        %s340 = smul.u32 32, %s20
        %s341 = ssub.s32 125, %s340
        %p342 = scmp.lt.s32.totalorder %s341, 32
        %s343 = scalar_select %p342, %s341, 32
        %s344 = smul.u32 128, %s343
        %s345 = smul.u32 %s344, 7
        %p346 = scmp.lt.s32.totalorder %s340, 124
        %s347 = scalar_select %p346, %s340, 124
        %s348 = smul.addr %s347, 7
        %s349 = smul.addr %s348, 8
        %s350 = scalar_lea.vmem %s0, %s349
        %s351 = smul.u32 32, %s20
        %s352 = ssub.s32 125, %s351
        %p353 = scmp.lt.s32.totalorder %s352, 32
        %s354 = scalar_select %p353, %s352, 32
        %s355 = smul.u32 128, %s354
        %s356 = smul.u32 %s355, 7
        %s357 = smul.u32 32, %s20
        %s358 = ssub.s32 125, %s357
        %p359 = scmp.lt.s32.totalorder %s358, 32
        %s360 = scalar_select %p359, %s358, 32
        %s361 = smul.u32 128, %s360
        %v363 = vld [vmem:[%s350] sm:$0xff]
        %v364 = vld [vmem:[%s350 + $0x8] sm:$0xff]
        %v365 = vld [vmem:[%s350 + $0x10] sm:$0xff]
        %v366 = vld [vmem:[%s350 + $0x18] sm:$0xff]
        %v367 = vld [vmem:[%s350 + $0x20] sm:$0xff]
        %v368 = vld [vmem:[%s350 + $0x28] sm:$0xff]
        %v369 = vld [vmem:[%s350 + $0x30] sm:$0xff]
        %v370 = vld [vmem:[%s350 + $0x38] sm:$0xff]
        %v371 = vld [vmem:[%s350 + $0x40] sm:$0xff]
        %v372 = vld [vmem:[%s350 + $0x48] sm:$0xff]
        %v373 = vld [vmem:[%s350 + $0x50] sm:$0xff]
        %v374 = vld [vmem:[%s350 + $0x58] sm:$0xff]
        %v375 = vld [vmem:[%s350 + $0x60] sm:$0xff]
        %v376 = vld [vmem:[%s350 + $0x68] sm:$0xff]
        %v377 = vld [vmem:[%s350 + $0x70] sm:$0xff]
        %v378 = vld [vmem:[%s350 + $0x78] sm:$0xff]
        %v379 = vld [vmem:[%s350 + $0x80] sm:$0xff]
        %v380 = vld [vmem:[%s350 + $0x88] sm:$0xff]
        %v381 = vld [vmem:[%s350 + $0x90] sm:$0xff]
        %v382 = vld [vmem:[%s350 + $0x98] sm:$0xff]
        %v383 = vld [vmem:[%s350 + $0xa0] sm:$0xff]
        %v384 = vld [vmem:[%s350 + $0xa8] sm:$0xff]
        %v385 = vld [vmem:[%s350 + $0xb0] sm:$0xff]
        %v386 = vld [vmem:[%s350 + $0xb8] sm:$0xff]
        %v387 = vld [vmem:[%s350 + $0xc0] sm:$0xff]
        %v388 = vld [vmem:[%s350 + $0xc8] sm:$0xff]
        %v389 = vld [vmem:[%s350 + $0xd0] sm:$0xff]
        %v390 = vld [vmem:[%s350 + $0xd8] sm:$0xff]
        %v391 = vld [vmem:[%s350 + $0xe0] sm:$0xff]
        %v392 = vld [vmem:[%s350 + $0xe8] sm:$0xff]
        %v393 = vld [vmem:[%s350 + $0xf0] sm:$0xff]
        %v394 = vld [vmem:[%s350 + $0xf8] sm:$0xff]
        %v395 = vld [vmem:[%s350 + $0x100] sm:$0xff]
        %v396 = vld [vmem:[%s350 + $0x108] sm:$0xff]
        %v397 = vld [vmem:[%s350 + $0x110] sm:$0xff]
        %v398 = vld [vmem:[%s350 + $0x118] sm:$0xff]
        %v399 = vld [vmem:[%s350 + $0x120] sm:$0xff]
        %v400 = vld [vmem:[%s350 + $0x128] sm:$0xff]
        %v401 = vld [vmem:[%s350 + $0x130] sm:$0xff]
        %v402 = vld [vmem:[%s350 + $0x138] sm:$0xff]
        %v403 = vld [vmem:[%s350 + $0x140] sm:$0xff]
        %v404 = vld [vmem:[%s350 + $0x148] sm:$0xff]
        %v405 = vld [vmem:[%s350 + $0x150] sm:$0xff]
        %v406 = vld [vmem:[%s350 + $0x158] sm:$0xff]
        %v407 = vld [vmem:[%s350 + $0x160] sm:$0xff]
        %v408 = vld [vmem:[%s350 + $0x168] sm:$0xff]
        %v409 = vld [vmem:[%s350 + $0x170] sm:$0xff]
        %v410 = vld [vmem:[%s350 + $0x178] sm:$0xff]
        %v411 = vld [vmem:[%s350 + $0x180] sm:$0xff]
        %v412 = vld [vmem:[%s350 + $0x188] sm:$0xff]
        %v413 = vld [vmem:[%s350 + $0x190] sm:$0xff]
        %v414 = vld [vmem:[%s350 + $0x198] sm:$0xff]
        %v415 = vld [vmem:[%s350 + $0x1a0] sm:$0xff]
        %v416 = vld [vmem:[%s350 + $0x1a8] sm:$0xff]
        %v417 = vld [vmem:[%s350 + $0x1b0] sm:$0xff]
        %v418 = vld [vmem:[%s350 + $0x1b8] sm:$0xff]
        %v419 = vld [vmem:[%s350 + $0x1c0] sm:$0xff]
        %v420 = vld [vmem:[%s350 + $0x1c8] sm:$0xff]
        %v421 = vld [vmem:[%s350 + $0x1d0] sm:$0xff]
        %v422 = vld [vmem:[%s350 + $0x1d8] sm:$0xff]
        %v423 = vld [vmem:[%s350 + $0x1e0] sm:$0xff]
        %v424 = vld [vmem:[%s350 + $0x1e8] sm:$0xff]
        %v425 = vld [vmem:[%s350 + $0x1f0] sm:$0xff]
        %v426 = vld [vmem:[%s350 + $0x1f8] sm:$0xff]
        %v427 = vld [vmem:[%s350 + $0x200] sm:$0xff]
        %v428 = vld [vmem:[%s350 + $0x208] sm:$0xff]
        %v429 = vld [vmem:[%s350 + $0x210] sm:$0xff]
        %v430 = vld [vmem:[%s350 + $0x218] sm:$0xff]
        %v431 = vld [vmem:[%s350 + $0x220] sm:$0xff]
        %v432 = vld [vmem:[%s350 + $0x228] sm:$0xff]
        %v433 = vld [vmem:[%s350 + $0x230] sm:$0xff]
        %v434 = vld [vmem:[%s350 + $0x238] sm:$0xff]
        %v435 = vld [vmem:[%s350 + $0x240] sm:$0xff]
        %v436 = vld [vmem:[%s350 + $0x248] sm:$0xff]
        %v437 = vld [vmem:[%s350 + $0x250] sm:$0xff]
        %v438 = vld [vmem:[%s350 + $0x258] sm:$0xff]
        %v439 = vld [vmem:[%s350 + $0x260] sm:$0xff]
        %v440 = vld [vmem:[%s350 + $0x268] sm:$0xff]
        %v441 = vld [vmem:[%s350 + $0x270] sm:$0xff]
        %v442 = vld [vmem:[%s350 + $0x278] sm:$0xff]
        %v443 = vld [vmem:[%s350 + $0x280] sm:$0xff]
        %v444 = vld [vmem:[%s350 + $0x288] sm:$0xff]
        %v445 = vld [vmem:[%s350 + $0x290] sm:$0xff]
        %v446 = vld [vmem:[%s350 + $0x298] sm:$0xff]
        %v447 = vld [vmem:[%s350 + $0x2a0] sm:$0xff]
        %v448 = vld [vmem:[%s350 + $0x2a8] sm:$0xff]
        %v449 = vld [vmem:[%s350 + $0x2b0] sm:$0xff]
        %v450 = vld [vmem:[%s350 + $0x2b8] sm:$0xff]
        %v451 = vld [vmem:[%s350 + $0x2c0] sm:$0xff]
        %v452 = vld [vmem:[%s350 + $0x2c8] sm:$0xff]
        %v453 = vld [vmem:[%s350 + $0x2d0] sm:$0xff]
        %v454 = vld [vmem:[%s350 + $0x2d8] sm:$0xff]
        %v455 = vld [vmem:[%s350 + $0x2e0] sm:$0xff]
        %v456 = vld [vmem:[%s350 + $0x2e8] sm:$0xff]
        %v457 = vld [vmem:[%s350 + $0x2f0] sm:$0xff]
        %v458 = vld [vmem:[%s350 + $0x2f8] sm:$0xff]
        %v459 = vld [vmem:[%s350 + $0x300] sm:$0xff]
        %v460 = vld [vmem:[%s350 + $0x308] sm:$0xff]
        %v461 = vld [vmem:[%s350 + $0x310] sm:$0xff]
        %v462 = vld [vmem:[%s350 + $0x318] sm:$0xff]
        %v463 = vld [vmem:[%s350 + $0x320] sm:$0xff]
        %v464 = vld [vmem:[%s350 + $0x328] sm:$0xff]
        %v465 = vld [vmem:[%s350 + $0x330] sm:$0xff]
        %v466 = vld [vmem:[%s350 + $0x338] sm:$0xff]
        %v467 = vld [vmem:[%s350 + $0x340] sm:$0xff]
        %v468 = vld [vmem:[%s350 + $0x348] sm:$0xff]
        %v469 = vld [vmem:[%s350 + $0x350] sm:$0xff]
        %v470 = vld [vmem:[%s350 + $0x358] sm:$0xff]
        %v471 = vld [vmem:[%s350 + $0x360] sm:$0xff]
        %v472 = vld [vmem:[%s350 + $0x368] sm:$0xff]
        %v473 = vld [vmem:[%s350 + $0x370] sm:$0xff]
        %v474 = vld [vmem:[%s350 + $0x378] sm:$0xff]
        %v475 = vld [vmem:[%s350 + $0x380] sm:$0xff]
        %v476 = vld [vmem:[%s350 + $0x388] sm:$0xff]
        %v477 = vld [vmem:[%s350 + $0x390] sm:$0xff]
        %v478 = vld [vmem:[%s350 + $0x398] sm:$0xff]
        %v479 = vld [vmem:[%s350 + $0x3a0] sm:$0xff]
        %v480 = vld [vmem:[%s350 + $0x3a8] sm:$0xff]
        %v481 = vld [vmem:[%s350 + $0x3b0] sm:$0xff]
        %v482 = vld [vmem:[%s350 + $0x3b8] sm:$0xff]
        %v483 = vld [vmem:[%s350 + $0x3c0] sm:$0xff]
        %v484 = vld [vmem:[%s350 + $0x3c8] sm:$0xff]
        %v485 = vld [vmem:[%s350 + $0x3d0] sm:$0xff]
        %v486 = vld [vmem:[%s350 + $0x3d8] sm:$0xff]
        %v487 = vld [vmem:[%s350 + $0x3e0] sm:$0xff]
        %v488 = vld [vmem:[%s350 + $0x3e8] sm:$0xff]
        %v489 = vld [vmem:[%s350 + $0x3f0] sm:$0xff]
        %v490 = vld [vmem:[%s350 + $0x3f8] sm:$0xff]
        %v491 = vld [vmem:[%s350 + $0x400] sm:$0xff]
        %v492 = vld [vmem:[%s350 + $0x408] sm:$0xff]
        %v493 = vld [vmem:[%s350 + $0x410] sm:$0xff]
        %v494 = vld [vmem:[%s350 + $0x418] sm:$0xff]
        %v495 = vld [vmem:[%s350 + $0x420] sm:$0xff]
        %v496 = vld [vmem:[%s350 + $0x428] sm:$0xff]
        %v497 = vld [vmem:[%s350 + $0x430] sm:$0xff]
        %v498 = vld [vmem:[%s350 + $0x438] sm:$0xff]
        %v499 = vld [vmem:[%s350 + $0x440] sm:$0xff]
        %v500 = vld [vmem:[%s350 + $0x448] sm:$0xff]
        %v501 = vld [vmem:[%s350 + $0x450] sm:$0xff]
        %v502 = vld [vmem:[%s350 + $0x458] sm:$0xff]
        %v503 = vld [vmem:[%s350 + $0x460] sm:$0xff]
        %v504 = vld [vmem:[%s350 + $0x468] sm:$0xff]
        %v505 = vld [vmem:[%s350 + $0x470] sm:$0xff]
        %v506 = vld [vmem:[%s350 + $0x478] sm:$0xff]
        %v507 = vld [vmem:[%s350 + $0x480] sm:$0xff]
        %v508 = vld [vmem:[%s350 + $0x488] sm:$0xff]
        %v509 = vld [vmem:[%s350 + $0x490] sm:$0xff]
        %v510 = vld [vmem:[%s350 + $0x498] sm:$0xff]
        %v511 = vld [vmem:[%s350 + $0x4a0] sm:$0xff]
        %v512 = vld [vmem:[%s350 + $0x4a8] sm:$0xff]
        %v513 = vld [vmem:[%s350 + $0x4b0] sm:$0xff]
        %v514 = vld [vmem:[%s350 + $0x4b8] sm:$0xff]
        %v515 = vld [vmem:[%s350 + $0x4c0] sm:$0xff]
        %v516 = vld [vmem:[%s350 + $0x4c8] sm:$0xff]
        %v517 = vld [vmem:[%s350 + $0x4d0] sm:$0xff]
        %v518 = vld [vmem:[%s350 + $0x4d8] sm:$0xff]
        %v519 = vld [vmem:[%s350 + $0x4e0] sm:$0xff]
        %v520 = vld [vmem:[%s350 + $0x4e8] sm:$0xff]
        %v521 = vld [vmem:[%s350 + $0x4f0] sm:$0xff]
        %v522 = vld [vmem:[%s350 + $0x4f8] sm:$0xff]
        %v523 = vld [vmem:[%s350 + $0x500] sm:$0xff]
        %v524 = vld [vmem:[%s350 + $0x508] sm:$0xff]
        %v525 = vld [vmem:[%s350 + $0x510] sm:$0xff]
        %v526 = vld [vmem:[%s350 + $0x518] sm:$0xff]
        %v527 = vld [vmem:[%s350 + $0x520] sm:$0xff]
        %v528 = vld [vmem:[%s350 + $0x528] sm:$0xff]
        %v529 = vld [vmem:[%s350 + $0x530] sm:$0xff]
        %v530 = vld [vmem:[%s350 + $0x538] sm:$0xff]
        %v531 = vld [vmem:[%s350 + $0x540] sm:$0xff]
        %v532 = vld [vmem:[%s350 + $0x548] sm:$0xff]
        %v533 = vld [vmem:[%s350 + $0x550] sm:$0xff]
        %v534 = vld [vmem:[%s350 + $0x558] sm:$0xff]
        %v535 = vld [vmem:[%s350 + $0x560] sm:$0xff]
        %v536 = vld [vmem:[%s350 + $0x568] sm:$0xff]
        %v537 = vld [vmem:[%s350 + $0x570] sm:$0xff]
        %v538 = vld [vmem:[%s350 + $0x578] sm:$0xff]
        %v539 = vld [vmem:[%s350 + $0x580] sm:$0xff]
        %v540 = vld [vmem:[%s350 + $0x588] sm:$0xff]
        %v541 = vld [vmem:[%s350 + $0x590] sm:$0xff]
        %v542 = vld [vmem:[%s350 + $0x598] sm:$0xff]
        %v543 = vld [vmem:[%s350 + $0x5a0] sm:$0xff]
        %v544 = vld [vmem:[%s350 + $0x5a8] sm:$0xff]
        %v545 = vld [vmem:[%s350 + $0x5b0] sm:$0xff]
        %v546 = vld [vmem:[%s350 + $0x5b8] sm:$0xff]
        %v547 = vld [vmem:[%s350 + $0x5c0] sm:$0xff]
        %v548 = vld [vmem:[%s350 + $0x5c8] sm:$0xff]
        %v549 = vld [vmem:[%s350 + $0x5d0] sm:$0xff]
        %v550 = vld [vmem:[%s350 + $0x5d8] sm:$0xff]
        %v551 = vld [vmem:[%s350 + $0x5e0] sm:$0xff]
        %v552 = vld [vmem:[%s350 + $0x5e8] sm:$0xff]
        %v553 = vld [vmem:[%s350 + $0x5f0] sm:$0xff]
        %v554 = vld [vmem:[%s350 + $0x5f8] sm:$0xff]
        %v555 = vld [vmem:[%s350 + $0x600] sm:$0xff]
        %v556 = vld [vmem:[%s350 + $0x608] sm:$0xff]
        %v557 = vld [vmem:[%s350 + $0x610] sm:$0xff]
        %v558 = vld [vmem:[%s350 + $0x618] sm:$0xff]
        %v559 = vld [vmem:[%s350 + $0x620] sm:$0xff]
        %v560 = vld [vmem:[%s350 + $0x628] sm:$0xff]
        %v561 = vld [vmem:[%s350 + $0x630] sm:$0xff]
        %v562 = vld [vmem:[%s350 + $0x638] sm:$0xff]
        %v563 = vld [vmem:[%s350 + $0x640] sm:$0xff]
        %v564 = vld [vmem:[%s350 + $0x648] sm:$0xff]
        %v565 = vld [vmem:[%s350 + $0x650] sm:$0xff]
        %v566 = vld [vmem:[%s350 + $0x658] sm:$0xff]
        %v567 = vld [vmem:[%s350 + $0x660] sm:$0xff]
        %v568 = vld [vmem:[%s350 + $0x668] sm:$0xff]
        %v569 = vld [vmem:[%s350 + $0x670] sm:$0xff]
        %v570 = vld [vmem:[%s350 + $0x678] sm:$0xff]
        %v571 = vld [vmem:[%s350 + $0x680] sm:$0xff]
        %v572 = vld [vmem:[%s350 + $0x688] sm:$0xff]
        %v573 = vld [vmem:[%s350 + $0x690] sm:$0xff]
        %v574 = vld [vmem:[%s350 + $0x698] sm:$0xff]
        %v575 = vld [vmem:[%s350 + $0x6a0] sm:$0xff]
        %v576 = vld [vmem:[%s350 + $0x6a8] sm:$0xff]
        %v577 = vld [vmem:[%s350 + $0x6b0] sm:$0xff]
        %v578 = vld [vmem:[%s350 + $0x6b8] sm:$0xff]
        %v579 = vld [vmem:[%s350 + $0x6c0] sm:$0xff]
        %v580 = vld [vmem:[%s350 + $0x6c8] sm:$0xff]
        %v581 = vld [vmem:[%s350 + $0x6d0] sm:$0xff]
        %v582 = vld [vmem:[%s350 + $0x6d8] sm:$0xff]
        %v583 = vld [vmem:[%s350 + $0x6e0] sm:$0xff]
        %v584 = vld [vmem:[%s350 + $0x6e8] sm:$0xff]
        %v585 = vld [vmem:[%s350 + $0x6f0] sm:$0xff]
        %v586 = vld [vmem:[%s350 + $0x6f8] sm:$0xff]
        %v587 = vpack.c.bf16 %v370, %v363
        %v588 = vpack.c.bf16 %v371, %v364
        %v589 = vpack.c.bf16 %v372, %v365
        %v590 = vpack.c.bf16 %v373, %v366
        %v591 = vpack.c.bf16 %v374, %v367
        %v592 = vpack.c.bf16 %v375, %v368
        %v593 = vpack.c.bf16 %v376, %v369
        %v594 = vpack.c.bf16 %v384, %v377
        %v595 = vpack.c.bf16 %v385, %v378
        %v596 = vpack.c.bf16 %v386, %v379
        %v597 = vpack.c.bf16 %v387, %v380
        %v598 = vpack.c.bf16 %v388, %v381
        %v599 = vpack.c.bf16 %v389, %v382
        %v600 = vpack.c.bf16 %v390, %v383
        %v601 = vpack.c.bf16 %v398, %v391
        %v602 = vpack.c.bf16 %v399, %v392
        %v603 = vpack.c.bf16 %v400, %v393
        %v604 = vpack.c.bf16 %v401, %v394
        %v605 = vpack.c.bf16 %v402, %v395
        %v606 = vpack.c.bf16 %v403, %v396
        %v607 = vpack.c.bf16 %v404, %v397
        %v608 = vpack.c.bf16 %v412, %v405
        %v609 = vpack.c.bf16 %v413, %v406
        %v610 = vpack.c.bf16 %v414, %v407
        %v611 = vpack.c.bf16 %v415, %v408
        %v612 = vpack.c.bf16 %v416, %v409
        %v613 = vpack.c.bf16 %v417, %v410
        %v614 = vpack.c.bf16 %v418, %v411
        %v615 = vpack.c.bf16 %v426, %v419
        %v616 = vpack.c.bf16 %v427, %v420
        %v617 = vpack.c.bf16 %v428, %v421
        %v618 = vpack.c.bf16 %v429, %v422
        %v619 = vpack.c.bf16 %v430, %v423
        %v620 = vpack.c.bf16 %v431, %v424
        %v621 = vpack.c.bf16 %v432, %v425
        %v622 = vpack.c.bf16 %v440, %v433
        %v623 = vpack.c.bf16 %v441, %v434
        %v624 = vpack.c.bf16 %v442, %v435
        %v625 = vpack.c.bf16 %v443, %v436
        %v626 = vpack.c.bf16 %v444, %v437
        %v627 = vpack.c.bf16 %v445, %v438
        %v628 = vpack.c.bf16 %v446, %v439
        %v629 = vpack.c.bf16 %v454, %v447
        %v630 = vpack.c.bf16 %v455, %v448
        %v631 = vpack.c.bf16 %v456, %v449
        %v632 = vpack.c.bf16 %v457, %v450
        %v633 = vpack.c.bf16 %v458, %v451
        %v634 = vpack.c.bf16 %v459, %v452
        %v635 = vpack.c.bf16 %v460, %v453
        %v636 = vpack.c.bf16 %v468, %v461
        %v637 = vpack.c.bf16 %v469, %v462
        %v638 = vpack.c.bf16 %v470, %v463
        %v639 = vpack.c.bf16 %v471, %v464
        %v640 = vpack.c.bf16 %v472, %v465
        %v641 = vpack.c.bf16 %v473, %v466
        %v642 = vpack.c.bf16 %v474, %v467
        %v643 = vpack.c.bf16 %v482, %v475
        %v644 = vpack.c.bf16 %v483, %v476
        %v645 = vpack.c.bf16 %v484, %v477
        %v646 = vpack.c.bf16 %v485, %v478
        %v647 = vpack.c.bf16 %v486, %v479
        %v648 = vpack.c.bf16 %v487, %v480
        %v649 = vpack.c.bf16 %v488, %v481
        %v650 = vpack.c.bf16 %v496, %v489
        %v651 = vpack.c.bf16 %v497, %v490
        %v652 = vpack.c.bf16 %v498, %v491
        %v653 = vpack.c.bf16 %v499, %v492
        %v654 = vpack.c.bf16 %v500, %v493
        %v655 = vpack.c.bf16 %v501, %v494
        %v656 = vpack.c.bf16 %v502, %v495
        %v657 = vpack.c.bf16 %v510, %v503
        %v658 = vpack.c.bf16 %v511, %v504
        %v659 = vpack.c.bf16 %v512, %v505
        %v660 = vpack.c.bf16 %v513, %v506
        %v661 = vpack.c.bf16 %v514, %v507
        %v662 = vpack.c.bf16 %v515, %v508
        %v663 = vpack.c.bf16 %v516, %v509
        %v664 = vpack.c.bf16 %v524, %v517
        %v665 = vpack.c.bf16 %v525, %v518
        %v666 = vpack.c.bf16 %v526, %v519
        %v667 = vpack.c.bf16 %v527, %v520
        %v668 = vpack.c.bf16 %v528, %v521
        %v669 = vpack.c.bf16 %v529, %v522
        %v670 = vpack.c.bf16 %v530, %v523
        %v671 = vpack.c.bf16 %v538, %v531
        %v672 = vpack.c.bf16 %v539, %v532
        %v673 = vpack.c.bf16 %v540, %v533
        %v674 = vpack.c.bf16 %v541, %v534
        %v675 = vpack.c.bf16 %v542, %v535
        %v676 = vpack.c.bf16 %v543, %v536
        %v677 = vpack.c.bf16 %v544, %v537
        %v678 = vpack.c.bf16 %v552, %v545
        %v679 = vpack.c.bf16 %v553, %v546
        %v680 = vpack.c.bf16 %v554, %v547
        %v681 = vpack.c.bf16 %v555, %v548
        %v682 = vpack.c.bf16 %v556, %v549
        %v683 = vpack.c.bf16 %v557, %v550
        %v684 = vpack.c.bf16 %v558, %v551
        %v685 = vpack.c.bf16 %v566, %v559
        %v686 = vpack.c.bf16 %v567, %v560
        %v687 = vpack.c.bf16 %v568, %v561
        %v688 = vpack.c.bf16 %v569, %v562
        %v689 = vpack.c.bf16 %v570, %v563
        %v690 = vpack.c.bf16 %v571, %v564
        %v691 = vpack.c.bf16 %v572, %v565
        %v692 = vpack.c.bf16 %v580, %v573
        %v693 = vpack.c.bf16 %v581, %v574
        %v694 = vpack.c.bf16 %v582, %v575
        %v695 = vpack.c.bf16 %v583, %v576
        %v696 = vpack.c.bf16 %v584, %v577
        %v697 = vpack.c.bf16 %v585, %v578
        %v698 = vpack.c.bf16 %v586, %v579
        %v699 = vld [vmem:[%s1] sm:$0xf]
        %v700 = vld [vmem:[%s1 + $0x4] sm:$0xf]
        %v701 = vld [vmem:[%s1 + $0x8] sm:$0xf]
        %v702 = vld [vmem:[%s1 + $0xc] sm:$0xf]
        %v703 = vld [vmem:[%s1 + $0x10] sm:$0xf]
        %v704 = vld [vmem:[%s1 + $0x14] sm:$0xf]
        %v705 = vld [vmem:[%s1 + $0x18] sm:$0xf]
        %v706 = vld [vmem:[%s1 + $0x1c] sm:$0xf]
        %v707 = vld [vmem:[%s1 + $0x20] sm:$0xf]
        %v708 = vld [vmem:[%s1 + $0x24] sm:$0xf]
        %v709 = vld [vmem:[%s1 + $0x28] sm:$0xf]
        %v710 = vld [vmem:[%s1 + $0x2c] sm:$0xf]
        %v711 = vld [vmem:[%s1 + $0x30] sm:$0xf]
        %v712 = vld [vmem:[%s1 + $0x34] sm:$0xf]
        %v713 = vld [vmem:[%s1 + $0x38] sm:$0xf]
        %v714 = vld [vmem:[%s1 + $0x3c] sm:$0xf]
        %v715 = vld [vmem:[%s1 + $0x40] sm:$0xf]
        %v716 = vld [vmem:[%s1 + $0x44] sm:$0xf]
        %v717 = vld [vmem:[%s1 + $0x48] sm:$0xf]
        %v718 = vld [vmem:[%s1 + $0x4c] sm:$0xf]
        %v719 = vld [vmem:[%s1 + $0x50] sm:$0xf]
        %v720 = vld [vmem:[%s1 + $0x54] sm:$0xf]
        %v721 = vld [vmem:[%s1 + $0x58] sm:$0xf]
        %v722 = vld [vmem:[%s1 + $0x5c] sm:$0xf]
        %v723 = vld [vmem:[%s1 + $0x60] sm:$0xf]
        %v724 = vld [vmem:[%s1 + $0x64] sm:$0xf]
        %v725 = vld [vmem:[%s1 + $0x68] sm:$0xf]
        %v726 = vld [vmem:[%s1 + $0x6c] sm:$0xf]
        %v727 = vld [vmem:[%s1 + $0x70] sm:$0xf]
        %v728 = vld [vmem:[%s1 + $0x74] sm:$0xf]
        %v729 = vld [vmem:[%s1 + $0x78] sm:$0xf]
        %v730 = vld [vmem:[%s1 + $0x7c] sm:$0xf]
        %v731 = vld [vmem:[%s1 + $0x80] sm:$0xf]
        %v732 = vld [vmem:[%s1 + $0x84] sm:$0xf]
        %v733 = vld [vmem:[%s1 + $0x88] sm:$0xf]
        %v734 = vld [vmem:[%s1 + $0x8c] sm:$0xf]
        %v735 = vld [vmem:[%s1 + $0x90] sm:$0xf]
        %v736 = vld [vmem:[%s1 + $0x94] sm:$0xf]
        %v737 = vld [vmem:[%s1 + $0x98] sm:$0xf]
        %v738 = vld [vmem:[%s1 + $0x9c] sm:$0xf]
        %v739 = vld [vmem:[%s1 + $0xa0] sm:$0xf]
        %v740 = vld [vmem:[%s1 + $0xa4] sm:$0xf]
        %v741 = vld [vmem:[%s1 + $0xa8] sm:$0xf]
        %v742 = vld [vmem:[%s1 + $0xac] sm:$0xf]
        %v743 = vld [vmem:[%s1 + $0xb0] sm:$0xf]
        %v744 = vld [vmem:[%s1 + $0xb4] sm:$0xf]
        %v745 = vld [vmem:[%s1 + $0xb8] sm:$0xf]
        %v746 = vld [vmem:[%s1 + $0xbc] sm:$0xf]
        %v747 = vld [vmem:[%s1 + $0xc0] sm:$0xf]
        %v748 = vld [vmem:[%s1 + $0xc4] sm:$0xf]
        %v749 = vld [vmem:[%s1 + $0xc8] sm:$0xf]
        %v750 = vld [vmem:[%s1 + $0xcc] sm:$0xf]
        %v751 = vld [vmem:[%s1 + $0xd0] sm:$0xf]
        %v752 = vld [vmem:[%s1 + $0xd4] sm:$0xf]
        %v753 = vld [vmem:[%s1 + $0xd8] sm:$0xf]
        %v754 = vld [vmem:[%s1 + $0xdc] sm:$0xf]
        %v755 = vld [vmem:[%s1 + $0xe0] sm:$0xf]
        %v756 = vld [vmem:[%s1 + $0xe4] sm:$0xf]
        %v757 = vld [vmem:[%s1 + $0xe8] sm:$0xf]
        %v758 = vld [vmem:[%s1 + $0xec] sm:$0xf]
        %v759 = vld [vmem:[%s1 + $0xf0] sm:$0xf]
        %v760 = vld [vmem:[%s1 + $0xf4] sm:$0xf]
        %v761 = vld [vmem:[%s1 + $0xf8] sm:$0xf]
        %v762 = vld [vmem:[%s1 + $0xfc] sm:$0xf]
        %v763 = vld [vmem:[%s1 + $0x100] sm:$0xf]
        %v764 = vld [vmem:[%s1 + $0x104] sm:$0xf]
        %v765 = vld [vmem:[%s1 + $0x108] sm:$0xf]
        %v766 = vld [vmem:[%s1 + $0x10c] sm:$0xf]
        %v767 = vld [vmem:[%s1 + $0x110] sm:$0xf]
        %v768 = vld [vmem:[%s1 + $0x114] sm:$0xf]
        %v769 = vld [vmem:[%s1 + $0x118] sm:$0xf]
        %v770 = vld [vmem:[%s1 + $0x11c] sm:$0xf]
        %v771 = vld [vmem:[%s1 + $0x120] sm:$0xf]
        %v772 = vld [vmem:[%s1 + $0x124] sm:$0xf]
        %v773 = vld [vmem:[%s1 + $0x128] sm:$0xf]
        %v774 = vld [vmem:[%s1 + $0x12c] sm:$0xf]
        %v775 = vld [vmem:[%s1 + $0x130] sm:$0xf]
        %v776 = vld [vmem:[%s1 + $0x134] sm:$0xf]
        %v777 = vld [vmem:[%s1 + $0x138] sm:$0xf]
        %v778 = vld [vmem:[%s1 + $0x13c] sm:$0xf]
        %v779 = vld [vmem:[%s1 + $0x140] sm:$0xf]
        %v780 = vld [vmem:[%s1 + $0x144] sm:$0xf]
        %v781 = vld [vmem:[%s1 + $0x148] sm:$0xf]
        %v782 = vld [vmem:[%s1 + $0x14c] sm:$0xf]
        %v783 = vld [vmem:[%s1 + $0x150] sm:$0xf]
        %v784 = vld [vmem:[%s1 + $0x154] sm:$0xf]
        %v785 = vld [vmem:[%s1 + $0x158] sm:$0xf]
        %v786 = vld [vmem:[%s1 + $0x15c] sm:$0xf]
        %v787 = vld [vmem:[%s1 + $0x160] sm:$0xf]
        %v788 = vld [vmem:[%s1 + $0x164] sm:$0xf]
        %v789 = vld [vmem:[%s1 + $0x168] sm:$0xf]
        %v790 = vld [vmem:[%s1 + $0x16c] sm:$0xf]
        %v791 = vld [vmem:[%s1 + $0x170] sm:$0xf]
        %v792 = vld [vmem:[%s1 + $0x174] sm:$0xf]
        %v793 = vld [vmem:[%s1 + $0x178] sm:$0xf]
        %v794 = vld [vmem:[%s1 + $0x17c] sm:$0xf]
        %v795 = vld [vmem:[%s1 + $0x180] sm:$0xf]
        %v796 = vld [vmem:[%s1 + $0x184] sm:$0xf]
        %v797 = vld [vmem:[%s2] sm:$0x1]
        %v799 = vlaneseq
        %v800 = vshrl.u32 %v799, 7
        %v801 = vsub.s32 0, %v800
        %v802 = vrot.slane %v797, %v801
        %v902 = vunpack.c.l.b16 %v699
        %v903 = vunpack.c.l.b16 %v700
        %v904 = vunpack.c.l.b16 %v701
        %v905 = vunpack.c.l.b16 %v702
        %v906 = vunpack.c.l.b16 %v703
        %v907 = vunpack.c.l.b16 %v704
        %v908 = vunpack.c.l.b16 %v705
        %v909 = vunpack.c.l.b16 %v706
        %v910 = vunpack.c.l.b16 %v707
        %v911 = vunpack.c.l.b16 %v708
        %v912 = vunpack.c.l.b16 %v709
        %v913 = vunpack.c.l.b16 %v710
        %v914 = vunpack.c.l.b16 %v711
        %v915 = vunpack.c.l.b16 %v712
        %v916 = vunpack.c.l.b16 %v713
        %v917 = vunpack.c.l.b16 %v714
        %v918 = vunpack.c.l.b16 %v715
        %v919 = vunpack.c.l.b16 %v716
        %v920 = vunpack.c.l.b16 %v717
        %v921 = vunpack.c.l.b16 %v718
        %v922 = vunpack.c.l.b16 %v719
        %v923 = vunpack.c.l.b16 %v720
        %v924 = vunpack.c.l.b16 %v721
        %v925 = vunpack.c.l.b16 %v722
        %v926 = vunpack.c.l.b16 %v723
        %v927 = vunpack.c.l.b16 %v724
        %v928 = vunpack.c.l.b16 %v725
        %v929 = vunpack.c.l.b16 %v726
        %v930 = vunpack.c.l.b16 %v727
        %v931 = vunpack.c.l.b16 %v728
        %v932 = vunpack.c.l.b16 %v729
        %v933 = vunpack.c.l.b16 %v730
        %v934 = vunpack.c.l.b16 %v731
        %v935 = vunpack.c.l.b16 %v732
        %v936 = vunpack.c.l.b16 %v733
        %v937 = vunpack.c.l.b16 %v734
        %v938 = vunpack.c.l.b16 %v735
        %v939 = vunpack.c.l.b16 %v736
        %v940 = vunpack.c.l.b16 %v737
        %v941 = vunpack.c.l.b16 %v738
        %v942 = vunpack.c.l.b16 %v739
        %v943 = vunpack.c.l.b16 %v740
        %v944 = vunpack.c.l.b16 %v741
        %v945 = vunpack.c.l.b16 %v742
        %v946 = vunpack.c.l.b16 %v743
        %v947 = vunpack.c.l.b16 %v744
        %v948 = vunpack.c.l.b16 %v745
        %v949 = vunpack.c.l.b16 %v746
        %v950 = vunpack.c.l.b16 %v747
        %v951 = vunpack.c.l.b16 %v748
        %v952 = vunpack.c.l.b16 %v749
        %v953 = vunpack.c.l.b16 %v750
        %v954 = vunpack.c.l.b16 %v751
        %v955 = vunpack.c.l.b16 %v752
        %v956 = vunpack.c.l.b16 %v753
        %v957 = vunpack.c.l.b16 %v754
        %v958 = vunpack.c.l.b16 %v755
        %v959 = vunpack.c.l.b16 %v756
        %v960 = vunpack.c.l.b16 %v757
        %v961 = vunpack.c.l.b16 %v758
        %v962 = vunpack.c.l.b16 %v759
        %v963 = vunpack.c.l.b16 %v760
        %v964 = vunpack.c.l.b16 %v761
        %v965 = vunpack.c.l.b16 %v762
        %v966 = vunpack.c.l.b16 %v763
        %v967 = vunpack.c.l.b16 %v764
        %v968 = vunpack.c.l.b16 %v765
        %v969 = vunpack.c.l.b16 %v766
        %v970 = vunpack.c.l.b16 %v767
        %v971 = vunpack.c.l.b16 %v768
        %v972 = vunpack.c.l.b16 %v769
        %v973 = vunpack.c.l.b16 %v770
        %v974 = vunpack.c.l.b16 %v771
        %v975 = vunpack.c.l.b16 %v772
        %v976 = vunpack.c.l.b16 %v773
        %v977 = vunpack.c.l.b16 %v774
        %v978 = vunpack.c.l.b16 %v775
        %v979 = vunpack.c.l.b16 %v776
        %v980 = vunpack.c.l.b16 %v777
        %v981 = vunpack.c.l.b16 %v778
        %v982 = vunpack.c.l.b16 %v779
        %v983 = vunpack.c.l.b16 %v780
        %v984 = vunpack.c.l.b16 %v781
        %v985 = vunpack.c.l.b16 %v782
        %v986 = vunpack.c.l.b16 %v783
        %v987 = vunpack.c.l.b16 %v784
        %v988 = vunpack.c.l.b16 %v785
        %v989 = vunpack.c.l.b16 %v786
        %v990 = vunpack.c.l.b16 %v787
        %v991 = vunpack.c.l.b16 %v788
        %v992 = vunpack.c.l.b16 %v789
        %v993 = vunpack.c.l.b16 %v790
        %v994 = vunpack.c.l.b16 %v791
        %v995 = vunpack.c.l.b16 %v792
        %v996 = vunpack.c.l.b16 %v793
        %v997 = vunpack.c.l.b16 %v794
        %v998 = vunpack.c.l.b16 %v795
        %v999 = vunpack.c.l.b16 %v796
        %v1000 = vpack.c.b16 %v903, %v902
        %v1001 = vpack.c.b16 %v905, %v904
        %v1002 = vpack.c.b16 %v907, %v906
        %v1003 = vpack.c.b16 %v909, %v908
        %v1004 = vpack.c.b16 %v911, %v910
        %v1005 = vpack.c.b16 %v913, %v912
        %v1006 = vpack.c.b16 %v915, %v914
        %v1007 = vpack.c.b16 %v917, %v916
        %v1008 = vpack.c.b16 %v919, %v918
        %v1009 = vpack.c.b16 %v921, %v920
        %v1010 = vpack.c.b16 %v923, %v922
        %v1011 = vpack.c.b16 %v925, %v924
        %v1012 = vpack.c.b16 %v927, %v926
        %v1013 = vpack.c.b16 %v929, %v928
        %v1014 = vpack.c.b16 %v931, %v930
        %v1015 = vpack.c.b16 %v933, %v932
        %v1016 = vpack.c.b16 %v935, %v934
        %v1017 = vpack.c.b16 %v937, %v936
        %v1018 = vpack.c.b16 %v939, %v938
        %v1019 = vpack.c.b16 %v941, %v940
        %v1020 = vpack.c.b16 %v943, %v942
        %v1021 = vpack.c.b16 %v945, %v944
        %v1022 = vpack.c.b16 %v947, %v946
        %v1023 = vpack.c.b16 %v949, %v948
        %v1024 = vpack.c.b16 %v951, %v950
        %v1025 = vpack.c.b16 %v953, %v952
        %v1026 = vpack.c.b16 %v955, %v954
        %v1027 = vpack.c.b16 %v957, %v956
        %v1028 = vpack.c.b16 %v959, %v958
        %v1029 = vpack.c.b16 %v961, %v960
        %v1030 = vpack.c.b16 %v963, %v962
        %v1031 = vpack.c.b16 %v965, %v964
        %v1032 = vpack.c.b16 %v967, %v966
        %v1033 = vpack.c.b16 %v969, %v968
        %v1034 = vpack.c.b16 %v971, %v970
        %v1035 = vpack.c.b16 %v973, %v972
        %v1036 = vpack.c.b16 %v975, %v974
        %v1037 = vpack.c.b16 %v977, %v976
        %v1038 = vpack.c.b16 %v979, %v978
        %v1039 = vpack.c.b16 %v981, %v980
        %v1040 = vpack.c.b16 %v983, %v982
        %v1041 = vpack.c.b16 %v985, %v984
        %v1042 = vpack.c.b16 %v987, %v986
        %v1043 = vpack.c.b16 %v989, %v988
        %v1044 = vpack.c.b16 %v991, %v990
        %v1045 = vpack.c.b16 %v993, %v992
        %v1046 = vpack.c.b16 %v995, %v994
        %v1047 = vpack.c.b16 %v997, %v996
        %v1048 = vpack.c.b16 %v999, %v998
        %vm1098 = vcmask 130048
        %v1100 = vsel %vm1098, %v593, 0
        %v1103 = vsel %vm1098, %v600, 0
        %v1106 = vsel %vm1098, %v607, 0
        %v1109 = vsel %vm1098, %v614, 0
        %v1112 = vsel %vm1098, %v621, 0
        %v1115 = vsel %vm1098, %v628, 0
        %v1118 = vsel %vm1098, %v635, 0
        %v1121 = vsel %vm1098, %v642, 0
        %v1124 = vsel %vm1098, %v649, 0
        %v1127 = vsel %vm1098, %v656, 0
        %v1130 = vsel %vm1098, %v663, 0
        %v1133 = vsel %vm1098, %v670, 0
        %v1136 = vsel %vm1098, %v677, 0
        %v1139 = vsel %vm1098, %v684, 0
        %v1142 = vsel %vm1098, %v691, 0
        %v1145 = vsel %vm1098, %v698, 0
        %1147 = vmatprep.subr.bf16.mxu0 0
        %1148 = vmatpush1.bf16.msra.mxu0 %v1007
        %1149 = vmatprep.subr.bf16.mxu0 0
        %1150 = vmatpush1.bf16.msra.mxu0 %v1006
        %1151 = vmatprep.subr.bf16.mxu0 0
        %1152 = vmatpush1.bf16.msra.mxu0 %v1005
        %1153 = vmatprep.subr.bf16.mxu0 0
        %1154 = vmatpush1.bf16.msra.mxu0 %v1004
        %1155 = vmatprep.subr.bf16.mxu0 0
        %1156 = vmatpush1.bf16.msra.mxu0 %v1003
        %1157 = vmatprep.subr.bf16.mxu0 0
        %1158 = vmatpush1.bf16.msra.mxu0 %v1002
        %1159 = vmatprep.subr.bf16.mxu0 0
        %1160 = vmatpush1.bf16.msra.mxu0 %v1001
        %1161 = vmatprep.subr.bf16.mxu0 0
        %1162 = vmatpush1.bf16.msra.mxu0 %v1000
        %1163 = vmatprep.subr.bf16.mxu0 0
        %1164 = vmatpush2.bf16.msra.mxu0 %v1015
        %1165 = vmatprep.subr.bf16.mxu0 0
        %1166 = vmatpush2.bf16.msra.mxu0 %v1014
        %1167 = vmatprep.subr.bf16.mxu0 0
        %1168 = vmatpush2.bf16.msra.mxu0 %v1013
        %1169 = vmatprep.subr.bf16.mxu0 0
        %1170 = vmatpush2.bf16.msra.mxu0 %v1012
        %1171 = vmatprep.subr.bf16.mxu0 0
        %1172 = vmatpush2.bf16.msra.mxu0 %v1011
        %1173 = vmatprep.subr.bf16.mxu0 0
        %1174 = vmatpush2.bf16.msra.mxu0 %v1010
        %1175 = vmatprep.subr.bf16.mxu0 0
        %1176 = vmatpush2.bf16.msra.mxu0 %v1009
        %1177 = vmatprep.subr.bf16.mxu0 0
        %1178 = vmatpush2.bf16.msra.mxu0 %v1008
        %1179 = vmatprep.mubr.bf16.mxu0 %v588
        %1180 = vmatmul.mubr.bf16.gmra.mxu0 %v587
        %v1181 = vpop.f32.mrf.mxu0
        %v1182 = vadd.f32 %v802, %v1181
        %v1183 = vpop.f32.mrf.mxu0
        %v1184 = vpop.f32.mrf.mxu0
        %v1185 = vadd.f32 %v802, %v1184
        %v1186 = vpop.f32.mrf.mxu0
        %1187 = vmatprep.mubr.bf16.mxu0 %v595
        %1188 = vmatmul.mubr.bf16.gmra.mxu0 %v594
        %v1189 = vpop.f32.mrf.mxu0
        %v1190 = vadd.f32 %v802, %v1189
        %v1191 = vpop.f32.mrf.mxu0
        %v1192 = vpop.f32.mrf.mxu0
        %v1193 = vadd.f32 %v802, %v1192
        %v1194 = vpop.f32.mrf.mxu0
        %1195 = vmatprep.mubr.bf16.mxu0 %v602
        %1196 = vmatmul.mubr.bf16.gmra.mxu0 %v601
        %v1197 = vpop.f32.mrf.mxu0
        %v1198 = vadd.f32 %v802, %v1197
        %v1199 = vpop.f32.mrf.mxu0
        %v1200 = vpop.f32.mrf.mxu0
        %v1201 = vadd.f32 %v802, %v1200
        %v1202 = vpop.f32.mrf.mxu0
        %1203 = vmatprep.mubr.bf16.mxu0 %v609
        %1204 = vmatmul.mubr.bf16.gmra.mxu0 %v608
        %v1205 = vpop.f32.mrf.mxu0
        %v1206 = vadd.f32 %v802, %v1205
        %v1207 = vpop.f32.mrf.mxu0
        %v1208 = vpop.f32.mrf.mxu0
        %v1209 = vadd.f32 %v802, %v1208
        %v1210 = vpop.f32.mrf.mxu0
        %1211 = vmatprep.mubr.bf16.mxu0 %v616
        %1212 = vmatmul.mubr.bf16.gmra.mxu0 %v615
        %v1213 = vpop.f32.mrf.mxu0
        %v1214 = vadd.f32 %v802, %v1213
        %v1215 = vpop.f32.mrf.mxu0
        %v1216 = vpop.f32.mrf.mxu0
        %v1217 = vadd.f32 %v802, %v1216
        %v1218 = vpop.f32.mrf.mxu0
        %1219 = vmatprep.mubr.bf16.mxu0 %v623
        %1220 = vmatmul.mubr.bf16.gmra.mxu0 %v622
        %v1221 = vpop.f32.mrf.mxu0
        %v1222 = vadd.f32 %v802, %v1221
        %v1223 = vpop.f32.mrf.mxu0
        %v1224 = vpop.f32.mrf.mxu0
        %v1225 = vadd.f32 %v802, %v1224
        %v1226 = vpop.f32.mrf.mxu0
        %1227 = vmatprep.mubr.bf16.mxu0 %v630
        %1228 = vmatmul.mubr.bf16.gmra.mxu0 %v629
        %v1229 = vpop.f32.mrf.mxu0
        %v1230 = vadd.f32 %v802, %v1229
        %v1231 = vpop.f32.mrf.mxu0
        %v1232 = vpop.f32.mrf.mxu0
        %v1233 = vadd.f32 %v802, %v1232
        %v1234 = vpop.f32.mrf.mxu0
        %1235 = vmatprep.mubr.bf16.mxu0 %v637
        %1236 = vmatmul.mubr.bf16.gmra.mxu0 %v636
        %v1237 = vpop.f32.mrf.mxu0
        %v1238 = vadd.f32 %v802, %v1237
        %v1239 = vpop.f32.mrf.mxu0
        %v1240 = vpop.f32.mrf.mxu0
        %v1241 = vadd.f32 %v802, %v1240
        %v1242 = vpop.f32.mrf.mxu0
        %1243 = vmatprep.mubr.bf16.mxu0 %v644
        %1244 = vmatmul.mubr.bf16.gmra.mxu0 %v643
        %v1245 = vpop.f32.mrf.mxu0
        %v1246 = vadd.f32 %v802, %v1245
        %v1247 = vpop.f32.mrf.mxu0
        %v1248 = vpop.f32.mrf.mxu0
        %v1249 = vadd.f32 %v802, %v1248
        %v1250 = vpop.f32.mrf.mxu0
        %1251 = vmatprep.mubr.bf16.mxu0 %v651
        %1252 = vmatmul.mubr.bf16.gmra.mxu0 %v650
        %v1253 = vpop.f32.mrf.mxu0
        %v1254 = vadd.f32 %v802, %v1253
        %v1255 = vpop.f32.mrf.mxu0
        %v1256 = vpop.f32.mrf.mxu0
        %v1257 = vadd.f32 %v802, %v1256
        %v1258 = vpop.f32.mrf.mxu0
        %1259 = vmatprep.mubr.bf16.mxu0 %v658
        %1260 = vmatmul.mubr.bf16.gmra.mxu0 %v657
        %v1261 = vpop.f32.mrf.mxu0
        %v1262 = vadd.f32 %v802, %v1261
        %v1263 = vpop.f32.mrf.mxu0
        %v1264 = vpop.f32.mrf.mxu0
        %v1265 = vadd.f32 %v802, %v1264
        %v1266 = vpop.f32.mrf.mxu0
        %1267 = vmatprep.mubr.bf16.mxu0 %v665
        %1268 = vmatmul.mubr.bf16.gmra.mxu0 %v664
        %v1269 = vpop.f32.mrf.mxu0
        %v1270 = vadd.f32 %v802, %v1269
        %v1271 = vpop.f32.mrf.mxu0
        %v1272 = vpop.f32.mrf.mxu0
        %v1273 = vadd.f32 %v802, %v1272
        %v1274 = vpop.f32.mrf.mxu0
        %1275 = vmatprep.mubr.bf16.mxu0 %v672
        %1276 = vmatmul.mubr.bf16.gmra.mxu0 %v671
        %v1277 = vpop.f32.mrf.mxu0
        %v1278 = vadd.f32 %v802, %v1277
        %v1279 = vpop.f32.mrf.mxu0
        %v1280 = vpop.f32.mrf.mxu0
        %v1281 = vadd.f32 %v802, %v1280
        %v1282 = vpop.f32.mrf.mxu0
        %1283 = vmatprep.mubr.bf16.mxu0 %v679
        %1284 = vmatmul.mubr.bf16.gmra.mxu0 %v678
        %v1285 = vpop.f32.mrf.mxu0
        %v1286 = vadd.f32 %v802, %v1285
        %v1287 = vpop.f32.mrf.mxu0
        %v1288 = vpop.f32.mrf.mxu0
        %v1289 = vadd.f32 %v802, %v1288
        %v1290 = vpop.f32.mrf.mxu0
        %1291 = vmatprep.mubr.bf16.mxu0 %v686
        %1292 = vmatmul.mubr.bf16.gmra.mxu0 %v685
        %v1293 = vpop.f32.mrf.mxu0
        %v1294 = vadd.f32 %v802, %v1293
        %v1295 = vpop.f32.mrf.mxu0
        %v1296 = vpop.f32.mrf.mxu0
        %v1297 = vadd.f32 %v802, %v1296
        %v1298 = vpop.f32.mrf.mxu0
        %1299 = vmatprep.mubr.bf16.mxu0 %v693
        %1300 = vmatmul.mubr.bf16.gmra.mxu0 %v692
        %v1301 = vpop.f32.mrf.mxu0
        %v1302 = vadd.f32 %v802, %v1301
        %v1303 = vpop.f32.mrf.mxu0
        %v1304 = vpop.f32.mrf.mxu0
        %v1305 = vadd.f32 %v802, %v1304
        %v1306 = vpop.f32.mrf.mxu0
        %1307 = vdwg.mxu0
        %1308 = vmatprep.subr.bf16.mxu0 0
        %1309 = vmatpush1.bf16.msra.mxu0 %v1023
        %1310 = vmatprep.subr.bf16.mxu0 0
        %1311 = vmatpush1.bf16.msra.mxu0 %v1022
        %1312 = vmatprep.subr.bf16.mxu0 0
        %1313 = vmatpush1.bf16.msra.mxu0 %v1021
        %1314 = vmatprep.subr.bf16.mxu0 0
        %1315 = vmatpush1.bf16.msra.mxu0 %v1020
        %1316 = vmatprep.subr.bf16.mxu0 0
        %1317 = vmatpush1.bf16.msra.mxu0 %v1019
        %1318 = vmatprep.subr.bf16.mxu0 0
        %1319 = vmatpush1.bf16.msra.mxu0 %v1018
        %1320 = vmatprep.subr.bf16.mxu0 0
        %1321 = vmatpush1.bf16.msra.mxu0 %v1017
        %1322 = vmatprep.subr.bf16.mxu0 0
        %1323 = vmatpush1.bf16.msra.mxu0 %v1016
        %1324 = vmatprep.subr.bf16.mxu0 0
        %1325 = vmatpush2.bf16.msra.mxu0 %v1031
        %1326 = vmatprep.subr.bf16.mxu0 0
        %1327 = vmatpush2.bf16.msra.mxu0 %v1030
        %1328 = vmatprep.subr.bf16.mxu0 0
        %1329 = vmatpush2.bf16.msra.mxu0 %v1029
        %1330 = vmatprep.subr.bf16.mxu0 0
        %1331 = vmatpush2.bf16.msra.mxu0 %v1028
        %1332 = vmatprep.subr.bf16.mxu0 0
        %1333 = vmatpush2.bf16.msra.mxu0 %v1027
        %1334 = vmatprep.subr.bf16.mxu0 0
        %1335 = vmatpush2.bf16.msra.mxu0 %v1026
        %1336 = vmatprep.subr.bf16.mxu0 0
        %1337 = vmatpush2.bf16.msra.mxu0 %v1025
        %1338 = vmatprep.subr.bf16.mxu0 0
        %1339 = vmatpush2.bf16.msra.mxu0 %v1024
        %1340 = vmatprep.mubr.bf16.mxu0 %v590
        %1341 = vmatmul.mubr.bf16.gmra.mxu0 %v589
        %v1342 = vpop.f32.mrf.mxu0
        %v1343 = vadd.f32 %v1182, %v1342
        %v1344 = vpop.f32.mrf.mxu0
        %v1345 = vpop.f32.mrf.mxu0
        %v1346 = vadd.f32 %v1185, %v1345
        %v1347 = vpop.f32.mrf.mxu0
        %1348 = vmatprep.mubr.bf16.mxu0 %v597
        %1349 = vmatmul.mubr.bf16.gmra.mxu0 %v596
        %v1350 = vpop.f32.mrf.mxu0
        %v1351 = vadd.f32 %v1190, %v1350
        %v1352 = vpop.f32.mrf.mxu0
        %v1353 = vpop.f32.mrf.mxu0
        %v1354 = vadd.f32 %v1193, %v1353
        %v1355 = vpop.f32.mrf.mxu0
        %1356 = vmatprep.mubr.bf16.mxu0 %v604
        %1357 = vmatmul.mubr.bf16.gmra.mxu0 %v603
        %v1358 = vpop.f32.mrf.mxu0
        %v1359 = vadd.f32 %v1198, %v1358
        %v1360 = vpop.f32.mrf.mxu0
        %v1361 = vpop.f32.mrf.mxu0
        %v1362 = vadd.f32 %v1201, %v1361
        %v1363 = vpop.f32.mrf.mxu0
        %1364 = vmatprep.mubr.bf16.mxu0 %v611
        %1365 = vmatmul.mubr.bf16.gmra.mxu0 %v610
        %v1366 = vpop.f32.mrf.mxu0
        %v1367 = vadd.f32 %v1206, %v1366
        %v1368 = vpop.f32.mrf.mxu0
        %v1369 = vpop.f32.mrf.mxu0
        %v1370 = vadd.f32 %v1209, %v1369
        %v1371 = vpop.f32.mrf.mxu0
        %1372 = vmatprep.mubr.bf16.mxu0 %v618
        %1373 = vmatmul.mubr.bf16.gmra.mxu0 %v617
        %v1374 = vpop.f32.mrf.mxu0
        %v1375 = vadd.f32 %v1214, %v1374
        %v1376 = vpop.f32.mrf.mxu0
        %v1377 = vpop.f32.mrf.mxu0
        %v1378 = vadd.f32 %v1217, %v1377
        %v1379 = vpop.f32.mrf.mxu0
        %1380 = vmatprep.mubr.bf16.mxu0 %v625
        %1381 = vmatmul.mubr.bf16.gmra.mxu0 %v624
        %v1382 = vpop.f32.mrf.mxu0
        %v1383 = vadd.f32 %v1222, %v1382
        %v1384 = vpop.f32.mrf.mxu0
        %v1385 = vpop.f32.mrf.mxu0
        %v1386 = vadd.f32 %v1225, %v1385
        %v1387 = vpop.f32.mrf.mxu0
        %1388 = vmatprep.mubr.bf16.mxu0 %v632
        %1389 = vmatmul.mubr.bf16.gmra.mxu0 %v631
        %v1390 = vpop.f32.mrf.mxu0
        %v1391 = vadd.f32 %v1230, %v1390
        %v1392 = vpop.f32.mrf.mxu0
        %v1393 = vpop.f32.mrf.mxu0
        %v1394 = vadd.f32 %v1233, %v1393
        %v1395 = vpop.f32.mrf.mxu0
        %1396 = vmatprep.mubr.bf16.mxu0 %v639
        %1397 = vmatmul.mubr.bf16.gmra.mxu0 %v638
        %v1398 = vpop.f32.mrf.mxu0
        %v1399 = vadd.f32 %v1238, %v1398
        %v1400 = vpop.f32.mrf.mxu0
        %v1401 = vpop.f32.mrf.mxu0
        %v1402 = vadd.f32 %v1241, %v1401
        %v1403 = vpop.f32.mrf.mxu0
        %1404 = vmatprep.mubr.bf16.mxu0 %v646
        %1405 = vmatmul.mubr.bf16.gmra.mxu0 %v645
        %v1406 = vpop.f32.mrf.mxu0
        %v1407 = vadd.f32 %v1246, %v1406
        %v1408 = vpop.f32.mrf.mxu0
        %v1409 = vpop.f32.mrf.mxu0
        %v1410 = vadd.f32 %v1249, %v1409
        %v1411 = vpop.f32.mrf.mxu0
        %1412 = vmatprep.mubr.bf16.mxu0 %v653
        %1413 = vmatmul.mubr.bf16.gmra.mxu0 %v652
        %v1414 = vpop.f32.mrf.mxu0
        %v1415 = vadd.f32 %v1254, %v1414
        %v1416 = vpop.f32.mrf.mxu0
        %v1417 = vpop.f32.mrf.mxu0
        %v1418 = vadd.f32 %v1257, %v1417
        %v1419 = vpop.f32.mrf.mxu0
        %1420 = vmatprep.mubr.bf16.mxu0 %v660
        %1421 = vmatmul.mubr.bf16.gmra.mxu0 %v659
        %v1422 = vpop.f32.mrf.mxu0
        %v1423 = vadd.f32 %v1262, %v1422
        %v1424 = vpop.f32.mrf.mxu0
        %v1425 = vpop.f32.mrf.mxu0
        %v1426 = vadd.f32 %v1265, %v1425
        %v1427 = vpop.f32.mrf.mxu0
        %1428 = vmatprep.mubr.bf16.mxu0 %v667
        %1429 = vmatmul.mubr.bf16.gmra.mxu0 %v666
        %v1430 = vpop.f32.mrf.mxu0
        %v1431 = vadd.f32 %v1270, %v1430
        %v1432 = vpop.f32.mrf.mxu0
        %v1433 = vpop.f32.mrf.mxu0
        %v1434 = vadd.f32 %v1273, %v1433
        %v1435 = vpop.f32.mrf.mxu0
        %1436 = vmatprep.mubr.bf16.mxu0 %v674
        %1437 = vmatmul.mubr.bf16.gmra.mxu0 %v673
        %v1438 = vpop.f32.mrf.mxu0
        %v1439 = vadd.f32 %v1278, %v1438
        %v1440 = vpop.f32.mrf.mxu0
        %v1441 = vpop.f32.mrf.mxu0
        %v1442 = vadd.f32 %v1281, %v1441
        %v1443 = vpop.f32.mrf.mxu0
        %1444 = vmatprep.mubr.bf16.mxu0 %v681
        %1445 = vmatmul.mubr.bf16.gmra.mxu0 %v680
        %v1446 = vpop.f32.mrf.mxu0
        %v1447 = vadd.f32 %v1286, %v1446
        %v1448 = vpop.f32.mrf.mxu0
        %v1449 = vpop.f32.mrf.mxu0
        %v1450 = vadd.f32 %v1289, %v1449
        %v1451 = vpop.f32.mrf.mxu0
        %1452 = vmatprep.mubr.bf16.mxu0 %v688
        %1453 = vmatmul.mubr.bf16.gmra.mxu0 %v687
        %v1454 = vpop.f32.mrf.mxu0
        %v1455 = vadd.f32 %v1294, %v1454
        %v1456 = vpop.f32.mrf.mxu0
        %v1457 = vpop.f32.mrf.mxu0
        %v1458 = vadd.f32 %v1297, %v1457
        %v1459 = vpop.f32.mrf.mxu0
        %1460 = vmatprep.mubr.bf16.mxu0 %v695
        %1461 = vmatmul.mubr.bf16.gmra.mxu0 %v694
        %v1462 = vpop.f32.mrf.mxu0
        %v1463 = vadd.f32 %v1302, %v1462
        %v1464 = vpop.f32.mrf.mxu0
        %v1465 = vpop.f32.mrf.mxu0
        %v1466 = vadd.f32 %v1305, %v1465
        %v1467 = vpop.f32.mrf.mxu0
        %1468 = vdwg.mxu0
        %1469 = vmatprep.subr.bf16.mxu0 0
        %1470 = vmatpush1.bf16.msra.mxu0 %v1039
        %1471 = vmatprep.subr.bf16.mxu0 0
        %1472 = vmatpush1.bf16.msra.mxu0 %v1038
        %1473 = vmatprep.subr.bf16.mxu0 0
        %1474 = vmatpush1.bf16.msra.mxu0 %v1037
        %1475 = vmatprep.subr.bf16.mxu0 0
        %1476 = vmatpush1.bf16.msra.mxu0 %v1036
        %1477 = vmatprep.subr.bf16.mxu0 0
        %1478 = vmatpush1.bf16.msra.mxu0 %v1035
        %1479 = vmatprep.subr.bf16.mxu0 0
        %1480 = vmatpush1.bf16.msra.mxu0 %v1034
        %1481 = vmatprep.subr.bf16.mxu0 0
        %1482 = vmatpush1.bf16.msra.mxu0 %v1033
        %1483 = vmatprep.subr.bf16.mxu0 0
        %1484 = vmatpush1.bf16.msra.mxu0 %v1032
        %1485 = vmatprep.subr.bf16.mxu0 0
        %1486 = vmatpush2.bf16.msra.mxu0 %v1047
        %1487 = vmatprep.subr.bf16.mxu0 0
        %1488 = vmatpush2.bf16.msra.mxu0 %v1046
        %1489 = vmatprep.subr.bf16.mxu0 0
        %1490 = vmatpush2.bf16.msra.mxu0 %v1045
        %1491 = vmatprep.subr.bf16.mxu0 0
        %1492 = vmatpush2.bf16.msra.mxu0 %v1044
        %1493 = vmatprep.subr.bf16.mxu0 0
        %1494 = vmatpush2.bf16.msra.mxu0 %v1043
        %1495 = vmatprep.subr.bf16.mxu0 0
        %1496 = vmatpush2.bf16.msra.mxu0 %v1042
        %1497 = vmatprep.subr.bf16.mxu0 0
        %1498 = vmatpush2.bf16.msra.mxu0 %v1041
        %1499 = vmatprep.subr.bf16.mxu0 0
        %1500 = vmatpush2.bf16.msra.mxu0 %v1040
        %1501 = vmatprep.mubr.bf16.mxu0 %v592
        %1502 = vmatmul.mubr.bf16.gmra.mxu0 %v591
        %v1503 = vpop.f32.mrf.mxu0
        %v1504 = vadd.f32 %v1343, %v1503
        %v1505 = vpop.f32.mrf.mxu0
        %v1506 = vpop.f32.mrf.mxu0
        %v1507 = vadd.f32 %v1346, %v1506
        %v1508 = vpop.f32.mrf.mxu0
        %1509 = vmatprep.mubr.bf16.mxu0 %v599
        %1510 = vmatmul.mubr.bf16.gmra.mxu0 %v598
        %v1511 = vpop.f32.mrf.mxu0
        %v1512 = vadd.f32 %v1351, %v1511
        %v1513 = vpop.f32.mrf.mxu0
        %v1514 = vpop.f32.mrf.mxu0
        %v1515 = vadd.f32 %v1354, %v1514
        %v1516 = vpop.f32.mrf.mxu0
        %1517 = vmatprep.mubr.bf16.mxu0 %v606
        %1518 = vmatmul.mubr.bf16.gmra.mxu0 %v605
        %v1519 = vpop.f32.mrf.mxu0
        %v1520 = vadd.f32 %v1359, %v1519
        %v1521 = vpop.f32.mrf.mxu0
        %v1522 = vpop.f32.mrf.mxu0
        %v1523 = vadd.f32 %v1362, %v1522
        %v1524 = vpop.f32.mrf.mxu0
        %1525 = vmatprep.mubr.bf16.mxu0 %v613
        %1526 = vmatmul.mubr.bf16.gmra.mxu0 %v612
        %v1527 = vpop.f32.mrf.mxu0
        %v1528 = vadd.f32 %v1367, %v1527
        %v1529 = vpop.f32.mrf.mxu0
        %v1530 = vpop.f32.mrf.mxu0
        %v1531 = vadd.f32 %v1370, %v1530
        %v1532 = vpop.f32.mrf.mxu0
        %1533 = vmatprep.mubr.bf16.mxu0 %v620
        %1534 = vmatmul.mubr.bf16.gmra.mxu0 %v619
        %v1535 = vpop.f32.mrf.mxu0
        %v1536 = vadd.f32 %v1375, %v1535
        %v1537 = vpop.f32.mrf.mxu0
        %v1538 = vpop.f32.mrf.mxu0
        %v1539 = vadd.f32 %v1378, %v1538
        %v1540 = vpop.f32.mrf.mxu0
        %1541 = vmatprep.mubr.bf16.mxu0 %v627
        %1542 = vmatmul.mubr.bf16.gmra.mxu0 %v626
        %v1543 = vpop.f32.mrf.mxu0
        %v1544 = vadd.f32 %v1383, %v1543
        %v1545 = vpop.f32.mrf.mxu0
        %v1546 = vpop.f32.mrf.mxu0
        %v1547 = vadd.f32 %v1386, %v1546
        %v1548 = vpop.f32.mrf.mxu0
        %1549 = vmatprep.mubr.bf16.mxu0 %v634
        %1550 = vmatmul.mubr.bf16.gmra.mxu0 %v633
        %v1551 = vpop.f32.mrf.mxu0
        %v1552 = vadd.f32 %v1391, %v1551
        %v1553 = vpop.f32.mrf.mxu0
        %v1554 = vpop.f32.mrf.mxu0
        %v1555 = vadd.f32 %v1394, %v1554
        %v1556 = vpop.f32.mrf.mxu0
        %1557 = vmatprep.mubr.bf16.mxu0 %v641
        %1558 = vmatmul.mubr.bf16.gmra.mxu0 %v640
        %v1559 = vpop.f32.mrf.mxu0
        %v1560 = vadd.f32 %v1399, %v1559
        %v1561 = vpop.f32.mrf.mxu0
        %v1562 = vpop.f32.mrf.mxu0
        %v1563 = vadd.f32 %v1402, %v1562
        %v1564 = vpop.f32.mrf.mxu0
        %1565 = vmatprep.mubr.bf16.mxu0 %v648
        %1566 = vmatmul.mubr.bf16.gmra.mxu0 %v647
        %v1567 = vpop.f32.mrf.mxu0
        %v1568 = vadd.f32 %v1407, %v1567
        %v1569 = vpop.f32.mrf.mxu0
        %v1570 = vpop.f32.mrf.mxu0
        %v1571 = vadd.f32 %v1410, %v1570
        %v1572 = vpop.f32.mrf.mxu0
        %1573 = vmatprep.mubr.bf16.mxu0 %v655
        %1574 = vmatmul.mubr.bf16.gmra.mxu0 %v654
        %v1575 = vpop.f32.mrf.mxu0
        %v1576 = vadd.f32 %v1415, %v1575
        %v1577 = vpop.f32.mrf.mxu0
        %v1578 = vpop.f32.mrf.mxu0
        %v1579 = vadd.f32 %v1418, %v1578
        %v1580 = vpop.f32.mrf.mxu0
        %1581 = vmatprep.mubr.bf16.mxu0 %v662
        %1582 = vmatmul.mubr.bf16.gmra.mxu0 %v661
        %v1583 = vpop.f32.mrf.mxu0
        %v1584 = vadd.f32 %v1423, %v1583
        %v1585 = vpop.f32.mrf.mxu0
        %v1586 = vpop.f32.mrf.mxu0
        %v1587 = vadd.f32 %v1426, %v1586
        %v1588 = vpop.f32.mrf.mxu0
        %1589 = vmatprep.mubr.bf16.mxu0 %v669
        %1590 = vmatmul.mubr.bf16.gmra.mxu0 %v668
        %v1591 = vpop.f32.mrf.mxu0
        %v1592 = vadd.f32 %v1431, %v1591
        %v1593 = vpop.f32.mrf.mxu0
        %v1594 = vpop.f32.mrf.mxu0
        %v1595 = vadd.f32 %v1434, %v1594
        %v1596 = vpop.f32.mrf.mxu0
        %1597 = vmatprep.mubr.bf16.mxu0 %v676
        %1598 = vmatmul.mubr.bf16.gmra.mxu0 %v675
        %v1599 = vpop.f32.mrf.mxu0
        %v1600 = vadd.f32 %v1439, %v1599
        %v1601 = vpop.f32.mrf.mxu0
        %v1602 = vpop.f32.mrf.mxu0
        %v1603 = vadd.f32 %v1442, %v1602
        %v1604 = vpop.f32.mrf.mxu0
        %1605 = vmatprep.mubr.bf16.mxu0 %v683
        %1606 = vmatmul.mubr.bf16.gmra.mxu0 %v682
        %v1607 = vpop.f32.mrf.mxu0
        %v1608 = vadd.f32 %v1447, %v1607
        %v1609 = vpop.f32.mrf.mxu0
        %v1610 = vpop.f32.mrf.mxu0
        %v1611 = vadd.f32 %v1450, %v1610
        %v1612 = vpop.f32.mrf.mxu0
        %1613 = vmatprep.mubr.bf16.mxu0 %v690
        %1614 = vmatmul.mubr.bf16.gmra.mxu0 %v689
        %v1615 = vpop.f32.mrf.mxu0
        %v1616 = vadd.f32 %v1455, %v1615
        %v1617 = vpop.f32.mrf.mxu0
        %v1618 = vpop.f32.mrf.mxu0
        %v1619 = vadd.f32 %v1458, %v1618
        %v1620 = vpop.f32.mrf.mxu0
        %1621 = vmatprep.mubr.bf16.mxu0 %v697
        %1622 = vmatmul.mubr.bf16.gmra.mxu0 %v696
        %v1623 = vpop.f32.mrf.mxu0
        %v1624 = vadd.f32 %v1463, %v1623
        %v1625 = vpop.f32.mrf.mxu0
        %v1626 = vpop.f32.mrf.mxu0
        %v1627 = vadd.f32 %v1466, %v1626
        %v1628 = vpop.f32.mrf.mxu0
        %1629 = vdwg.mxu0
        %1630 = vmatprep.subr.bf16.mxu0 0
        %1631 = vmatpush1.bf16.msra.mxu0 0
        %1632 = vmatprep.subr.bf16.mxu0 0
        %1633 = vmatpush1.bf16.msra.mxu0 0
        %1634 = vmatprep.subr.bf16.mxu0 0
        %1635 = vmatpush1.bf16.msra.mxu0 0
        %1636 = vmatprep.subr.bf16.mxu0 0
        %1637 = vmatpush1.bf16.msra.mxu0 0
        %1638 = vmatprep.subr.bf16.mxu0 0
        %1639 = vmatpush1.bf16.msra.mxu0 0
        %1640 = vmatprep.subr.bf16.mxu0 0
        %1641 = vmatpush1.bf16.msra.mxu0 0
        %1642 = vmatprep.subr.bf16.mxu0 0
        %1643 = vmatpush1.bf16.msra.mxu0 0
        %1644 = vmatprep.subr.bf16.mxu0 0
        %1645 = vmatpush1.bf16.msra.mxu0 %v1048
        %1646 = vmatprep.subr.bf16.mxu0 0
        %1647 = vmatpush2.bf16.msra.mxu0 0
        %1648 = vmatprep.subr.bf16.mxu0 0
        %1649 = vmatpush2.bf16.msra.mxu0 0
        %1650 = vmatprep.subr.bf16.mxu0 0
        %1651 = vmatpush2.bf16.msra.mxu0 0
        %1652 = vmatprep.subr.bf16.mxu0 0
        %1653 = vmatpush2.bf16.msra.mxu0 0
        %1654 = vmatprep.subr.bf16.mxu0 0
        %1655 = vmatpush2.bf16.msra.mxu0 0
        %1656 = vmatprep.subr.bf16.mxu0 0
        %1657 = vmatpush2.bf16.msra.mxu0 0
        %1658 = vmatprep.subr.bf16.mxu0 0
        %1659 = vmatpush2.bf16.msra.mxu0 0
        %1660 = vmatprep.subr.bf16.mxu0 0
        %1661 = vmatpush2.bf16.msra.mxu0 0
        %1662 = vmatprep.mubr.bf16.mxu0 0
        %1663 = vmatmul.mubr.bf16.gmra.mxu0 %v1100
        %v1664 = vpop.f32.mrf.mxu0
        %v1665 = vadd.f32 %v1504, %v1664
        %v1666 = vpop.f32.mrf.mxu0
        %v1667 = vpop.f32.mrf.mxu0
        %v1668 = vadd.f32 %v1507, %v1667
        %v1669 = vpop.f32.mrf.mxu0
        %1670 = vmatprep.mubr.bf16.mxu0 0
        %1671 = vmatmul.mubr.bf16.gmra.mxu0 %v1103
        %v1672 = vpop.f32.mrf.mxu0
        %v1673 = vadd.f32 %v1512, %v1672
        %v1674 = vpop.f32.mrf.mxu0
        %v1675 = vpop.f32.mrf.mxu0
        %v1676 = vadd.f32 %v1515, %v1675
        %v1677 = vpop.f32.mrf.mxu0
        %1678 = vmatprep.mubr.bf16.mxu0 0
        %1679 = vmatmul.mubr.bf16.gmra.mxu0 %v1106
        %v1680 = vpop.f32.mrf.mxu0
        %v1681 = vadd.f32 %v1520, %v1680
        %v1682 = vpop.f32.mrf.mxu0
        %v1683 = vpop.f32.mrf.mxu0
        %v1684 = vadd.f32 %v1523, %v1683
        %v1685 = vpop.f32.mrf.mxu0
        %1686 = vmatprep.mubr.bf16.mxu0 0
        %1687 = vmatmul.mubr.bf16.gmra.mxu0 %v1109
        %v1688 = vpop.f32.mrf.mxu0
        %v1689 = vadd.f32 %v1528, %v1688
        %v1690 = vpop.f32.mrf.mxu0
        %v1691 = vpop.f32.mrf.mxu0
        %v1692 = vadd.f32 %v1531, %v1691
        %v1693 = vpop.f32.mrf.mxu0
        %1694 = vmatprep.mubr.bf16.mxu0 0
        %1695 = vmatmul.mubr.bf16.gmra.mxu0 %v1112
        %v1696 = vpop.f32.mrf.mxu0
        %v1697 = vadd.f32 %v1536, %v1696
        %v1698 = vpop.f32.mrf.mxu0
        %v1699 = vpop.f32.mrf.mxu0
        %v1700 = vadd.f32 %v1539, %v1699
        %v1701 = vpop.f32.mrf.mxu0
        %1702 = vmatprep.mubr.bf16.mxu0 0
        %1703 = vmatmul.mubr.bf16.gmra.mxu0 %v1115
        %v1704 = vpop.f32.mrf.mxu0
        %v1705 = vadd.f32 %v1544, %v1704
        %v1706 = vpop.f32.mrf.mxu0
        %v1707 = vpop.f32.mrf.mxu0
        %v1708 = vadd.f32 %v1547, %v1707
        %v1709 = vpop.f32.mrf.mxu0
        %1710 = vmatprep.mubr.bf16.mxu0 0
        %1711 = vmatmul.mubr.bf16.gmra.mxu0 %v1118
        %v1712 = vpop.f32.mrf.mxu0
        %v1713 = vadd.f32 %v1552, %v1712
        %v1714 = vpop.f32.mrf.mxu0
        %v1715 = vpop.f32.mrf.mxu0
        %v1716 = vadd.f32 %v1555, %v1715
        %v1717 = vpop.f32.mrf.mxu0
        %1718 = vmatprep.mubr.bf16.mxu0 0
        %1719 = vmatmul.mubr.bf16.gmra.mxu0 %v1121
        %v1720 = vpop.f32.mrf.mxu0
        %v1721 = vadd.f32 %v1560, %v1720
        %v1722 = vpop.f32.mrf.mxu0
        %v1723 = vpop.f32.mrf.mxu0
        %v1724 = vadd.f32 %v1563, %v1723
        %v1725 = vpop.f32.mrf.mxu0
        %1726 = vmatprep.mubr.bf16.mxu0 0
        %1727 = vmatmul.mubr.bf16.gmra.mxu0 %v1124
        %v1728 = vpop.f32.mrf.mxu0
        %v1729 = vadd.f32 %v1568, %v1728
        %v1730 = vpop.f32.mrf.mxu0
        %v1731 = vpop.f32.mrf.mxu0
        %v1732 = vadd.f32 %v1571, %v1731
        %v1733 = vpop.f32.mrf.mxu0
        %1734 = vmatprep.mubr.bf16.mxu0 0
        %1735 = vmatmul.mubr.bf16.gmra.mxu0 %v1127
        %v1736 = vpop.f32.mrf.mxu0
        %v1737 = vadd.f32 %v1576, %v1736
        %v1738 = vpop.f32.mrf.mxu0
        %v1739 = vpop.f32.mrf.mxu0
        %v1740 = vadd.f32 %v1579, %v1739
        %v1741 = vpop.f32.mrf.mxu0
        %1742 = vmatprep.mubr.bf16.mxu0 0
        %1743 = vmatmul.mubr.bf16.gmra.mxu0 %v1130
        %v1744 = vpop.f32.mrf.mxu0
        %v1745 = vadd.f32 %v1584, %v1744
        %v1746 = vpop.f32.mrf.mxu0
        %v1747 = vpop.f32.mrf.mxu0
        %v1748 = vadd.f32 %v1587, %v1747
        %v1749 = vpop.f32.mrf.mxu0
        %1750 = vmatprep.mubr.bf16.mxu0 0
        %1751 = vmatmul.mubr.bf16.gmra.mxu0 %v1133
        %v1752 = vpop.f32.mrf.mxu0
        %v1753 = vadd.f32 %v1592, %v1752
        %v1754 = vpop.f32.mrf.mxu0
        %v1755 = vpop.f32.mrf.mxu0
        %v1756 = vadd.f32 %v1595, %v1755
        %v1757 = vpop.f32.mrf.mxu0
        %1758 = vmatprep.mubr.bf16.mxu0 0
        %1759 = vmatmul.mubr.bf16.gmra.mxu0 %v1136
        %v1760 = vpop.f32.mrf.mxu0
        %v1761 = vadd.f32 %v1600, %v1760
        %v1762 = vpop.f32.mrf.mxu0
        %v1763 = vpop.f32.mrf.mxu0
        %v1764 = vadd.f32 %v1603, %v1763
        %v1765 = vpop.f32.mrf.mxu0
        %1766 = vmatprep.mubr.bf16.mxu0 0
        %1767 = vmatmul.mubr.bf16.gmra.mxu0 %v1139
        %v1768 = vpop.f32.mrf.mxu0
        %v1769 = vadd.f32 %v1608, %v1768
        %v1770 = vpop.f32.mrf.mxu0
        %v1771 = vpop.f32.mrf.mxu0
        %v1772 = vadd.f32 %v1611, %v1771
        %v1773 = vpop.f32.mrf.mxu0
        %1774 = vmatprep.mubr.bf16.mxu0 0
        %1775 = vmatmul.mubr.bf16.gmra.mxu0 %v1142
        %v1776 = vpop.f32.mrf.mxu0
        %v1777 = vadd.f32 %v1616, %v1776
        %v1778 = vpop.f32.mrf.mxu0
        %v1779 = vpop.f32.mrf.mxu0
        %v1780 = vadd.f32 %v1619, %v1779
        %v1781 = vpop.f32.mrf.mxu0
        %1782 = vmatprep.mubr.bf16.mxu0 0
        %1783 = vmatmul.mubr.bf16.gmra.mxu0 %v1145
        %v1784 = vpop.f32.mrf.mxu0
        %v1785 = vadd.f32 %v1624, %v1784
        %v1786 = vpop.f32.mrf.mxu0
        %v1787 = vpop.f32.mrf.mxu0
        %v1788 = vadd.f32 %v1627, %v1787
        %v1789 = vpop.f32.mrf.mxu0
        %1790 = vdwg.mxu0
        %v1791 = vmax.f32 %v1665, 0.0
        %v1792 = vmax.f32 %v1668, 0.0
        %v1793 = vmax.f32 %v1673, 0.0
        %v1794 = vmax.f32 %v1676, 0.0
        %v1795 = vmax.f32 %v1681, 0.0
        %v1796 = vmax.f32 %v1684, 0.0
        %v1797 = vmax.f32 %v1689, 0.0
        %v1798 = vmax.f32 %v1692, 0.0
        %v1799 = vmax.f32 %v1697, 0.0
        %v1800 = vmax.f32 %v1700, 0.0
        %v1801 = vmax.f32 %v1705, 0.0
        %v1802 = vmax.f32 %v1708, 0.0
        %v1803 = vmax.f32 %v1713, 0.0
        %v1804 = vmax.f32 %v1716, 0.0
        %v1805 = vmax.f32 %v1721, 0.0
        %v1806 = vmax.f32 %v1724, 0.0
        %v1807 = vmax.f32 %v1729, 0.0
        %v1808 = vmax.f32 %v1732, 0.0
        %v1809 = vmax.f32 %v1737, 0.0
        %v1810 = vmax.f32 %v1740, 0.0
        %v1811 = vmax.f32 %v1745, 0.0
        %v1812 = vmax.f32 %v1748, 0.0
        %v1813 = vmax.f32 %v1753, 0.0
        %v1814 = vmax.f32 %v1756, 0.0
        %v1815 = vmax.f32 %v1761, 0.0
        %v1816 = vmax.f32 %v1764, 0.0
        %v1817 = vmax.f32 %v1769, 0.0
        %v1818 = vmax.f32 %v1772, 0.0
        %v1819 = vmax.f32 %v1777, 0.0
        %v1820 = vmax.f32 %v1780, 0.0
        %v1821 = vmax.f32 %v1785, 0.0
        %v1822 = vmax.f32 %v1788, 0.0
        %v1823 = vpack.c.bf16 %v1792, %v1791
        %v1824 = vpack.c.bf16 %v1794, %v1793
        %v1825 = vpack.c.bf16 %v1796, %v1795
        %v1826 = vpack.c.bf16 %v1798, %v1797
        %v1827 = vpack.c.bf16 %v1800, %v1799
        %v1828 = vpack.c.bf16 %v1802, %v1801
        %v1829 = vpack.c.bf16 %v1804, %v1803
        %v1830 = vpack.c.bf16 %v1806, %v1805
        %v1831 = vpack.c.bf16 %v1808, %v1807
        %v1832 = vpack.c.bf16 %v1810, %v1809
        %v1833 = vpack.c.bf16 %v1812, %v1811
        %v1834 = vpack.c.bf16 %v1814, %v1813
        %v1835 = vpack.c.bf16 %v1816, %v1815
        %v1836 = vpack.c.bf16 %v1818, %v1817
        %v1837 = vpack.c.bf16 %v1820, %v1819
        %v1838 = vpack.c.bf16 %v1822, %v1821
        %v1839 = vld [vmem:[%s3] sm:$0xf]
        %v1840 = vld [vmem:[%s3 + $0x4] sm:$0xf]
        %v1841 = vld [vmem:[%s3 + $0x8] sm:$0xf]
        %v1842 = vld [vmem:[%s3 + $0xc] sm:$0xf]
        %v1843 = vld [vmem:[%s3 + $0x10] sm:$0xf]
        %v1844 = vld [vmem:[%s3 + $0x14] sm:$0xf]
        %v1845 = vld [vmem:[%s3 + $0x18] sm:$0xf]
        %v1846 = vld [vmem:[%s3 + $0x1c] sm:$0xf]
        %v1847 = vld [vmem:[%s4] sm:$0x1]
        %v1849 = vlaneseq
        %v1850 = vshrl.u32 %v1849, 7
        %v1851 = vsub.s32 0, %v1850
        %v1852 = vrot.slane %v1847, %v1851
        %v1862 = vunpack.c.l.b16 %v1839
        %v1863 = vunpack.c.l.b16 %v1840
        %v1864 = vunpack.c.l.b16 %v1841
        %v1865 = vunpack.c.l.b16 %v1842
        %v1866 = vunpack.c.l.b16 %v1843
        %v1867 = vunpack.c.l.b16 %v1844
        %v1868 = vunpack.c.l.b16 %v1845
        %v1869 = vunpack.c.l.b16 %v1846
        %v1870 = vpack.c.b16 %v1863, %v1862
        %v1871 = vpack.c.b16 %v1865, %v1864
        %v1872 = vpack.c.b16 %v1867, %v1866
        %v1873 = vpack.c.b16 %v1869, %v1868
        %vm1878 = vcmask 523264
        %v1880 = vsel %vm1878, %v1823, 0
        %v1883 = vsel %vm1878, %v1824, 0
        %v1886 = vsel %vm1878, %v1825, 0
        %v1889 = vsel %vm1878, %v1826, 0
        %v1892 = vsel %vm1878, %v1827, 0
        %v1895 = vsel %vm1878, %v1828, 0
        %v1898 = vsel %vm1878, %v1829, 0
        %v1901 = vsel %vm1878, %v1830, 0
        %v1904 = vsel %vm1878, %v1831, 0
        %v1907 = vsel %vm1878, %v1832, 0
        %v1910 = vsel %vm1878, %v1833, 0
        %v1913 = vsel %vm1878, %v1834, 0
        %v1916 = vsel %vm1878, %v1835, 0
        %v1919 = vsel %vm1878, %v1836, 0
        %v1922 = vsel %vm1878, %v1837, 0
        %v1925 = vsel %vm1878, %v1838, 0
        %1927 = vmatprep.subr.bf16.mxu0 0
        %1928 = vmatpush1.bf16.msra.mxu0 0
        %1929 = vmatprep.subr.bf16.mxu0 0
        %1930 = vmatpush1.bf16.msra.mxu0 0
        %1931 = vmatprep.subr.bf16.mxu0 0
        %1932 = vmatpush1.bf16.msra.mxu0 0
        %1933 = vmatprep.subr.bf16.mxu0 0
        %1934 = vmatpush1.bf16.msra.mxu0 0
        %1935 = vmatprep.subr.bf16.mxu0 0
        %1936 = vmatpush1.bf16.msra.mxu0 %v1873
        %1937 = vmatprep.subr.bf16.mxu0 0
        %1938 = vmatpush1.bf16.msra.mxu0 %v1872
        %1939 = vmatprep.subr.bf16.mxu0 0
        %1940 = vmatpush1.bf16.msra.mxu0 %v1871
        %1941 = vmatprep.subr.bf16.mxu0 0
        %1942 = vmatpush1.bf16.msra.mxu0 %v1870
        %1943 = vmatprep.subr.bf16.mxu0 0
        %1944 = vmatpush2.bf16.msra.mxu0 0
        %1945 = vmatprep.subr.bf16.mxu0 0
        %1946 = vmatpush2.bf16.msra.mxu0 0
        %1947 = vmatprep.subr.bf16.mxu0 0
        %1948 = vmatpush2.bf16.msra.mxu0 0
        %1949 = vmatprep.subr.bf16.mxu0 0
        %1950 = vmatpush2.bf16.msra.mxu0 0
        %1951 = vmatprep.subr.bf16.mxu0 0
        %1952 = vmatpush2.bf16.msra.mxu0 0
        %1953 = vmatprep.subr.bf16.mxu0 0
        %1954 = vmatpush2.bf16.msra.mxu0 0
        %1955 = vmatprep.subr.bf16.mxu0 0
        %1956 = vmatpush2.bf16.msra.mxu0 0
        %1957 = vmatprep.subr.bf16.mxu0 0
        %1958 = vmatpush2.bf16.msra.mxu0 0
        %1959 = vmatprep.mubr.bf16.mxu0 0
        %1960 = vmatmul.mubr.bf16.gmra.mxu0 %v1880
        %v1961 = vpop.f32.mrf.mxu0
        %v1962 = vadd.f32 %v1852, %v1961
        %v1963 = vpop.f32.mrf.mxu0
        %v1964 = vpop.f32.mrf.mxu0
        %v1965 = vadd.f32 %v1852, %v1964
        %v1966 = vpop.f32.mrf.mxu0
        %1967 = vmatprep.mubr.bf16.mxu0 0
        %1968 = vmatmul.mubr.bf16.gmra.mxu0 %v1883
        %v1969 = vpop.f32.mrf.mxu0
        %v1970 = vadd.f32 %v1852, %v1969
        %v1971 = vpop.f32.mrf.mxu0
        %v1972 = vpop.f32.mrf.mxu0
        %v1973 = vadd.f32 %v1852, %v1972
        %v1974 = vpop.f32.mrf.mxu0
        %1975 = vmatprep.mubr.bf16.mxu0 0
        %1976 = vmatmul.mubr.bf16.gmra.mxu0 %v1886
        %v1977 = vpop.f32.mrf.mxu0
        %v1978 = vadd.f32 %v1852, %v1977
        %v1979 = vpop.f32.mrf.mxu0
        %v1980 = vpop.f32.mrf.mxu0
        %v1981 = vadd.f32 %v1852, %v1980
        %v1982 = vpop.f32.mrf.mxu0
        %1983 = vmatprep.mubr.bf16.mxu0 0
        %1984 = vmatmul.mubr.bf16.gmra.mxu0 %v1889
        %v1985 = vpop.f32.mrf.mxu0
        %v1986 = vadd.f32 %v1852, %v1985
        %v1987 = vpop.f32.mrf.mxu0
        %v1988 = vpop.f32.mrf.mxu0
        %v1989 = vadd.f32 %v1852, %v1988
        %v1990 = vpop.f32.mrf.mxu0
        %1991 = vmatprep.mubr.bf16.mxu0 0
        %1992 = vmatmul.mubr.bf16.gmra.mxu0 %v1892
        %v1993 = vpop.f32.mrf.mxu0
        %v1994 = vadd.f32 %v1852, %v1993
        %v1995 = vpop.f32.mrf.mxu0
        %v1996 = vpop.f32.mrf.mxu0
        %v1997 = vadd.f32 %v1852, %v1996
        %v1998 = vpop.f32.mrf.mxu0
        %1999 = vmatprep.mubr.bf16.mxu0 0
        %2000 = vmatmul.mubr.bf16.gmra.mxu0 %v1895
        %v2001 = vpop.f32.mrf.mxu0
        %v2002 = vadd.f32 %v1852, %v2001
        %v2003 = vpop.f32.mrf.mxu0
        %v2004 = vpop.f32.mrf.mxu0
        %v2005 = vadd.f32 %v1852, %v2004
        %v2006 = vpop.f32.mrf.mxu0
        %2007 = vmatprep.mubr.bf16.mxu0 0
        %2008 = vmatmul.mubr.bf16.gmra.mxu0 %v1898
        %v2009 = vpop.f32.mrf.mxu0
        %v2010 = vadd.f32 %v1852, %v2009
        %v2011 = vpop.f32.mrf.mxu0
        %v2012 = vpop.f32.mrf.mxu0
        %v2013 = vadd.f32 %v1852, %v2012
        %v2014 = vpop.f32.mrf.mxu0
        %2015 = vmatprep.mubr.bf16.mxu0 0
        %2016 = vmatmul.mubr.bf16.gmra.mxu0 %v1901
        %v2017 = vpop.f32.mrf.mxu0
        %v2018 = vadd.f32 %v1852, %v2017
        %v2019 = vpop.f32.mrf.mxu0
        %v2020 = vpop.f32.mrf.mxu0
        %v2021 = vadd.f32 %v1852, %v2020
        %v2022 = vpop.f32.mrf.mxu0
        %2023 = vmatprep.mubr.bf16.mxu0 0
        %2024 = vmatmul.mubr.bf16.gmra.mxu0 %v1904
        %v2025 = vpop.f32.mrf.mxu0
        %v2026 = vadd.f32 %v1852, %v2025
        %v2027 = vpop.f32.mrf.mxu0
        %v2028 = vpop.f32.mrf.mxu0
        %v2029 = vadd.f32 %v1852, %v2028
        %v2030 = vpop.f32.mrf.mxu0
        %2031 = vmatprep.mubr.bf16.mxu0 0
        %2032 = vmatmul.mubr.bf16.gmra.mxu0 %v1907
        %v2033 = vpop.f32.mrf.mxu0
        %v2034 = vadd.f32 %v1852, %v2033
        %v2035 = vpop.f32.mrf.mxu0
        %v2036 = vpop.f32.mrf.mxu0
        %v2037 = vadd.f32 %v1852, %v2036
        %v2038 = vpop.f32.mrf.mxu0
        %2039 = vmatprep.mubr.bf16.mxu0 0
        %2040 = vmatmul.mubr.bf16.gmra.mxu0 %v1910
        %v2041 = vpop.f32.mrf.mxu0
        %v2042 = vadd.f32 %v1852, %v2041
        %v2043 = vpop.f32.mrf.mxu0
        %v2044 = vpop.f32.mrf.mxu0
        %v2045 = vadd.f32 %v1852, %v2044
        %v2046 = vpop.f32.mrf.mxu0
        %2047 = vmatprep.mubr.bf16.mxu0 0
        %2048 = vmatmul.mubr.bf16.gmra.mxu0 %v1913
        %v2049 = vpop.f32.mrf.mxu0
        %v2050 = vadd.f32 %v1852, %v2049
        %v2051 = vpop.f32.mrf.mxu0
        %v2052 = vpop.f32.mrf.mxu0
        %v2053 = vadd.f32 %v1852, %v2052
        %v2054 = vpop.f32.mrf.mxu0
        %2055 = vmatprep.mubr.bf16.mxu0 0
        %2056 = vmatmul.mubr.bf16.gmra.mxu0 %v1916
        %v2057 = vpop.f32.mrf.mxu0
        %v2058 = vadd.f32 %v1852, %v2057
        %v2059 = vpop.f32.mrf.mxu0
        %v2060 = vpop.f32.mrf.mxu0
        %v2061 = vadd.f32 %v1852, %v2060
        %v2062 = vpop.f32.mrf.mxu0
        %2063 = vmatprep.mubr.bf16.mxu0 0
        %2064 = vmatmul.mubr.bf16.gmra.mxu0 %v1919
        %v2065 = vpop.f32.mrf.mxu0
        %v2066 = vadd.f32 %v1852, %v2065
        %v2067 = vpop.f32.mrf.mxu0
        %v2068 = vpop.f32.mrf.mxu0
        %v2069 = vadd.f32 %v1852, %v2068
        %v2070 = vpop.f32.mrf.mxu0
        %2071 = vmatprep.mubr.bf16.mxu0 0
        %2072 = vmatmul.mubr.bf16.gmra.mxu0 %v1922
        %v2073 = vpop.f32.mrf.mxu0
        %v2074 = vadd.f32 %v1852, %v2073
        %v2075 = vpop.f32.mrf.mxu0
        %v2076 = vpop.f32.mrf.mxu0
        %v2077 = vadd.f32 %v1852, %v2076
        %v2078 = vpop.f32.mrf.mxu0
        %2079 = vmatprep.mubr.bf16.mxu0 0
        %2080 = vmatmul.mubr.bf16.gmra.mxu0 %v1925
        %v2081 = vpop.f32.mrf.mxu0
        %v2082 = vadd.f32 %v1852, %v2081
        %v2083 = vpop.f32.mrf.mxu0
        %v2084 = vpop.f32.mrf.mxu0
        %v2085 = vadd.f32 %v1852, %v2084
        %v2086 = vpop.f32.mrf.mxu0
        %2087 = vdwg.mxu0
        %v2088 = vmax.f32 %v1962, 0.0
        %v2089 = vmax.f32 %v1965, 0.0
        %v2090 = vmax.f32 %v1970, 0.0
        %v2091 = vmax.f32 %v1973, 0.0
        %v2092 = vmax.f32 %v1978, 0.0
        %v2093 = vmax.f32 %v1981, 0.0
        %v2094 = vmax.f32 %v1986, 0.0
        %v2095 = vmax.f32 %v1989, 0.0
        %v2096 = vmax.f32 %v1994, 0.0
        %v2097 = vmax.f32 %v1997, 0.0
        %v2098 = vmax.f32 %v2002, 0.0
        %v2099 = vmax.f32 %v2005, 0.0
        %v2100 = vmax.f32 %v2010, 0.0
        %v2101 = vmax.f32 %v2013, 0.0
        %v2102 = vmax.f32 %v2018, 0.0
        %v2103 = vmax.f32 %v2021, 0.0
        %v2104 = vmax.f32 %v2026, 0.0
        %v2105 = vmax.f32 %v2029, 0.0
        %v2106 = vmax.f32 %v2034, 0.0
        %v2107 = vmax.f32 %v2037, 0.0
        %v2108 = vmax.f32 %v2042, 0.0
        %v2109 = vmax.f32 %v2045, 0.0
        %v2110 = vmax.f32 %v2050, 0.0
        %v2111 = vmax.f32 %v2053, 0.0
        %v2112 = vmax.f32 %v2058, 0.0
        %v2113 = vmax.f32 %v2061, 0.0
        %v2114 = vmax.f32 %v2066, 0.0
        %v2115 = vmax.f32 %v2069, 0.0
        %v2116 = vmax.f32 %v2074, 0.0
        %v2117 = vmax.f32 %v2077, 0.0
        %v2118 = vmax.f32 %v2082, 0.0
        %v2119 = vmax.f32 %v2085, 0.0
        %v2120 = vpack.c.bf16 %v2089, %v2088
        %v2121 = vpack.c.bf16 %v2091, %v2090
        %v2122 = vpack.c.bf16 %v2093, %v2092
        %v2123 = vpack.c.bf16 %v2095, %v2094
        %v2124 = vpack.c.bf16 %v2097, %v2096
        %v2125 = vpack.c.bf16 %v2099, %v2098
        %v2126 = vpack.c.bf16 %v2101, %v2100
        %v2127 = vpack.c.bf16 %v2103, %v2102
        %v2128 = vpack.c.bf16 %v2105, %v2104
        %v2129 = vpack.c.bf16 %v2107, %v2106
        %v2130 = vpack.c.bf16 %v2109, %v2108
        %v2131 = vpack.c.bf16 %v2111, %v2110
        %v2132 = vpack.c.bf16 %v2113, %v2112
        %v2133 = vpack.c.bf16 %v2115, %v2114
        %v2134 = vpack.c.bf16 %v2117, %v2116
        %v2135 = vpack.c.bf16 %v2119, %v2118
        %v2136 = vld [vmem:[%s5] sm:$0xf]
        %v2137 = vld [vmem:[%s5 + $0x4] sm:$0xf]
        %v2138 = vld [vmem:[%s5 + $0x8] sm:$0xf]
        %v2139 = vld [vmem:[%s5 + $0xc] sm:$0xf]
        %v2140 = vld [vmem:[%s5 + $0x10] sm:$0xf]
        %v2141 = vld [vmem:[%s5 + $0x14] sm:$0xf]
        %v2142 = vld [vmem:[%s5 + $0x18] sm:$0xf]
        %v2143 = vld [vmem:[%s5 + $0x1c] sm:$0xf]
        %v2144 = vld [vmem:[%s6] sm:$0x1]
        %v2146 = vlaneseq
        %v2147 = vshrl.u32 %v2146, 7
        %v2148 = vsub.s32 0, %v2147
        %v2149 = vrot.slane %v2144, %v2148
        %v2159 = vunpack.c.l.b16 %v2136
        %v2160 = vunpack.c.l.b16 %v2137
        %v2161 = vunpack.c.l.b16 %v2138
        %v2162 = vunpack.c.l.b16 %v2139
        %v2163 = vunpack.c.l.b16 %v2140
        %v2164 = vunpack.c.l.b16 %v2141
        %v2165 = vunpack.c.l.b16 %v2142
        %v2166 = vunpack.c.l.b16 %v2143
        %v2167 = vpack.c.b16 %v2160, %v2159
        %v2168 = vpack.c.b16 %v2162, %v2161
        %v2169 = vpack.c.b16 %v2164, %v2163
        %v2170 = vpack.c.b16 %v2166, %v2165
        %v2176 = vsel %vm1878, %v2120, 0
        %v2179 = vsel %vm1878, %v2121, 0
        %v2182 = vsel %vm1878, %v2122, 0
        %v2185 = vsel %vm1878, %v2123, 0
        %v2188 = vsel %vm1878, %v2124, 0
        %v2191 = vsel %vm1878, %v2125, 0
        %v2194 = vsel %vm1878, %v2126, 0
        %v2197 = vsel %vm1878, %v2127, 0
        %v2200 = vsel %vm1878, %v2128, 0
        %v2203 = vsel %vm1878, %v2129, 0
        %v2206 = vsel %vm1878, %v2130, 0
        %v2209 = vsel %vm1878, %v2131, 0
        %v2212 = vsel %vm1878, %v2132, 0
        %v2215 = vsel %vm1878, %v2133, 0
        %v2218 = vsel %vm1878, %v2134, 0
        %v2221 = vsel %vm1878, %v2135, 0
        %2223 = vmatprep.subr.bf16.mxu0 0
        %2224 = vmatpush1.bf16.msra.mxu0 0
        %2225 = vmatprep.subr.bf16.mxu0 0
        %2226 = vmatpush1.bf16.msra.mxu0 0
        %2227 = vmatprep.subr.bf16.mxu0 0
        %2228 = vmatpush1.bf16.msra.mxu0 0
        %2229 = vmatprep.subr.bf16.mxu0 0
        %2230 = vmatpush1.bf16.msra.mxu0 0
        %2231 = vmatprep.subr.bf16.mxu0 0
        %2232 = vmatpush1.bf16.msra.mxu0 %v2170
        %2233 = vmatprep.subr.bf16.mxu0 0
        %2234 = vmatpush1.bf16.msra.mxu0 %v2169
        %2235 = vmatprep.subr.bf16.mxu0 0
        %2236 = vmatpush1.bf16.msra.mxu0 %v2168
        %2237 = vmatprep.subr.bf16.mxu0 0
        %2238 = vmatpush1.bf16.msra.mxu0 %v2167
        %2239 = vmatprep.subr.bf16.mxu0 0
        %2240 = vmatpush2.bf16.msra.mxu0 0
        %2241 = vmatprep.subr.bf16.mxu0 0
        %2242 = vmatpush2.bf16.msra.mxu0 0
        %2243 = vmatprep.subr.bf16.mxu0 0
        %2244 = vmatpush2.bf16.msra.mxu0 0
        %2245 = vmatprep.subr.bf16.mxu0 0
        %2246 = vmatpush2.bf16.msra.mxu0 0
        %2247 = vmatprep.subr.bf16.mxu0 0
        %2248 = vmatpush2.bf16.msra.mxu0 0
        %2249 = vmatprep.subr.bf16.mxu0 0
        %2250 = vmatpush2.bf16.msra.mxu0 0
        %2251 = vmatprep.subr.bf16.mxu0 0
        %2252 = vmatpush2.bf16.msra.mxu0 0
        %2253 = vmatprep.subr.bf16.mxu0 0
        %2254 = vmatpush2.bf16.msra.mxu0 0
        %2255 = vmatprep.mubr.bf16.mxu0 0
        %2256 = vmatmul.mubr.bf16.gmra.mxu0 %v2176
        %v2257 = vpop.f32.mrf.mxu0
        %v2258 = vadd.f32 %v2149, %v2257
        %v2259 = vpop.f32.mrf.mxu0
        %v2260 = vpop.f32.mrf.mxu0
        %v2261 = vadd.f32 %v2149, %v2260
        %v2262 = vpop.f32.mrf.mxu0
        %2263 = vmatprep.mubr.bf16.mxu0 0
        %2264 = vmatmul.mubr.bf16.gmra.mxu0 %v2179
        %v2265 = vpop.f32.mrf.mxu0
        %v2266 = vadd.f32 %v2149, %v2265
        %v2267 = vpop.f32.mrf.mxu0
        %v2268 = vpop.f32.mrf.mxu0
        %v2269 = vadd.f32 %v2149, %v2268
        %v2270 = vpop.f32.mrf.mxu0
        %2271 = vmatprep.mubr.bf16.mxu0 0
        %2272 = vmatmul.mubr.bf16.gmra.mxu0 %v2182
        %v2273 = vpop.f32.mrf.mxu0
        %v2274 = vadd.f32 %v2149, %v2273
        %v2275 = vpop.f32.mrf.mxu0
        %v2276 = vpop.f32.mrf.mxu0
        %v2277 = vadd.f32 %v2149, %v2276
        %v2278 = vpop.f32.mrf.mxu0
        %2279 = vmatprep.mubr.bf16.mxu0 0
        %2280 = vmatmul.mubr.bf16.gmra.mxu0 %v2185
        %v2281 = vpop.f32.mrf.mxu0
        %v2282 = vadd.f32 %v2149, %v2281
        %v2283 = vpop.f32.mrf.mxu0
        %v2284 = vpop.f32.mrf.mxu0
        %v2285 = vadd.f32 %v2149, %v2284
        %v2286 = vpop.f32.mrf.mxu0
        %2287 = vmatprep.mubr.bf16.mxu0 0
        %2288 = vmatmul.mubr.bf16.gmra.mxu0 %v2188
        %v2289 = vpop.f32.mrf.mxu0
        %v2290 = vadd.f32 %v2149, %v2289
        %v2291 = vpop.f32.mrf.mxu0
        %v2292 = vpop.f32.mrf.mxu0
        %v2293 = vadd.f32 %v2149, %v2292
        %v2294 = vpop.f32.mrf.mxu0
        %2295 = vmatprep.mubr.bf16.mxu0 0
        %2296 = vmatmul.mubr.bf16.gmra.mxu0 %v2191
        %v2297 = vpop.f32.mrf.mxu0
        %v2298 = vadd.f32 %v2149, %v2297
        %v2299 = vpop.f32.mrf.mxu0
        %v2300 = vpop.f32.mrf.mxu0
        %v2301 = vadd.f32 %v2149, %v2300
        %v2302 = vpop.f32.mrf.mxu0
        %2303 = vmatprep.mubr.bf16.mxu0 0
        %2304 = vmatmul.mubr.bf16.gmra.mxu0 %v2194
        %v2305 = vpop.f32.mrf.mxu0
        %v2306 = vadd.f32 %v2149, %v2305
        %v2307 = vpop.f32.mrf.mxu0
        %v2308 = vpop.f32.mrf.mxu0
        %v2309 = vadd.f32 %v2149, %v2308
        %v2310 = vpop.f32.mrf.mxu0
        %2311 = vmatprep.mubr.bf16.mxu0 0
        %2312 = vmatmul.mubr.bf16.gmra.mxu0 %v2197
        %v2313 = vpop.f32.mrf.mxu0
        %v2314 = vadd.f32 %v2149, %v2313
        %v2315 = vpop.f32.mrf.mxu0
        %v2316 = vpop.f32.mrf.mxu0
        %v2317 = vadd.f32 %v2149, %v2316
        %v2318 = vpop.f32.mrf.mxu0
        %2319 = vmatprep.mubr.bf16.mxu0 0
        %2320 = vmatmul.mubr.bf16.gmra.mxu0 %v2200
        %v2321 = vpop.f32.mrf.mxu0
        %v2322 = vadd.f32 %v2149, %v2321
        %v2323 = vpop.f32.mrf.mxu0
        %v2324 = vpop.f32.mrf.mxu0
        %v2325 = vadd.f32 %v2149, %v2324
        %v2326 = vpop.f32.mrf.mxu0
        %2327 = vmatprep.mubr.bf16.mxu0 0
        %2328 = vmatmul.mubr.bf16.gmra.mxu0 %v2203
        %v2329 = vpop.f32.mrf.mxu0
        %v2330 = vadd.f32 %v2149, %v2329
        %v2331 = vpop.f32.mrf.mxu0
        %v2332 = vpop.f32.mrf.mxu0
        %v2333 = vadd.f32 %v2149, %v2332
        %v2334 = vpop.f32.mrf.mxu0
        %2335 = vmatprep.mubr.bf16.mxu0 0
        %2336 = vmatmul.mubr.bf16.gmra.mxu0 %v2206
        %v2337 = vpop.f32.mrf.mxu0
        %v2338 = vadd.f32 %v2149, %v2337
        %v2339 = vpop.f32.mrf.mxu0
        %v2340 = vpop.f32.mrf.mxu0
        %v2341 = vadd.f32 %v2149, %v2340
        %v2342 = vpop.f32.mrf.mxu0
        %2343 = vmatprep.mubr.bf16.mxu0 0
        %2344 = vmatmul.mubr.bf16.gmra.mxu0 %v2209
        %v2345 = vpop.f32.mrf.mxu0
        %v2346 = vadd.f32 %v2149, %v2345
        %v2347 = vpop.f32.mrf.mxu0
        %v2348 = vpop.f32.mrf.mxu0
        %v2349 = vadd.f32 %v2149, %v2348
        %v2350 = vpop.f32.mrf.mxu0
        %2351 = vmatprep.mubr.bf16.mxu0 0
        %2352 = vmatmul.mubr.bf16.gmra.mxu0 %v2212
        %v2353 = vpop.f32.mrf.mxu0
        %v2354 = vadd.f32 %v2149, %v2353
        %v2355 = vpop.f32.mrf.mxu0
        %v2356 = vpop.f32.mrf.mxu0
        %v2357 = vadd.f32 %v2149, %v2356
        %v2358 = vpop.f32.mrf.mxu0
        %2359 = vmatprep.mubr.bf16.mxu0 0
        %2360 = vmatmul.mubr.bf16.gmra.mxu0 %v2215
        %v2361 = vpop.f32.mrf.mxu0
        %v2362 = vadd.f32 %v2149, %v2361
        %v2363 = vpop.f32.mrf.mxu0
        %v2364 = vpop.f32.mrf.mxu0
        %v2365 = vadd.f32 %v2149, %v2364
        %v2366 = vpop.f32.mrf.mxu0
        %2367 = vmatprep.mubr.bf16.mxu0 0
        %2368 = vmatmul.mubr.bf16.gmra.mxu0 %v2218
        %v2369 = vpop.f32.mrf.mxu0
        %v2370 = vadd.f32 %v2149, %v2369
        %v2371 = vpop.f32.mrf.mxu0
        %v2372 = vpop.f32.mrf.mxu0
        %v2373 = vadd.f32 %v2149, %v2372
        %v2374 = vpop.f32.mrf.mxu0
        %2375 = vmatprep.mubr.bf16.mxu0 0
        %2376 = vmatmul.mubr.bf16.gmra.mxu0 %v2221
        %v2377 = vpop.f32.mrf.mxu0
        %v2378 = vadd.f32 %v2149, %v2377
        %v2379 = vpop.f32.mrf.mxu0
        %v2380 = vpop.f32.mrf.mxu0
        %v2381 = vadd.f32 %v2149, %v2380
        %v2382 = vpop.f32.mrf.mxu0
        %2383 = vdwg.mxu0
        %v2384 = vmax.f32 %v2258, 0.0
        %v2385 = vmax.f32 %v2261, 0.0
        %v2386 = vmax.f32 %v2266, 0.0
        %v2387 = vmax.f32 %v2269, 0.0
        %v2388 = vmax.f32 %v2274, 0.0
        %v2389 = vmax.f32 %v2277, 0.0
        %v2390 = vmax.f32 %v2282, 0.0
        %v2391 = vmax.f32 %v2285, 0.0
        %v2392 = vmax.f32 %v2290, 0.0
        %v2393 = vmax.f32 %v2293, 0.0
        %v2394 = vmax.f32 %v2298, 0.0
        %v2395 = vmax.f32 %v2301, 0.0
        %v2396 = vmax.f32 %v2306, 0.0
        %v2397 = vmax.f32 %v2309, 0.0
        %v2398 = vmax.f32 %v2314, 0.0
        %v2399 = vmax.f32 %v2317, 0.0
        %v2400 = vmax.f32 %v2322, 0.0
        %v2401 = vmax.f32 %v2325, 0.0
        %v2402 = vmax.f32 %v2330, 0.0
        %v2403 = vmax.f32 %v2333, 0.0
        %v2404 = vmax.f32 %v2338, 0.0
        %v2405 = vmax.f32 %v2341, 0.0
        %v2406 = vmax.f32 %v2346, 0.0
        %v2407 = vmax.f32 %v2349, 0.0
        %v2408 = vmax.f32 %v2354, 0.0
        %v2409 = vmax.f32 %v2357, 0.0
        %v2410 = vmax.f32 %v2362, 0.0
        %v2411 = vmax.f32 %v2365, 0.0
        %v2412 = vmax.f32 %v2370, 0.0
        %v2413 = vmax.f32 %v2373, 0.0
        %v2414 = vmax.f32 %v2378, 0.0
        %v2415 = vmax.f32 %v2381, 0.0
        %v2416 = vpack.c.bf16 %v2385, %v2384
        %v2417 = vpack.c.bf16 %v2387, %v2386
        %v2418 = vpack.c.bf16 %v2389, %v2388
        %v2419 = vpack.c.bf16 %v2391, %v2390
        %v2420 = vpack.c.bf16 %v2393, %v2392
        %v2421 = vpack.c.bf16 %v2395, %v2394
        %v2422 = vpack.c.bf16 %v2397, %v2396
        %v2423 = vpack.c.bf16 %v2399, %v2398
        %v2424 = vpack.c.bf16 %v2401, %v2400
        %v2425 = vpack.c.bf16 %v2403, %v2402
        %v2426 = vpack.c.bf16 %v2405, %v2404
        %v2427 = vpack.c.bf16 %v2407, %v2406
        %v2428 = vpack.c.bf16 %v2409, %v2408
        %v2429 = vpack.c.bf16 %v2411, %v2410
        %v2430 = vpack.c.bf16 %v2413, %v2412
        %v2431 = vpack.c.bf16 %v2415, %v2414
        %v2432 = vld [vmem:[%s7] sm:$0xf]
        %v2433 = vld [vmem:[%s7 + $0x4] sm:$0xf]
        %v2434 = vld [vmem:[%s7 + $0x8] sm:$0xf]
        %v2435 = vld [vmem:[%s7 + $0xc] sm:$0xf]
        %v2436 = vld [vmem:[%s7 + $0x10] sm:$0xf]
        %v2437 = vld [vmem:[%s7 + $0x14] sm:$0xf]
        %v2438 = vld [vmem:[%s7 + $0x18] sm:$0xf]
        %v2439 = vld [vmem:[%s7 + $0x1c] sm:$0xf]
        %v2440 = vld [vmem:[%s8] sm:$0x1]
        %v2442 = vlaneseq
        %v2443 = vshrl.u32 %v2442, 7
        %v2444 = vsub.s32 0, %v2443
        %v2445 = vrot.slane %v2440, %v2444
        %v2455 = vunpack.c.l.b16 %v2432
        %v2456 = vunpack.c.l.b16 %v2433
        %v2457 = vunpack.c.l.b16 %v2434
        %v2458 = vunpack.c.l.b16 %v2435
        %v2459 = vunpack.c.l.b16 %v2436
        %v2460 = vunpack.c.l.b16 %v2437
        %v2461 = vunpack.c.l.b16 %v2438
        %v2462 = vunpack.c.l.b16 %v2439
        %v2463 = vpack.c.b16 %v2456, %v2455
        %v2464 = vpack.c.b16 %v2458, %v2457
        %v2465 = vpack.c.b16 %v2460, %v2459
        %v2466 = vpack.c.b16 %v2462, %v2461
        %v2472 = vsel %vm1878, %v2416, 0
        %v2475 = vsel %vm1878, %v2417, 0
        %v2478 = vsel %vm1878, %v2418, 0
        %v2481 = vsel %vm1878, %v2419, 0
        %v2484 = vsel %vm1878, %v2420, 0
        %v2487 = vsel %vm1878, %v2421, 0
        %v2490 = vsel %vm1878, %v2422, 0
        %v2493 = vsel %vm1878, %v2423, 0
        %v2496 = vsel %vm1878, %v2424, 0
        %v2499 = vsel %vm1878, %v2425, 0
        %v2502 = vsel %vm1878, %v2426, 0
        %v2505 = vsel %vm1878, %v2427, 0
        %v2508 = vsel %vm1878, %v2428, 0
        %v2511 = vsel %vm1878, %v2429, 0
        %v2514 = vsel %vm1878, %v2430, 0
        %v2517 = vsel %vm1878, %v2431, 0
        %2519 = vmatprep.subr.bf16.mxu0 0
        %2520 = vmatpush1.bf16.msra.mxu0 0
        %2521 = vmatprep.subr.bf16.mxu0 0
        %2522 = vmatpush1.bf16.msra.mxu0 0
        %2523 = vmatprep.subr.bf16.mxu0 0
        %2524 = vmatpush1.bf16.msra.mxu0 0
        %2525 = vmatprep.subr.bf16.mxu0 0
        %2526 = vmatpush1.bf16.msra.mxu0 0
        %2527 = vmatprep.subr.bf16.mxu0 0
        %2528 = vmatpush1.bf16.msra.mxu0 %v2466
        %2529 = vmatprep.subr.bf16.mxu0 0
        %2530 = vmatpush1.bf16.msra.mxu0 %v2465
        %2531 = vmatprep.subr.bf16.mxu0 0
        %2532 = vmatpush1.bf16.msra.mxu0 %v2464
        %2533 = vmatprep.subr.bf16.mxu0 0
        %2534 = vmatpush1.bf16.msra.mxu0 %v2463
        %2535 = vmatprep.subr.bf16.mxu0 0
        %2536 = vmatpush2.bf16.msra.mxu0 0
        %2537 = vmatprep.subr.bf16.mxu0 0
        %2538 = vmatpush2.bf16.msra.mxu0 0
        %2539 = vmatprep.subr.bf16.mxu0 0
        %2540 = vmatpush2.bf16.msra.mxu0 0
        %2541 = vmatprep.subr.bf16.mxu0 0
        %2542 = vmatpush2.bf16.msra.mxu0 0
        %2543 = vmatprep.subr.bf16.mxu0 0
        %2544 = vmatpush2.bf16.msra.mxu0 0
        %2545 = vmatprep.subr.bf16.mxu0 0
        %2546 = vmatpush2.bf16.msra.mxu0 0
        %2547 = vmatprep.subr.bf16.mxu0 0
        %2548 = vmatpush2.bf16.msra.mxu0 0
        %2549 = vmatprep.subr.bf16.mxu0 0
        %2550 = vmatpush2.bf16.msra.mxu0 0
        %2551 = vmatprep.mubr.bf16.mxu0 0
        %2552 = vmatmul.mubr.bf16.gmra.mxu0 %v2472
        %v2553 = vpop.f32.mrf.mxu0
        %v2554 = vadd.f32 %v2445, %v2553
        %v2555 = vpop.f32.mrf.mxu0
        %v2556 = vpop.f32.mrf.mxu0
        %v2557 = vadd.f32 %v2445, %v2556
        %v2558 = vpop.f32.mrf.mxu0
        %2559 = vmatprep.mubr.bf16.mxu0 0
        %2560 = vmatmul.mubr.bf16.gmra.mxu0 %v2475
        %v2561 = vpop.f32.mrf.mxu0
        %v2562 = vadd.f32 %v2445, %v2561
        %v2563 = vpop.f32.mrf.mxu0
        %v2564 = vpop.f32.mrf.mxu0
        %v2565 = vadd.f32 %v2445, %v2564
        %v2566 = vpop.f32.mrf.mxu0
        %2567 = vmatprep.mubr.bf16.mxu0 0
        %2568 = vmatmul.mubr.bf16.gmra.mxu0 %v2478
        %v2569 = vpop.f32.mrf.mxu0
        %v2570 = vadd.f32 %v2445, %v2569
        %v2571 = vpop.f32.mrf.mxu0
        %v2572 = vpop.f32.mrf.mxu0
        %v2573 = vadd.f32 %v2445, %v2572
        %v2574 = vpop.f32.mrf.mxu0
        %2575 = vmatprep.mubr.bf16.mxu0 0
        %2576 = vmatmul.mubr.bf16.gmra.mxu0 %v2481
        %v2577 = vpop.f32.mrf.mxu0
        %v2578 = vadd.f32 %v2445, %v2577
        %v2579 = vpop.f32.mrf.mxu0
        %v2580 = vpop.f32.mrf.mxu0
        %v2581 = vadd.f32 %v2445, %v2580
        %v2582 = vpop.f32.mrf.mxu0
        %2583 = vmatprep.mubr.bf16.mxu0 0
        %2584 = vmatmul.mubr.bf16.gmra.mxu0 %v2484
        %v2585 = vpop.f32.mrf.mxu0
        %v2586 = vadd.f32 %v2445, %v2585
        %v2587 = vpop.f32.mrf.mxu0
        %v2588 = vpop.f32.mrf.mxu0
        %v2589 = vadd.f32 %v2445, %v2588
        %v2590 = vpop.f32.mrf.mxu0
        %2591 = vmatprep.mubr.bf16.mxu0 0
        %2592 = vmatmul.mubr.bf16.gmra.mxu0 %v2487
        %v2593 = vpop.f32.mrf.mxu0
        %v2594 = vadd.f32 %v2445, %v2593
        %v2595 = vpop.f32.mrf.mxu0
        %v2596 = vpop.f32.mrf.mxu0
        %v2597 = vadd.f32 %v2445, %v2596
        %v2598 = vpop.f32.mrf.mxu0
        %2599 = vmatprep.mubr.bf16.mxu0 0
        %2600 = vmatmul.mubr.bf16.gmra.mxu0 %v2490
        %v2601 = vpop.f32.mrf.mxu0
        %v2602 = vadd.f32 %v2445, %v2601
        %v2603 = vpop.f32.mrf.mxu0
        %v2604 = vpop.f32.mrf.mxu0
        %v2605 = vadd.f32 %v2445, %v2604
        %v2606 = vpop.f32.mrf.mxu0
        %2607 = vmatprep.mubr.bf16.mxu0 0
        %2608 = vmatmul.mubr.bf16.gmra.mxu0 %v2493
        %v2609 = vpop.f32.mrf.mxu0
        %v2610 = vadd.f32 %v2445, %v2609
        %v2611 = vpop.f32.mrf.mxu0
        %v2612 = vpop.f32.mrf.mxu0
        %v2613 = vadd.f32 %v2445, %v2612
        %v2614 = vpop.f32.mrf.mxu0
        %2615 = vmatprep.mubr.bf16.mxu0 0
        %2616 = vmatmul.mubr.bf16.gmra.mxu0 %v2496
        %v2617 = vpop.f32.mrf.mxu0
        %v2618 = vadd.f32 %v2445, %v2617
        %v2619 = vpop.f32.mrf.mxu0
        %v2620 = vpop.f32.mrf.mxu0
        %v2621 = vadd.f32 %v2445, %v2620
        %v2622 = vpop.f32.mrf.mxu0
        %2623 = vmatprep.mubr.bf16.mxu0 0
        %2624 = vmatmul.mubr.bf16.gmra.mxu0 %v2499
        %v2625 = vpop.f32.mrf.mxu0
        %v2626 = vadd.f32 %v2445, %v2625
        %v2627 = vpop.f32.mrf.mxu0
        %v2628 = vpop.f32.mrf.mxu0
        %v2629 = vadd.f32 %v2445, %v2628
        %v2630 = vpop.f32.mrf.mxu0
        %2631 = vmatprep.mubr.bf16.mxu0 0
        %2632 = vmatmul.mubr.bf16.gmra.mxu0 %v2502
        %v2633 = vpop.f32.mrf.mxu0
        %v2634 = vadd.f32 %v2445, %v2633
        %v2635 = vpop.f32.mrf.mxu0
        %v2636 = vpop.f32.mrf.mxu0
        %v2637 = vadd.f32 %v2445, %v2636
        %v2638 = vpop.f32.mrf.mxu0
        %2639 = vmatprep.mubr.bf16.mxu0 0
        %2640 = vmatmul.mubr.bf16.gmra.mxu0 %v2505
        %v2641 = vpop.f32.mrf.mxu0
        %v2642 = vadd.f32 %v2445, %v2641
        %v2643 = vpop.f32.mrf.mxu0
        %v2644 = vpop.f32.mrf.mxu0
        %v2645 = vadd.f32 %v2445, %v2644
        %v2646 = vpop.f32.mrf.mxu0
        %2647 = vmatprep.mubr.bf16.mxu0 0
        %2648 = vmatmul.mubr.bf16.gmra.mxu0 %v2508
        %v2649 = vpop.f32.mrf.mxu0
        %v2650 = vadd.f32 %v2445, %v2649
        %v2651 = vpop.f32.mrf.mxu0
        %v2652 = vpop.f32.mrf.mxu0
        %v2653 = vadd.f32 %v2445, %v2652
        %v2654 = vpop.f32.mrf.mxu0
        %2655 = vmatprep.mubr.bf16.mxu0 0
        %2656 = vmatmul.mubr.bf16.gmra.mxu0 %v2511
        %v2657 = vpop.f32.mrf.mxu0
        %v2658 = vadd.f32 %v2445, %v2657
        %v2659 = vpop.f32.mrf.mxu0
        %v2660 = vpop.f32.mrf.mxu0
        %v2661 = vadd.f32 %v2445, %v2660
        %v2662 = vpop.f32.mrf.mxu0
        %2663 = vmatprep.mubr.bf16.mxu0 0
        %2664 = vmatmul.mubr.bf16.gmra.mxu0 %v2514
        %v2665 = vpop.f32.mrf.mxu0
        %v2666 = vadd.f32 %v2445, %v2665
        %v2667 = vpop.f32.mrf.mxu0
        %v2668 = vpop.f32.mrf.mxu0
        %v2669 = vadd.f32 %v2445, %v2668
        %v2670 = vpop.f32.mrf.mxu0
        %2671 = vmatprep.mubr.bf16.mxu0 0
        %2672 = vmatmul.mubr.bf16.gmra.mxu0 %v2517
        %v2673 = vpop.f32.mrf.mxu0
        %v2674 = vadd.f32 %v2445, %v2673
        %v2675 = vpop.f32.mrf.mxu0
        %v2676 = vpop.f32.mrf.mxu0
        %v2677 = vadd.f32 %v2445, %v2676
        %v2678 = vpop.f32.mrf.mxu0
        %2679 = vdwg.mxu0
        %vm2680 = vcmask 80896
        %v2681 = vsel %vm2680, %v2554, -inf
        %2682 = vmax.xlane.f32.xlu0 %v2681
        %v2683 = vpop.xlane.xlu0 %2682
        %v2684 = vsel %vm2680, %v2557, -inf
        %2685 = vmax.xlane.f32.xlu0 %v2684
        %v2686 = vpop.xlane.xlu0 %2685
        %v2687 = vsel %vm2680, %v2562, -inf
        %2688 = vmax.xlane.f32.xlu0 %v2687
        %v2689 = vpop.xlane.xlu0 %2688
        %v2690 = vsel %vm2680, %v2565, -inf
        %2691 = vmax.xlane.f32.xlu0 %v2690
        %v2692 = vpop.xlane.xlu0 %2691
        %v2693 = vsel %vm2680, %v2570, -inf
        %2694 = vmax.xlane.f32.xlu0 %v2693
        %v2695 = vpop.xlane.xlu0 %2694
        %v2696 = vsel %vm2680, %v2573, -inf
        %2697 = vmax.xlane.f32.xlu0 %v2696
        %v2698 = vpop.xlane.xlu0 %2697
        %v2699 = vsel %vm2680, %v2578, -inf
        %2700 = vmax.xlane.f32.xlu0 %v2699
        %v2701 = vpop.xlane.xlu0 %2700
        %v2702 = vsel %vm2680, %v2581, -inf
        %2703 = vmax.xlane.f32.xlu0 %v2702
        %v2704 = vpop.xlane.xlu0 %2703
        %v2705 = vsel %vm2680, %v2586, -inf
        %2706 = vmax.xlane.f32.xlu0 %v2705
        %v2707 = vpop.xlane.xlu0 %2706
        %v2708 = vsel %vm2680, %v2589, -inf
        %2709 = vmax.xlane.f32.xlu0 %v2708
        %v2710 = vpop.xlane.xlu0 %2709
        %v2711 = vsel %vm2680, %v2594, -inf
        %2712 = vmax.xlane.f32.xlu0 %v2711
        %v2713 = vpop.xlane.xlu0 %2712
        %v2714 = vsel %vm2680, %v2597, -inf
        %2715 = vmax.xlane.f32.xlu0 %v2714
        %v2716 = vpop.xlane.xlu0 %2715
        %v2717 = vsel %vm2680, %v2602, -inf
        %2718 = vmax.xlane.f32.xlu0 %v2717
        %v2719 = vpop.xlane.xlu0 %2718
        %v2720 = vsel %vm2680, %v2605, -inf
        %2721 = vmax.xlane.f32.xlu0 %v2720
        %v2722 = vpop.xlane.xlu0 %2721
        %v2723 = vsel %vm2680, %v2610, -inf
        %2724 = vmax.xlane.f32.xlu0 %v2723
        %v2725 = vpop.xlane.xlu0 %2724
        %v2726 = vsel %vm2680, %v2613, -inf
        %2727 = vmax.xlane.f32.xlu0 %v2726
        %v2728 = vpop.xlane.xlu0 %2727
        %v2729 = vsel %vm2680, %v2618, -inf
        %2730 = vmax.xlane.f32.xlu0 %v2729
        %v2731 = vpop.xlane.xlu0 %2730
        %v2732 = vsel %vm2680, %v2621, -inf
        %2733 = vmax.xlane.f32.xlu0 %v2732
        %v2734 = vpop.xlane.xlu0 %2733
        %v2735 = vsel %vm2680, %v2626, -inf
        %2736 = vmax.xlane.f32.xlu0 %v2735
        %v2737 = vpop.xlane.xlu0 %2736
        %v2738 = vsel %vm2680, %v2629, -inf
        %2739 = vmax.xlane.f32.xlu0 %v2738
        %v2740 = vpop.xlane.xlu0 %2739
        %v2741 = vsel %vm2680, %v2634, -inf
        %2742 = vmax.xlane.f32.xlu0 %v2741
        %v2743 = vpop.xlane.xlu0 %2742
        %v2744 = vsel %vm2680, %v2637, -inf
        %2745 = vmax.xlane.f32.xlu0 %v2744
        %v2746 = vpop.xlane.xlu0 %2745
        %v2747 = vsel %vm2680, %v2642, -inf
        %2748 = vmax.xlane.f32.xlu0 %v2747
        %v2749 = vpop.xlane.xlu0 %2748
        %v2750 = vsel %vm2680, %v2645, -inf
        %2751 = vmax.xlane.f32.xlu0 %v2750
        %v2752 = vpop.xlane.xlu0 %2751
        %v2753 = vsel %vm2680, %v2650, -inf
        %2754 = vmax.xlane.f32.xlu0 %v2753
        %v2755 = vpop.xlane.xlu0 %2754
        %v2756 = vsel %vm2680, %v2653, -inf
        %2757 = vmax.xlane.f32.xlu0 %v2756
        %v2758 = vpop.xlane.xlu0 %2757
        %v2759 = vsel %vm2680, %v2658, -inf
        %2760 = vmax.xlane.f32.xlu0 %v2759
        %v2761 = vpop.xlane.xlu0 %2760
        %v2762 = vsel %vm2680, %v2661, -inf
        %2763 = vmax.xlane.f32.xlu0 %v2762
        %v2764 = vpop.xlane.xlu0 %2763
        %v2765 = vsel %vm2680, %v2666, -inf
        %2766 = vmax.xlane.f32.xlu0 %v2765
        %v2767 = vpop.xlane.xlu0 %2766
        %v2768 = vsel %vm2680, %v2669, -inf
        %2769 = vmax.xlane.f32.xlu0 %v2768
        %v2770 = vpop.xlane.xlu0 %2769
        %v2771 = vsel %vm2680, %v2674, -inf
        %2772 = vmax.xlane.f32.xlu0 %v2771
        %v2773 = vpop.xlane.xlu0 %2772
        %v2774 = vsel %vm2680, %v2677, -inf
        %2775 = vmax.xlane.f32.xlu0 %v2774
        %v2776 = vpop.xlane.xlu0 %2775
        %v2777 = vsub.f32 %v2554, %v2683
        %v2778 = vsub.f32 %v2557, %v2686
        %v2779 = vsub.f32 %v2562, %v2689
        %v2780 = vsub.f32 %v2565, %v2692
        %v2781 = vsub.f32 %v2570, %v2695
        %v2782 = vsub.f32 %v2573, %v2698
        %v2783 = vsub.f32 %v2578, %v2701
        %v2784 = vsub.f32 %v2581, %v2704
        %v2785 = vsub.f32 %v2586, %v2707
        %v2786 = vsub.f32 %v2589, %v2710
        %v2787 = vsub.f32 %v2594, %v2713
        %v2788 = vsub.f32 %v2597, %v2716
        %v2789 = vsub.f32 %v2602, %v2719
        %v2790 = vsub.f32 %v2605, %v2722
        %v2791 = vsub.f32 %v2610, %v2725
        %v2792 = vsub.f32 %v2613, %v2728
        %v2793 = vsub.f32 %v2618, %v2731
        %v2794 = vsub.f32 %v2621, %v2734
        %v2795 = vsub.f32 %v2626, %v2737
        %v2796 = vsub.f32 %v2629, %v2740
        %v2797 = vsub.f32 %v2634, %v2743
        %v2798 = vsub.f32 %v2637, %v2746
        %v2799 = vsub.f32 %v2642, %v2749
        %v2800 = vsub.f32 %v2645, %v2752
        %v2801 = vsub.f32 %v2650, %v2755
        %v2802 = vsub.f32 %v2653, %v2758
        %v2803 = vsub.f32 %v2658, %v2761
        %v2804 = vsub.f32 %v2661, %v2764
        %v2805 = vsub.f32 %v2666, %v2767
        %v2806 = vsub.f32 %v2669, %v2770
        %v2807 = vsub.f32 %v2674, %v2773
        %v2808 = vsub.f32 %v2677, %v2776
        %v2809 = vmul.f32 %v2777, 1.442695
        %v2810 = vpow.pop %v2809
        %v2811 = vmul.f32 %v2778, 1.442695
        %v2812 = vpow.pop %v2811
        %v2813 = vmul.f32 %v2779, 1.442695
        %v2814 = vpow.pop %v2813
        %v2815 = vmul.f32 %v2780, 1.442695
        %v2816 = vpow.pop %v2815
        %v2817 = vmul.f32 %v2781, 1.442695
        %v2818 = vpow.pop %v2817
        %v2819 = vmul.f32 %v2782, 1.442695
        %v2820 = vpow.pop %v2819
        %v2821 = vmul.f32 %v2783, 1.442695
        %v2822 = vpow.pop %v2821
        %v2823 = vmul.f32 %v2784, 1.442695
        %v2824 = vpow.pop %v2823
        %v2825 = vmul.f32 %v2785, 1.442695
        %v2826 = vpow.pop %v2825
        %v2827 = vmul.f32 %v2786, 1.442695
        %v2828 = vpow.pop %v2827
        %v2829 = vmul.f32 %v2787, 1.442695
        %v2830 = vpow.pop %v2829
        %v2831 = vmul.f32 %v2788, 1.442695
        %v2832 = vpow.pop %v2831
        %v2833 = vmul.f32 %v2789, 1.442695
        %v2834 = vpow.pop %v2833
        %v2835 = vmul.f32 %v2790, 1.442695
        %v2836 = vpow.pop %v2835
        %v2837 = vmul.f32 %v2791, 1.442695
        %v2838 = vpow.pop %v2837
        %v2839 = vmul.f32 %v2792, 1.442695
        %v2840 = vpow.pop %v2839
        %v2841 = vmul.f32 %v2793, 1.442695
        %v2842 = vpow.pop %v2841
        %v2843 = vmul.f32 %v2794, 1.442695
        %v2844 = vpow.pop %v2843
        %v2845 = vmul.f32 %v2795, 1.442695
        %v2846 = vpow.pop %v2845
        %v2847 = vmul.f32 %v2796, 1.442695
        %v2848 = vpow.pop %v2847
        %v2849 = vmul.f32 %v2797, 1.442695
        %v2850 = vpow.pop %v2849
        %v2851 = vmul.f32 %v2798, 1.442695
        %v2852 = vpow.pop %v2851
        %v2853 = vmul.f32 %v2799, 1.442695
        %v2854 = vpow.pop %v2853
        %v2855 = vmul.f32 %v2800, 1.442695
        %v2856 = vpow.pop %v2855
        %v2857 = vmul.f32 %v2801, 1.442695
        %v2858 = vpow.pop %v2857
        %v2859 = vmul.f32 %v2802, 1.442695
        %v2860 = vpow.pop %v2859
        %v2861 = vmul.f32 %v2803, 1.442695
        %v2862 = vpow.pop %v2861
        %v2863 = vmul.f32 %v2804, 1.442695
        %v2864 = vpow.pop %v2863
        %v2865 = vmul.f32 %v2805, 1.442695
        %v2866 = vpow.pop %v2865
        %v2867 = vmul.f32 %v2806, 1.442695
        %v2868 = vpow.pop %v2867
        %v2869 = vmul.f32 %v2807, 1.442695
        %v2870 = vpow.pop %v2869
        %v2871 = vmul.f32 %v2808, 1.442695
        %v2872 = vpow.pop %v2871
        %v2873 = vsel %vm2680, %v2810, 0.0
        %2874 = vadd.xlane.f32.xlu0 %v2873
        %v2875 = vpop.xlane.xlu0 %2874
        %v2876 = vsel %vm2680, %v2812, 0.0
        %2877 = vadd.xlane.f32.xlu0 %v2876
        %v2878 = vpop.xlane.xlu0 %2877
        %v2879 = vsel %vm2680, %v2814, 0.0
        %2880 = vadd.xlane.f32.xlu0 %v2879
        %v2881 = vpop.xlane.xlu0 %2880
        %v2882 = vsel %vm2680, %v2816, 0.0
        %2883 = vadd.xlane.f32.xlu0 %v2882
        %v2884 = vpop.xlane.xlu0 %2883
        %v2885 = vsel %vm2680, %v2818, 0.0
        %2886 = vadd.xlane.f32.xlu0 %v2885
        %v2887 = vpop.xlane.xlu0 %2886
        %v2888 = vsel %vm2680, %v2820, 0.0
        %2889 = vadd.xlane.f32.xlu0 %v2888
        %v2890 = vpop.xlane.xlu0 %2889
        %v2891 = vsel %vm2680, %v2822, 0.0
        %2892 = vadd.xlane.f32.xlu0 %v2891
        %v2893 = vpop.xlane.xlu0 %2892
        %v2894 = vsel %vm2680, %v2824, 0.0
        %2895 = vadd.xlane.f32.xlu0 %v2894
        %v2896 = vpop.xlane.xlu0 %2895
        %v2897 = vsel %vm2680, %v2826, 0.0
        %2898 = vadd.xlane.f32.xlu0 %v2897
        %v2899 = vpop.xlane.xlu0 %2898
        %v2900 = vsel %vm2680, %v2828, 0.0
        %2901 = vadd.xlane.f32.xlu0 %v2900
        %v2902 = vpop.xlane.xlu0 %2901
        %v2903 = vsel %vm2680, %v2830, 0.0
        %2904 = vadd.xlane.f32.xlu0 %v2903
        %v2905 = vpop.xlane.xlu0 %2904
        %v2906 = vsel %vm2680, %v2832, 0.0
        %2907 = vadd.xlane.f32.xlu0 %v2906
        %v2908 = vpop.xlane.xlu0 %2907
        %v2909 = vsel %vm2680, %v2834, 0.0
        %2910 = vadd.xlane.f32.xlu0 %v2909
        %v2911 = vpop.xlane.xlu0 %2910
        %v2912 = vsel %vm2680, %v2836, 0.0
        %2913 = vadd.xlane.f32.xlu0 %v2912
        %v2914 = vpop.xlane.xlu0 %2913
        %v2915 = vsel %vm2680, %v2838, 0.0
        %2916 = vadd.xlane.f32.xlu0 %v2915
        %v2917 = vpop.xlane.xlu0 %2916
        %v2918 = vsel %vm2680, %v2840, 0.0
        %2919 = vadd.xlane.f32.xlu0 %v2918
        %v2920 = vpop.xlane.xlu0 %2919
        %v2921 = vsel %vm2680, %v2842, 0.0
        %2922 = vadd.xlane.f32.xlu0 %v2921
        %v2923 = vpop.xlane.xlu0 %2922
        %v2924 = vsel %vm2680, %v2844, 0.0
        %2925 = vadd.xlane.f32.xlu0 %v2924
        %v2926 = vpop.xlane.xlu0 %2925
        %v2927 = vsel %vm2680, %v2846, 0.0
        %2928 = vadd.xlane.f32.xlu0 %v2927
        %v2929 = vpop.xlane.xlu0 %2928
        %v2930 = vsel %vm2680, %v2848, 0.0
        %2931 = vadd.xlane.f32.xlu0 %v2930
        %v2932 = vpop.xlane.xlu0 %2931
        %v2933 = vsel %vm2680, %v2850, 0.0
        %2934 = vadd.xlane.f32.xlu0 %v2933
        %v2935 = vpop.xlane.xlu0 %2934
        %v2936 = vsel %vm2680, %v2852, 0.0
        %2937 = vadd.xlane.f32.xlu0 %v2936
        %v2938 = vpop.xlane.xlu0 %2937
        %v2939 = vsel %vm2680, %v2854, 0.0
        %2940 = vadd.xlane.f32.xlu0 %v2939
        %v2941 = vpop.xlane.xlu0 %2940
        %v2942 = vsel %vm2680, %v2856, 0.0
        %2943 = vadd.xlane.f32.xlu0 %v2942
        %v2944 = vpop.xlane.xlu0 %2943
        %v2945 = vsel %vm2680, %v2858, 0.0
        %2946 = vadd.xlane.f32.xlu0 %v2945
        %v2947 = vpop.xlane.xlu0 %2946
        %v2948 = vsel %vm2680, %v2860, 0.0
        %2949 = vadd.xlane.f32.xlu0 %v2948
        %v2950 = vpop.xlane.xlu0 %2949
        %v2951 = vsel %vm2680, %v2862, 0.0
        %2952 = vadd.xlane.f32.xlu0 %v2951
        %v2953 = vpop.xlane.xlu0 %2952
        %v2954 = vsel %vm2680, %v2864, 0.0
        %2955 = vadd.xlane.f32.xlu0 %v2954
        %v2956 = vpop.xlane.xlu0 %2955
        %v2957 = vsel %vm2680, %v2866, 0.0
        %2958 = vadd.xlane.f32.xlu0 %v2957
        %v2959 = vpop.xlane.xlu0 %2958
        %v2960 = vsel %vm2680, %v2868, 0.0
        %2961 = vadd.xlane.f32.xlu0 %v2960
        %v2962 = vpop.xlane.xlu0 %2961
        %v2963 = vsel %vm2680, %v2870, 0.0
        %2964 = vadd.xlane.f32.xlu0 %v2963
        %v2965 = vpop.xlane.xlu0 %2964
        %v2966 = vsel %vm2680, %v2872, 0.0
        %2967 = vadd.xlane.f32.xlu0 %v2966
        %v2968 = vpop.xlane.xlu0 %2967
        %v2969 = vlog2.pop %v2875
        %v2970 = vmul.f32 %v2969, 0.6931472
        %v2971 = vlog2.pop %v2878
        %v2972 = vmul.f32 %v2971, 0.6931472
        %v2973 = vlog2.pop %v2881
        %v2974 = vmul.f32 %v2973, 0.6931472
        %v2975 = vlog2.pop %v2884
        %v2976 = vmul.f32 %v2975, 0.6931472
        %v2977 = vlog2.pop %v2887
        %v2978 = vmul.f32 %v2977, 0.6931472
        %v2979 = vlog2.pop %v2890
        %v2980 = vmul.f32 %v2979, 0.6931472
        %v2981 = vlog2.pop %v2893
        %v2982 = vmul.f32 %v2981, 0.6931472
        %v2983 = vlog2.pop %v2896
        %v2984 = vmul.f32 %v2983, 0.6931472
        %v2985 = vlog2.pop %v2899
        %v2986 = vmul.f32 %v2985, 0.6931472
        %v2987 = vlog2.pop %v2902
        %v2988 = vmul.f32 %v2987, 0.6931472
        %v2989 = vlog2.pop %v2905
        %v2990 = vmul.f32 %v2989, 0.6931472
        %v2991 = vlog2.pop %v2908
        %v2992 = vmul.f32 %v2991, 0.6931472
        %v2993 = vlog2.pop %v2911
        %v2994 = vmul.f32 %v2993, 0.6931472
        %v2995 = vlog2.pop %v2914
        %v2996 = vmul.f32 %v2995, 0.6931472
        %v2997 = vlog2.pop %v2917
        %v2998 = vmul.f32 %v2997, 0.6931472
        %v2999 = vlog2.pop %v2920
        %v3000 = vmul.f32 %v2999, 0.6931472
        %v3001 = vlog2.pop %v2923
        %v3002 = vmul.f32 %v3001, 0.6931472
        %v3003 = vlog2.pop %v2926
        %v3004 = vmul.f32 %v3003, 0.6931472
        %v3005 = vlog2.pop %v2929
        %v3006 = vmul.f32 %v3005, 0.6931472
        %v3007 = vlog2.pop %v2932
        %v3008 = vmul.f32 %v3007, 0.6931472
        %v3009 = vlog2.pop %v2935
        %v3010 = vmul.f32 %v3009, 0.6931472
        %v3011 = vlog2.pop %v2938
        %v3012 = vmul.f32 %v3011, 0.6931472
        %v3013 = vlog2.pop %v2941
        %v3014 = vmul.f32 %v3013, 0.6931472
        %v3015 = vlog2.pop %v2944
        %v3016 = vmul.f32 %v3015, 0.6931472
        %v3017 = vlog2.pop %v2947
        %v3018 = vmul.f32 %v3017, 0.6931472
        %v3019 = vlog2.pop %v2950
        %v3020 = vmul.f32 %v3019, 0.6931472
        %v3021 = vlog2.pop %v2953
        %v3022 = vmul.f32 %v3021, 0.6931472
        %v3023 = vlog2.pop %v2956
        %v3024 = vmul.f32 %v3023, 0.6931472
        %v3025 = vlog2.pop %v2959
        %v3026 = vmul.f32 %v3025, 0.6931472
        %v3027 = vlog2.pop %v2962
        %v3028 = vmul.f32 %v3027, 0.6931472
        %v3029 = vlog2.pop %v2965
        %v3030 = vmul.f32 %v3029, 0.6931472
        %v3031 = vlog2.pop %v2968
        %v3032 = vmul.f32 %v3031, 0.6931472
        %v3033 = vsub.f32 %v2777, %v2970
        %v3034 = vsub.f32 %v2778, %v2972
        %v3035 = vsub.f32 %v2779, %v2974
        %v3036 = vsub.f32 %v2780, %v2976
        %v3037 = vsub.f32 %v2781, %v2978
        %v3038 = vsub.f32 %v2782, %v2980
        %v3039 = vsub.f32 %v2783, %v2982
        %v3040 = vsub.f32 %v2784, %v2984
        %v3041 = vsub.f32 %v2785, %v2986
        %v3042 = vsub.f32 %v2786, %v2988
        %v3043 = vsub.f32 %v2787, %v2990
        %v3044 = vsub.f32 %v2788, %v2992
        %v3045 = vsub.f32 %v2789, %v2994
        %v3046 = vsub.f32 %v2790, %v2996
        %v3047 = vsub.f32 %v2791, %v2998
        %v3048 = vsub.f32 %v2792, %v3000
        %v3049 = vsub.f32 %v2793, %v3002
        %v3050 = vsub.f32 %v2794, %v3004
        %v3051 = vsub.f32 %v2795, %v3006
        %v3052 = vsub.f32 %v2796, %v3008
        %v3053 = vsub.f32 %v2797, %v3010
        %v3054 = vsub.f32 %v2798, %v3012
        %v3055 = vsub.f32 %v2799, %v3014
        %v3056 = vsub.f32 %v2800, %v3016
        %v3057 = vsub.f32 %v2801, %v3018
        %v3058 = vsub.f32 %v2802, %v3020
        %v3059 = vsub.f32 %v2803, %v3022
        %v3060 = vsub.f32 %v2804, %v3024
        %v3061 = vsub.f32 %v2805, %v3026
        %v3062 = vsub.f32 %v2806, %v3028
        %v3063 = vsub.f32 %v2807, %v3030
        %v3064 = vsub.f32 %v2808, %v3032
        %3065 = vst.msk [vmem:[%s339] sm:$0xff] %vm2680, %v3033
        %3066 = vst.msk [vmem:[%s339 + $0x8] sm:$0xff] %vm2680, %v3034
        %3067 = vst.msk [vmem:[%s339 + $0x10] sm:$0xff] %vm2680, %v3035
        %3068 = vst.msk [vmem:[%s339 + $0x18] sm:$0xff] %vm2680, %v3036
        %3069 = vst.msk [vmem:[%s339 + $0x20] sm:$0xff] %vm2680, %v3037
        %3070 = vst.msk [vmem:[%s339 + $0x28] sm:$0xff] %vm2680, %v3038
        %3071 = vst.msk [vmem:[%s339 + $0x30] sm:$0xff] %vm2680, %v3039
        %3072 = vst.msk [vmem:[%s339 + $0x38] sm:$0xff] %vm2680, %v3040
        %3073 = vst.msk [vmem:[%s339 + $0x40] sm:$0xff] %vm2680, %v3041
        %3074 = vst.msk [vmem:[%s339 + $0x48] sm:$0xff] %vm2680, %v3042
        %3075 = vst.msk [vmem:[%s339 + $0x50] sm:$0xff] %vm2680, %v3043
        %3076 = vst.msk [vmem:[%s339 + $0x58] sm:$0xff] %vm2680, %v3044
        %3077 = vst.msk [vmem:[%s339 + $0x60] sm:$0xff] %vm2680, %v3045
        %3078 = vst.msk [vmem:[%s339 + $0x68] sm:$0xff] %vm2680, %v3046
        %3079 = vst.msk [vmem:[%s339 + $0x70] sm:$0xff] %vm2680, %v3047
        %3080 = vst.msk [vmem:[%s339 + $0x78] sm:$0xff] %vm2680, %v3048
        %3081 = vst.msk [vmem:[%s339 + $0x80] sm:$0xff] %vm2680, %v3049
        %3082 = vst.msk [vmem:[%s339 + $0x88] sm:$0xff] %vm2680, %v3050
        %3083 = vst.msk [vmem:[%s339 + $0x90] sm:$0xff] %vm2680, %v3051
        %3084 = vst.msk [vmem:[%s339 + $0x98] sm:$0xff] %vm2680, %v3052
        %3085 = vst.msk [vmem:[%s339 + $0xa0] sm:$0xff] %vm2680, %v3053
        %3086 = vst.msk [vmem:[%s339 + $0xa8] sm:$0xff] %vm2680, %v3054
        %3087 = vst.msk [vmem:[%s339 + $0xb0] sm:$0xff] %vm2680, %v3055
        %3088 = vst.msk [vmem:[%s339 + $0xb8] sm:$0xff] %vm2680, %v3056
        %3089 = vst.msk [vmem:[%s339 + $0xc0] sm:$0xff] %vm2680, %v3057
        %3090 = vst.msk [vmem:[%s339 + $0xc8] sm:$0xff] %vm2680, %v3058
        %3091 = vst.msk [vmem:[%s339 + $0xd0] sm:$0xff] %vm2680, %v3059
        %3092 = vst.msk [vmem:[%s339 + $0xd8] sm:$0xff] %vm2680, %v3060
        %3093 = vst.msk [vmem:[%s339 + $0xe0] sm:$0xff] %vm2680, %v3061
        %3094 = vst.msk [vmem:[%s339 + $0xe8] sm:$0xff] %vm2680, %v3062
        %3095 = vst.msk [vmem:[%s339 + $0xf0] sm:$0xff] %vm2680, %v3063
        %3096 = vst.msk [vmem:[%s339 + $0xf8] sm:$0xff] %vm2680, %v3064
        %s3097 = sand.u32 %s222, 1
        %s3098 = sand.u32 %s222, 1
        %s3099 = smul.addr %s3098, 256
        %s3100 = scalar_lea.vmem [#allocation2], %s3099
        // Predicated region
        $region57: #{_lambda_.1} parent=55 // pred_check
          %p3101 = pneg %p232
        $region58: #{_lambda_.1} parent=55 // pred_check_branch
          %3103 = sbr.rel (%p3101) target = $region60
        $region59: #{_lambda_.1} parent=55 // pred_region
          %s3104 = smul.u32 32, %s20
          %s3105 = ssub.s32 125, %s3104
          %p3106 = scmp.lt.s32.totalorder %s3105, 32
          %s3107 = scalar_select %p3106, %s3105, 32
          %s3108 = smul.u32 128, %s3107
          %p3109 = scmp.ne.s32.totalorder 0, %s3108
          %s3110 = smul.addr %s3104, 8
          %s3111 = scalar_lea.vmem %s9, %s3110
          // Predicated region
          $region61: #{_lambda_.1} parent=59 // pred_check
            %p3112 = pneg %p3109
          $region62: #{_lambda_.1} parent=59 // pred_check_branch
            %3114 = sbr.rel (%p3112) target = $region64
          $region63: #{_lambda_.1} parent=59 // pred_region
            // Predicated region
            $region65: #{_lambda_.1} parent=63 // pred_check
              _
            $region66: #{_lambda_.1} parent=63 // pred_check_branch
              %3116 = sbr.rel (0) target = $region68
            $region67: #{_lambda_.1} parent=63 // pred_region
              // Predicated region
              $region87: #{_lambda_.1} parent=67 // pred_check
                _
              $region88: #{_lambda_.1} parent=67 // pred_check_branch
                %3228 = sbr.rel (0) target = $region90
              $region89: #{_lambda_.1} parent=67 // pred_region
                %s3229 = sshrl.u32 %s3107, 5
                // While loop
                $region91: #{_lambda_.1} parent=89 // loop_pre_header
                  _
                $region92: #{_lambda_.1} parent=89 // loop_header
                  %s3231 = sphi 0, %s3233
                  %p3232 = scmp.ge.s32.totalorder %s3231, %s3229
                  %s3236 = sphi 0, %s3305
                  %s3237 = sphi %s3100, %s3308
                  %s3238 = sphi %s3111, %s3309
                $region93: #{_lambda_.1} parent=89 // loop_header_branch
                  %3235 = sbr.rel (%p3232) target = $region97
                $region94: #{_lambda_.1} parent=89 // loop_body
                  %v3239 = vld [vmem:[%s3237] sm:$0xff]
                  %3240 = vst [vmem:[%s3238] sm:$0xff] %v3239
                  %v3241 = vld [vmem:[%s3237 + $0x8] sm:$0xff]
                  %3242 = vst [vmem:[%s3238 + $0x8] sm:$0xff] %v3241
                  %v3243 = vld [vmem:[%s3237 + $0x10] sm:$0xff]
                  %3244 = vst [vmem:[%s3238 + $0x10] sm:$0xff] %v3243
                  %v3245 = vld [vmem:[%s3237 + $0x18] sm:$0xff]
                  %3246 = vst [vmem:[%s3238 + $0x18] sm:$0xff] %v3245
                  %v3247 = vld [vmem:[%s3237 + $0x20] sm:$0xff]
                  %3248 = vst [vmem:[%s3238 + $0x20] sm:$0xff] %v3247
                  %v3249 = vld [vmem:[%s3237 + $0x28] sm:$0xff]
                  %3250 = vst [vmem:[%s3238 + $0x28] sm:$0xff] %v3249
                  %v3251 = vld [vmem:[%s3237 + $0x30] sm:$0xff]
                  %3252 = vst [vmem:[%s3238 + $0x30] sm:$0xff] %v3251
                  %v3253 = vld [vmem:[%s3237 + $0x38] sm:$0xff]
                  %3254 = vst [vmem:[%s3238 + $0x38] sm:$0xff] %v3253
                  %v3255 = vld [vmem:[%s3237 + $0x40] sm:$0xff]
                  %3256 = vst [vmem:[%s3238 + $0x40] sm:$0xff] %v3255
                  %v3257 = vld [vmem:[%s3237 + $0x48] sm:$0xff]
                  %3258 = vst [vmem:[%s3238 + $0x48] sm:$0xff] %v3257
                  %v3259 = vld [vmem:[%s3237 + $0x50] sm:$0xff]
                  %3260 = vst [vmem:[%s3238 + $0x50] sm:$0xff] %v3259
                  %v3261 = vld [vmem:[%s3237 + $0x58] sm:$0xff]
                  %3262 = vst [vmem:[%s3238 + $0x58] sm:$0xff] %v3261
                  %v3263 = vld [vmem:[%s3237 + $0x60] sm:$0xff]
                  %3264 = vst [vmem:[%s3238 + $0x60] sm:$0xff] %v3263
                  %v3265 = vld [vmem:[%s3237 + $0x68] sm:$0xff]
                  %3266 = vst [vmem:[%s3238 + $0x68] sm:$0xff] %v3265
                  %v3267 = vld [vmem:[%s3237 + $0x70] sm:$0xff]
                  %3268 = vst [vmem:[%s3238 + $0x70] sm:$0xff] %v3267
                  %v3269 = vld [vmem:[%s3237 + $0x78] sm:$0xff]
                  %3270 = vst [vmem:[%s3238 + $0x78] sm:$0xff] %v3269
                  %v3271 = vld [vmem:[%s3237 + $0x80] sm:$0xff]
                  %3272 = vst [vmem:[%s3238 + $0x80] sm:$0xff] %v3271
                  %v3273 = vld [vmem:[%s3237 + $0x88] sm:$0xff]
                  %3274 = vst [vmem:[%s3238 + $0x88] sm:$0xff] %v3273
                  %v3275 = vld [vmem:[%s3237 + $0x90] sm:$0xff]
                  %3276 = vst [vmem:[%s3238 + $0x90] sm:$0xff] %v3275
                  %v3277 = vld [vmem:[%s3237 + $0x98] sm:$0xff]
                  %3278 = vst [vmem:[%s3238 + $0x98] sm:$0xff] %v3277
                  %v3279 = vld [vmem:[%s3237 + $0xa0] sm:$0xff]
                  %3280 = vst [vmem:[%s3238 + $0xa0] sm:$0xff] %v3279
                  %v3281 = vld [vmem:[%s3237 + $0xa8] sm:$0xff]
                  %3282 = vst [vmem:[%s3238 + $0xa8] sm:$0xff] %v3281
                  %v3283 = vld [vmem:[%s3237 + $0xb0] sm:$0xff]
                  %3284 = vst [vmem:[%s3238 + $0xb0] sm:$0xff] %v3283
                  %v3285 = vld [vmem:[%s3237 + $0xb8] sm:$0xff]
                  %3286 = vst [vmem:[%s3238 + $0xb8] sm:$0xff] %v3285
                  %v3287 = vld [vmem:[%s3237 + $0xc0] sm:$0xff]
                  %3288 = vst [vmem:[%s3238 + $0xc0] sm:$0xff] %v3287
                  %v3289 = vld [vmem:[%s3237 + $0xc8] sm:$0xff]
                  %3290 = vst [vmem:[%s3238 + $0xc8] sm:$0xff] %v3289
                  %v3291 = vld [vmem:[%s3237 + $0xd0] sm:$0xff]
                  %3292 = vst [vmem:[%s3238 + $0xd0] sm:$0xff] %v3291
                  %v3293 = vld [vmem:[%s3237 + $0xd8] sm:$0xff]
                  %3294 = vst [vmem:[%s3238 + $0xd8] sm:$0xff] %v3293
                  %v3295 = vld [vmem:[%s3237 + $0xe0] sm:$0xff]
                  %3296 = vst [vmem:[%s3238 + $0xe0] sm:$0xff] %v3295
                  %v3297 = vld [vmem:[%s3237 + $0xe8] sm:$0xff]
                  %3298 = vst [vmem:[%s3238 + $0xe8] sm:$0xff] %v3297
                  %v3299 = vld [vmem:[%s3237 + $0xf0] sm:$0xff]
                  %3300 = vst [vmem:[%s3238 + $0xf0] sm:$0xff] %v3299
                  %v3301 = vld [vmem:[%s3237 + $0xf8] sm:$0xff]
                  %3302 = vst [vmem:[%s3238 + $0xf8] sm:$0xff] %v3301
                  %s3303 = sadd.s32 1, %s3236
                  %p3304 = scmp.ge.s32.totalorder %s3303, %s3229
                  %s3305 = scalar_select %p3304, 0, %s3303
                  %s3306 = smul.u32 %s3305, 256
                  %s3307 = smul.u32 %s3305, 256
                  %s3308 = scalar_lea.vmem %s3100, %s3306 [#allocation2]
                  %s3309 = scalar_lea.vmem %s3111, %s3307
                $region95: #{_lambda_.1} parent=89 // loop_footer
                  %s3233 = sadd.s32 %s3231, 1
                $region96: #{_lambda_.1} parent=89 // loop_footer_branch
                  %3230 = sbr.rel target = $region92
                $region97: #{_lambda_.1} parent=89 // loop_exit
                  _
                %s3310 = sshrl.u32 %s3107, 5
                %s3311 = sand.u32 %s3107, 31
                %s3312 = smul.u32 %s3310, 32
                %s3313 = smul.u32 8, %s3312
                %s3314 = scalar_lea.vmem %s3100, %s3313 [#allocation2]
                %s3315 = smul.u32 8, %s3312
                %s3316 = scalar_lea.vmem %s3111, %s3315
                // While loop
                $region98: #{_lambda_.1} parent=89 // loop_pre_header
                  _
                $region99: #{_lambda_.1} parent=89 // loop_header
                  %s3318 = sphi 0, %s3320
                  %p3319 = scmp.ge.s32.totalorder %s3318, %s3311
                  %s3323 = sphi 0, %s3330
                  %s3324 = sphi %s3314, %s3333
                  %s3325 = sphi %s3316, %s3334
                $region100: #{_lambda_.1} parent=89 // loop_header_branch
                  %3322 = sbr.rel (%p3319) target = $region104
                $region101: #{_lambda_.1} parent=89 // loop_body
                  %v3326 = vld [vmem:[%s3324] sm:$0xff]
                  %3327 = vst [vmem:[%s3325] sm:$0xff] %v3326
                  %s3328 = sadd.s32 1, %s3323
                  %p3329 = scmp.ge.s32.totalorder %s3328, %s3311
                  %s3330 = scalar_select %p3329, 0, %s3328
                  %s3331 = smul.u32 %s3330, 8
                  %s3332 = smul.u32 %s3330, 8
                  %s3333 = scalar_lea.vmem %s3314, %s3331 [#allocation2]
                  %s3334 = scalar_lea.vmem %s3316, %s3332
                $region102: #{_lambda_.1} parent=89 // loop_footer
                  %s3320 = sadd.s32 %s3318, 1
                $region103: #{_lambda_.1} parent=89 // loop_footer_branch
                  %3317 = sbr.rel target = $region99
                $region104: #{_lambda_.1} parent=89 // loop_exit
                  _
              $region90: #{_lambda_.1} parent=67 // pred_fallthru
                _
              // Predicated region
              $region105: #{_lambda_.1} parent=67 // pred_check
                _
              $region106: #{_lambda_.1} parent=67 // pred_check_branch
                %3336 = sbr.rel target = $region108
              $region107: #{_lambda_.1} parent=67 // pred_region
                _
              $region108: #{_lambda_.1} parent=67 // pred_fallthru
                _
            $region68: #{_lambda_.1} parent=63 // pred_fallthru
              _
            // Predicated region
            $region69: #{_lambda_.1} parent=63 // pred_check
              _
            $region70: #{_lambda_.1} parent=63 // pred_check_branch
              %3118 = sbr.rel target = $region72
            $region71: #{_lambda_.1} parent=63 // pred_region
              %s3120 = ssub.s32 256, 1
              %s3121 = sshrl.u32 %s3107, 5
              // While loop
              $region73: #{_lambda_.1} parent=71 // loop_pre_header
                _
              $region74: #{_lambda_.1} parent=71 // loop_header
                %s3123 = sphi 0, %s3125
                %p3124 = scmp.ge.s32.totalorder %s3123, %s3121
                %s3128 = sphi 0, %s3197
                %s3129 = sphi %s3100, %s3200
                %s3130 = sphi %s3111, %s3201
              $region75: #{_lambda_.1} parent=71 // loop_header_branch
                %3127 = sbr.rel (%p3124) target = $region79
              $region76: #{_lambda_.1} parent=71 // loop_body
                %v3131 = vld [vmem:[%s3129] sm:%s3120]
                %3132 = vst [vmem:[%s3130] sm:%s3120] %v3131
                %v3133 = vld [vmem:[%s3129 + $0x8] sm:%s3120]
                %3134 = vst [vmem:[%s3130 + $0x8] sm:%s3120] %v3133
                %v3135 = vld [vmem:[%s3129 + $0x10] sm:%s3120]
                %3136 = vst [vmem:[%s3130 + $0x10] sm:%s3120] %v3135
                %v3137 = vld [vmem:[%s3129 + $0x18] sm:%s3120]
                %3138 = vst [vmem:[%s3130 + $0x18] sm:%s3120] %v3137
                %v3139 = vld [vmem:[%s3129 + $0x20] sm:%s3120]
                %3140 = vst [vmem:[%s3130 + $0x20] sm:%s3120] %v3139
                %v3141 = vld [vmem:[%s3129 + $0x28] sm:%s3120]
                %3142 = vst [vmem:[%s3130 + $0x28] sm:%s3120] %v3141
                %v3143 = vld [vmem:[%s3129 + $0x30] sm:%s3120]
                %3144 = vst [vmem:[%s3130 + $0x30] sm:%s3120] %v3143
                %v3145 = vld [vmem:[%s3129 + $0x38] sm:%s3120]
                %3146 = vst [vmem:[%s3130 + $0x38] sm:%s3120] %v3145
                %v3147 = vld [vmem:[%s3129 + $0x40] sm:%s3120]
                %3148 = vst [vmem:[%s3130 + $0x40] sm:%s3120] %v3147
                %v3149 = vld [vmem:[%s3129 + $0x48] sm:%s3120]
                %3150 = vst [vmem:[%s3130 + $0x48] sm:%s3120] %v3149
                %v3151 = vld [vmem:[%s3129 + $0x50] sm:%s3120]
                %3152 = vst [vmem:[%s3130 + $0x50] sm:%s3120] %v3151
                %v3153 = vld [vmem:[%s3129 + $0x58] sm:%s3120]
                %3154 = vst [vmem:[%s3130 + $0x58] sm:%s3120] %v3153
                %v3155 = vld [vmem:[%s3129 + $0x60] sm:%s3120]
                %3156 = vst [vmem:[%s3130 + $0x60] sm:%s3120] %v3155
                %v3157 = vld [vmem:[%s3129 + $0x68] sm:%s3120]
                %3158 = vst [vmem:[%s3130 + $0x68] sm:%s3120] %v3157
                %v3159 = vld [vmem:[%s3129 + $0x70] sm:%s3120]
                %3160 = vst [vmem:[%s3130 + $0x70] sm:%s3120] %v3159
                %v3161 = vld [vmem:[%s3129 + $0x78] sm:%s3120]
                %3162 = vst [vmem:[%s3130 + $0x78] sm:%s3120] %v3161
                %v3163 = vld [vmem:[%s3129 + $0x80] sm:%s3120]
                %3164 = vst [vmem:[%s3130 + $0x80] sm:%s3120] %v3163
                %v3165 = vld [vmem:[%s3129 + $0x88] sm:%s3120]
                %3166 = vst [vmem:[%s3130 + $0x88] sm:%s3120] %v3165
                %v3167 = vld [vmem:[%s3129 + $0x90] sm:%s3120]
                %3168 = vst [vmem:[%s3130 + $0x90] sm:%s3120] %v3167
                %v3169 = vld [vmem:[%s3129 + $0x98] sm:%s3120]
                %3170 = vst [vmem:[%s3130 + $0x98] sm:%s3120] %v3169
                %v3171 = vld [vmem:[%s3129 + $0xa0] sm:%s3120]
                %3172 = vst [vmem:[%s3130 + $0xa0] sm:%s3120] %v3171
                %v3173 = vld [vmem:[%s3129 + $0xa8] sm:%s3120]
                %3174 = vst [vmem:[%s3130 + $0xa8] sm:%s3120] %v3173
                %v3175 = vld [vmem:[%s3129 + $0xb0] sm:%s3120]
                %3176 = vst [vmem:[%s3130 + $0xb0] sm:%s3120] %v3175
                %v3177 = vld [vmem:[%s3129 + $0xb8] sm:%s3120]
                %3178 = vst [vmem:[%s3130 + $0xb8] sm:%s3120] %v3177
                %v3179 = vld [vmem:[%s3129 + $0xc0] sm:%s3120]
                %3180 = vst [vmem:[%s3130 + $0xc0] sm:%s3120] %v3179
                %v3181 = vld [vmem:[%s3129 + $0xc8] sm:%s3120]
                %3182 = vst [vmem:[%s3130 + $0xc8] sm:%s3120] %v3181
                %v3183 = vld [vmem:[%s3129 + $0xd0] sm:%s3120]
                %3184 = vst [vmem:[%s3130 + $0xd0] sm:%s3120] %v3183
                %v3185 = vld [vmem:[%s3129 + $0xd8] sm:%s3120]
                %3186 = vst [vmem:[%s3130 + $0xd8] sm:%s3120] %v3185
                %v3187 = vld [vmem:[%s3129 + $0xe0] sm:%s3120]
                %3188 = vst [vmem:[%s3130 + $0xe0] sm:%s3120] %v3187
                %v3189 = vld [vmem:[%s3129 + $0xe8] sm:%s3120]
                %3190 = vst [vmem:[%s3130 + $0xe8] sm:%s3120] %v3189
                %v3191 = vld [vmem:[%s3129 + $0xf0] sm:%s3120]
                %3192 = vst [vmem:[%s3130 + $0xf0] sm:%s3120] %v3191
                %v3193 = vld [vmem:[%s3129 + $0xf8] sm:%s3120]
                %3194 = vst [vmem:[%s3130 + $0xf8] sm:%s3120] %v3193
                %s3195 = sadd.s32 1, %s3128
                %p3196 = scmp.ge.s32.totalorder %s3195, %s3121
                %s3197 = scalar_select %p3196, 0, %s3195
                %s3198 = smul.u32 %s3197, 256
                %s3199 = smul.u32 %s3197, 256
                %s3200 = scalar_lea.vmem %s3100, %s3198 [#allocation2]
                %s3201 = scalar_lea.vmem %s3111, %s3199
              $region77: #{_lambda_.1} parent=71 // loop_footer
                %s3125 = sadd.s32 %s3123, 1
              $region78: #{_lambda_.1} parent=71 // loop_footer_branch
                %3122 = sbr.rel target = $region74
              $region79: #{_lambda_.1} parent=71 // loop_exit
                _
              %s3202 = sshrl.u32 %s3107, 5
              %s3203 = sand.u32 %s3107, 31
              %s3204 = smul.u32 %s3202, 32
              %s3205 = smul.u32 8, %s3204
              %s3206 = scalar_lea.vmem %s3100, %s3205 [#allocation2]
              %s3207 = smul.u32 8, %s3204
              %s3208 = scalar_lea.vmem %s3111, %s3207
              // While loop
              $region80: #{_lambda_.1} parent=71 // loop_pre_header
                _
              $region81: #{_lambda_.1} parent=71 // loop_header
                %s3210 = sphi 0, %s3212
                %p3211 = scmp.ge.s32.totalorder %s3210, %s3203
                %s3215 = sphi 0, %s3222
                %s3216 = sphi %s3206, %s3225
                %s3217 = sphi %s3208, %s3226
              $region82: #{_lambda_.1} parent=71 // loop_header_branch
                %3214 = sbr.rel (%p3211) target = $region86
              $region83: #{_lambda_.1} parent=71 // loop_body
                %v3218 = vld [vmem:[%s3216] sm:%s3120]
                %3219 = vst [vmem:[%s3217] sm:%s3120] %v3218
                %s3220 = sadd.s32 1, %s3215
                %p3221 = scmp.ge.s32.totalorder %s3220, %s3203
                %s3222 = scalar_select %p3221, 0, %s3220
                %s3223 = smul.u32 %s3222, 8
                %s3224 = smul.u32 %s3222, 8
                %s3225 = scalar_lea.vmem %s3206, %s3223 [#allocation2]
                %s3226 = scalar_lea.vmem %s3208, %s3224
              $region84: #{_lambda_.1} parent=71 // loop_footer
                %s3212 = sadd.s32 %s3210, 1
              $region85: #{_lambda_.1} parent=71 // loop_footer_branch
                %3209 = sbr.rel target = $region81
              $region86: #{_lambda_.1} parent=71 // loop_exit
                _
            $region72: #{_lambda_.1} parent=63 // pred_fallthru
              _
          $region64: #{_lambda_.1} parent=59 // pred_fallthru
            _
          %3337 = vnop
        $region60: #{_lambda_.1} parent=55 // pred_fallthru
          _
      $region56: #{_lambda_.1} parent=5 // pred_fallthru
        _
      %p3338 = scmp.le.s32.totalorder 2, %s15
      // Predicated region
      $region109: #{_lambda_.1} parent=5 // pred_check
        %p3339 = pneg %p3338
      $region110: #{_lambda_.1} parent=5 // pred_check_branch
        %3341 = sbr.rel (%p3339) target = $region112
      $region111: #{_lambda_.1} parent=5 // pred_region
        %s3342 = ssub.s32 %s15, 2
        // Predicated region
        $region113: #{_lambda_.1} parent=111 // pred_check
          %p3343 = pneg %p238
        $region114: #{_lambda_.1} parent=111 // pred_check_branch
          %3345 = sbr.rel (%p3343) target = $region116
        $region115: #{_lambda_.1} parent=111 // pred_region
          %s3346 = sand.u32 %s223, 1
          %s3347 = sand.u32 %s223, 1
          %s3348 = smul.addr %s3347, 256
          %s3349 = scalar_lea.vmem [#allocation2], %s3348
        $region116: #{_lambda_.1} parent=111 // pred_fallthru
          _
      $region112: #{_lambda_.1} parent=5 // pred_fallthru
        _
    $region6: #{_lambda_.1} parent=1 // loop_footer
      %s19 = sadd.s32 1, %s15
    $region7: #{_lambda_.1} parent=1 // loop_footer_branch
      %14 = sbr.rel target = $region3
    $region8: #{_lambda_.1} parent=1 // loop_exit
      _

</llo_original>
